<compile_context>
chip_gen: v7x
topology: tpu7x:2x2x1
jax: 0.10.0
libtpu: 0.0.40
codegen_flags: <defaults>
</compile_context>

<pallas_src>
import functools
import math

import jax
import jax.numpy as jnp
from jax.experimental import pallas as pl
from jax.experimental.pallas import tpu as pltpu

F32 = jnp.float32
NEG_INF = -1e9

# contracting the last dim of both operands == A @ B.T without an explicit (XLU) transpose
_DIMS_NT = (((1,), (1,)), ((), ()))


# ----------------------------- helpers -----------------------------

def _gelu_exact(x):
    # nn.GELU() default (erf-based, exact)
    return 0.5 * x * (1.0 + jax.lax.erf(x * (1.0 / math.sqrt(2.0))))


def _choose_cells_per_step(n, cap=16):
    """Largest divisor of n (<= cap) that still leaves >= 2 grid steps when possible."""
    divs = [d for d in range(1, min(n, cap) + 1) if n % d == 0]
    multi = [d for d in divs if n // d >= 2]
    return max(multi) if multi else max(divs)


# ----------------------------- fused Pallas kernel -----------------------------

def _bert_block_kernel(emb_ref, mask_ref, emb_ln_ref,
                       wqkv_ref, bqkv_ref, wo_ref, bo_ref, ln1_ref,
                       wi_ref, bi_ref, wf_ref, bf_ref, ln2_ref,
                       pool_w_ref, pool_b_ref, cls_w_ref, cls_b_ref,
                       o_ref, ctx_ref, cls_ref,
                       *, num_heads, eps, scale, cps, seq):
    M, H = emb_ref.shape               # M = cps * seq (all cells of this step, stacked)
    dh = H // num_heads
    L = wqkv_ref.shape[0]
    big_mask = mask_ref[0]             # (M, M) block-diag + key-padding additive mask

    def layernorm(x, gb):              # gb: (2, H) = [gamma; beta]
        g = gb[0:1, :]
        b = gb[1:2, :]
        mu = jnp.mean(x, axis=-1, keepdims=True)
        var = jnp.mean(jnp.square(x - mu), axis=-1, keepdims=True)
        return (x - mu) * jax.lax.rsqrt(var + eps) * g + b

    # embedding LayerNorm (no residual)
    x = layernorm(emb_ref[...], emb_ln_ref[...])                           # (M, H)

    # TODO(synk): for L >= ~8 switch to lax.fori_loop / an L grid axis (stream weights)
    #             instead of a static unroll, to bound vreg live ranges.
    for l in range(L):
        # fused QKV projection over all cells of the step: (M, H) @ (H, 3H)
        qkv = jnp.dot(x, wqkv_ref[l], preferred_element_type=F32) + bqkv_ref[l]
        for h in range(num_heads):                      # lane-contiguous head slices
            q = qkv[:, h * dh:(h + 1) * dh]
            k = qkv[:, H + h * dh:H + (h + 1) * dh]
            v = qkv[:, 2 * H + h * dh:2 * H + (h + 1) * dh]
            # q @ k^T without materializing k.T (block-diag mask keeps cells independent)
            s = jax.lax.dot_general(q, k, _DIMS_NT, preferred_element_type=F32)
            s = s * scale + big_mask
            s = s - jnp.max(s, axis=-1, keepdims=True)
            p = jnp.exp(s)
            # approx reciprocal (EUP path); not bit-identical to exact softmax
            p = p * pl.reciprocal(jnp.sum(p, axis=-1, keepdims=True), approx=True)
            # static-lane-offset scratch store instead of a lane-axis concatenate
            ctx_ref[:, h * dh:(h + 1) * dh] = jnp.dot(p, v, preferred_element_type=F32)

        attn_out = jnp.dot(ctx_ref[...], wo_ref[l], preferred_element_type=F32) + bo_ref[l]
        x = layernorm(attn_out + x, ln1_ref[l])

        inter = _gelu_exact(jnp.dot(x, wi_ref[l], preferred_element_type=F32) + bi_ref[l])
        ffn = jnp.dot(inter, wf_ref[l], preferred_element_type=F32) + bf_ref[l]
        x = layernorm(ffn + x, ln2_ref[l])

    # gather the [CLS] (first) row of every cell into a (cps, H) scratch -> batched pooler
    for c in range(cps):
        cls_ref[c:c + 1, :] = x[c * seq:c * seq + 1, :]
    pooled = jnp.tanh(jnp.dot(cls_ref[...], pool_w_ref[...],
                              preferred_element_type=F32) + pool_b_ref[...])   # (cps, H)
    g = _gelu_exact(pooled)
    # lane-dense classifier: (1, H) x (cps, H)^T -> (1, cps)
    scores = jax.lax.dot_general(cls_w_ref[...], g, _DIMS_NT,
                                 preferred_element_type=F32) + cls_b_ref[...]
    o_ref[0] = scores


def bert_cells(emb, add_mask, pp, *, num_heads, eps):
    """Run the whole per-cell BERT stack in one pallas_call.

    emb:      (N, S, H) summed embeddings (word + pos + type), pre-LayerNorm.
    add_mask: (N, S) additive key-padding mask (0 for valid, -1e9 for pad).
    returns:  (N,) classifier scores.
    """
    N, S, H = emb.shape
    scale = 1.0 / math.sqrt(H // num_heads)

    cps = _choose_cells_per_step(N)          # cells per grid step
    G = N // cps                             # grid steps (>= 2 when N >= 2 -> both TCs busy)
    M = cps * S
    assert M % 8 == 0, "cells_per_step * seq_len must be sublane (8) aligned"

    # Block-diagonal additive mask: a query row only sees keys of its own cell's (S, S)
    # block; within the block the per-cell key-padding mask is broadcast over query rows.
    row_blk = jnp.arange(M, dtype=jnp.int32) // S
    blockdiag = jnp.where(row_blk[:, None] == row_blk[None, :], 0.0, NEG_INF).astype(F32)
    big_mask = blockdiag[None, :, :] + add_mask.reshape(G, 1, M)           # (G, M, M)

    emb2 = emb.reshape(N * S, H)                                           # (N*S, H)

    weight_names = ["emb_ln", "wqkv", "bqkv", "wo", "bo", "ln1",
                    "wi", "bi", "wf", "bf", "ln2",
                    "pool_w", "pool_b", "cls_w", "cls_b"]
    weights = [pp[n] for n in weight_names]

    def resident(w):     # full-array block, constant index_map -> VMEM-resident weight
        nd = w.ndim
        return pl.BlockSpec(w.shape, lambda i, _nd=nd: (0,) * _nd)

    in_specs = ([pl.BlockSpec((M, H), lambda i: (i, 0)),        # this step's cells, stacked
                 pl.BlockSpec((1, M, M), lambda i: (i, 0, 0))]  # block-diag additive mask
                + [resident(w) for w in weights])

    kernel = functools.partial(_bert_block_kernel, num_heads=num_heads, eps=eps,
                               scale=scale, cps=cps, seq=S)

    # advisory cost estimate + explicit scoped-VMEM limit (with headroom)
    L = pp["wqkv"].shape[0]
    I = pp["wi"].shape[-1]
    flops = int(N * (L * (2 * S * H * 3 * H + 4 * S * S * H + 2 * S * H * H
                          + 4 * S * H * I) + 2 * H * H + 2 * H))
    transcendentals = int(N * (L * (num_heads * S * S + S * I) + 2 * H))
    bytes_accessed = int(4 * (emb2.size + big_mask.size + N
                              + sum(int(w.size) for w in weights)))
    resident_bytes = sum(int(w.size) * 4 for w in weights)
    block_bytes = (M * H + M * M + cps) * 4
    vmem_limit = int(min(64 * 1024 * 1024,
                         max(16 * 1024 * 1024, 4 * (resident_bytes + 2 * block_bytes))))

    out = pl.pallas_call(
        kernel,
        out_shape=jax.ShapeDtypeStruct((G, 1, cps), F32),
        grid=(G,),
        in_specs=in_specs,
        out_specs=pl.BlockSpec((1, 1, cps), lambda i: (i, 0, 0)),   # lane-dense score row
        scratch_shapes=[pltpu.VMEM((M, H), F32),       # attention context (per-head stores)
                        pltpu.VMEM((cps, H), F32)],    # gathered [CLS] rows
        compiler_params=pltpu.CompilerParams(
            dimension_semantics=("parallel",),          # shard steps across TCs (v7x)
            vmem_limit_bytes=vmem_limit),
        cost_estimate=pl.CostEstimate(flops=flops, transcendentals=transcendentals,
                                      bytes_accessed=bytes_accessed),
    )(emb2, big_mask, *weights)
    return out.reshape(N)


# ----------------------------- parameters -----------------------------

def init_params(key, cfg):
    H = cfg["hidden_size"]
    I = cfg["intermediate_size"]
    V = cfg["vocab_size"]
    P = cfg["max_position_embeddings"]
    T = cfg["type_vocab_size"]
    L = cfg["num_hidden_layers"]
    std = cfg["initializer_range"]

    keys = iter(jax.random.split(key, 8 + 8 * L))

    def nrm(shape):
        return jax.random.normal(next(keys), shape, F32) * std

    params = {
        "word_emb": nrm((V, H)).at[cfg["pad_token_id"]].set(0.0),
        "pos_emb": nrm((P, H)),
        "type_emb": nrm((T, H)),
        "emb_ln_g": jnp.ones((H,), F32), "emb_ln_b": jnp.zeros((H,), F32),
        "pooler_w": nrm((H, H)), "pooler_b": jnp.zeros((H,), F32),
        "cls_w": nrm((H, 1)), "cls_b": jnp.zeros((1,), F32),
        "layers": [],
    }
    for _ in range(L):
        params["layers"].append({
            "wq": nrm((H, H)), "bq": jnp.zeros((H,), F32),
            "wk": nrm((H, H)), "bk": jnp.zeros((H,), F32),
            "wv": nrm((H, H)), "bv": jnp.zeros((H,), F32),
            "wo": nrm((H, H)), "bo": jnp.zeros((H,), F32),
            "ln1_g": jnp.ones((H,), F32), "ln1_b": jnp.zeros((H,), F32),
            "wi": nrm((H, I)), "bi": jnp.zeros((I,), F32),
            "wf": nrm((I, H)), "bf": jnp.zeros((H,), F32),
            "ln2_g": jnp.ones((H,), F32), "ln2_b": jnp.zeros((H,), F32),
        })
    return params


def pack_params(params):
    """Pack per-layer weights into stacked arrays (fused QKV, stacked LN params)."""
    layers = params["layers"]
    wqkv = jnp.stack([jnp.concatenate([lp["wq"], lp["wk"], lp["wv"]], axis=1)
                      for lp in layers])                                   # (L, H, 3H)
    bqkv = jnp.stack([jnp.concatenate([lp["bq"], lp["bk"], lp["bv"]])
                      for lp in layers])[:, None, :]                       # (L, 1, 3H)
    return {
        "word_emb": params["word_emb"],
        "pos_emb": params["pos_emb"],
        "type_emb": params["type_emb"],
        "emb_ln": jnp.stack([params["emb_ln_g"], params["emb_ln_b"]]),     # (2, H)
        "wqkv": wqkv, "bqkv": bqkv,
        "wo": jnp.stack([lp["wo"] for lp in layers]),                      # (L, H, H)
        "bo": jnp.stack([lp["bo"] for lp in layers])[:, None, :],          # (L, 1, H)
        "ln1": jnp.stack([jnp.stack([lp["ln1_g"], lp["ln1_b"]]) for lp in layers]),
        "wi": jnp.stack([lp["wi"] for lp in layers]),                      # (L, H, I)
        "bi": jnp.stack([lp["bi"] for lp in layers])[:, None, :],          # (L, 1, I)
        "wf": jnp.stack([lp["wf"] for lp in layers]),                      # (L, I, H)
        "bf": jnp.stack([lp["bf"] for lp in layers])[:, None, :],          # (L, 1, H)
        "ln2": jnp.stack([jnp.stack([lp["ln2_g"], lp["ln2_b"]]) for lp in layers]),
        "pool_w": params["pooler_w"], "pool_b": params["pooler_b"][None, :],
        "cls_w": params["cls_w"].T,                                        # (1, H) row
        "cls_b": params["cls_b"][None, :],                                 # (1, 1)
    }


# ----------------------------- forward -----------------------------

def bert_simple_forward(pp, input_ids, attention_mask, *, cfg):
    B, R, C, S = input_ids.shape
    N = B * R * C
    ids = input_ids.reshape(N, S)
    mask = attention_mask.reshape(N, S).astype(F32)

    # Embedding gather stays in JAX glue (table lookup); everything else is in the kernel.
    emb = (pp["word_emb"][ids]
           + pp["pos_emb"][:S][None, :, :]
           + pp["type_emb"][0][None, None, :])                            # (N, S, H)
    add_mask = (1.0 - mask) * jnp.float32(NEG_INF)                        # (N, S)

    scores = bert_cells(emb, add_mask, pp,
                        num_heads=cfg["num_attention_heads"],
                        eps=cfg["layer_norm_eps"])                        # (N,)
    return scores.reshape(B, R, C)


# ----------------------------- main -----------------------------

if __name__ == "__main__":
    cfg = dict(
        vocab_size=128, hidden_size=32, intermediate_size=64,
        num_hidden_layers=2, num_attention_heads=2, hidden_act="gelu",
        hidden_dropout_prob=0.1, attention_probs_dropout_prob=0.1,
        max_position_embeddings=16, type_vocab_size=2, layer_norm_eps=1e-12,
        initializer_range=0.02, pad_token_id=0, gradient_checkpointing=False,
    )

    key = jax.random.PRNGKey(0)
    k_ids, k_len, k_params = jax.random.split(key, 3)

    batch, rows, cols, seq_len = 2, 2, 2, 8
    input_ids = jax.random.randint(
        k_ids, (batch, rows, cols, seq_len), 1, cfg["vocab_size"], dtype=jnp.int32)
    lengths = jax.random.randint(k_len, (batch, rows, cols, 1), 4, seq_len + 1)
    attention_mask = (jnp.arange(seq_len)[None, None, None, :] < lengths).astype(jnp.int32)

    params = pack_params(init_params(k_params, cfg))

    fwd = jax.jit(functools.partial(bert_simple_forward, cfg=cfg))
    out = fwd(params, input_ids, attention_mask)
    out = jax.block_until_ready(out)

    assert out.shape == (batch, rows, cols), out.shape
    assert out.dtype == jnp.float32
    assert bool(jnp.all(jnp.isfinite(out)))
    print("KERNEL_OK")
</pallas_src>

<mosaic_0001>
module attributes {stable_mosaic.version = 11 : i64} {
  func.func @_bert_block_kernel(%arg0: i32, %arg1: memref<32x32xf32, #tpu.memory_space<vmem>>, %arg2: memref<1x32x32xf32, #tpu.memory_space<vmem>>, %arg3: memref<2x32xf32, #tpu.memory_space<vmem>>, %arg4: memref<2x32x96xf32, #tpu.memory_space<vmem>>, %arg5: memref<2x1x96xf32, #tpu.memory_space<vmem>>, %arg6: memref<2x32x32xf32, #tpu.memory_space<vmem>>, %arg7: memref<2x1x32xf32, #tpu.memory_space<vmem>>, %arg8: memref<2x2x32xf32, #tpu.memory_space<vmem>>, %arg9: memref<2x32x64xf32, #tpu.memory_space<vmem>>, %arg10: memref<2x1x64xf32, #tpu.memory_space<vmem>>, %arg11: memref<2x64x32xf32, #tpu.memory_space<vmem>>, %arg12: memref<2x1x32xf32, #tpu.memory_space<vmem>>, %arg13: memref<2x2x32xf32, #tpu.memory_space<vmem>>, %arg14: memref<32x32xf32, #tpu.memory_space<vmem>>, %arg15: memref<1x32xf32, #tpu.memory_space<vmem>>, %arg16: memref<1x32xf32, #tpu.memory_space<vmem>>, %arg17: memref<1x1xf32, #tpu.memory_space<vmem>>, %arg18: memref<1x1x4xf32, #tpu.memory_space<vmem>>, %arg19: memref<32x32xf32, #tpu.memory_space<vmem>>, %arg20: memref<4x32xf32, #tpu.memory_space<vmem>>) attributes {dimension_semantics = [#tpu.dimension_semantics<parallel>], iteration_bounds = array<i64: 2>, scalar_prefetch = 0 : i64, scratch_operands = 2 : i64, tpu.core_type = #tpu.core_type<tc>, window_params = [{transform_indices = @transform_0, window_bounds = array<i64: 32, 32>}, {transform_indices = @transform_1, window_bounds = array<i64: 1, 32, 32>}, {pipeline_mode = #tpu.pipeline_mode<synchronous>, transform_indices = @transform_2, window_bounds = array<i64: 2, 32>}, {pipeline_mode = #tpu.pipeline_mode<synchronous>, transform_indices = @transform_3, window_bounds = array<i64: 2, 32, 96>}, {pipeline_mode = #tpu.pipeline_mode<synchronous>, transform_indices = @transform_4, window_bounds = array<i64: 2, 1, 96>}, {pipeline_mode = #tpu.pipeline_mode<synchronous>, transform_indices = @transform_5, window_bounds = array<i64: 2, 32, 32>}, {pipeline_mode = #tpu.pipeline_mode<synchronous>, transform_indices = @transform_6, window_bounds = array<i64: 2, 1, 32>}, {pipeline_mode = #tpu.pipeline_mode<synchronous>, transform_indices = @transform_7, window_bounds = array<i64: 2, 2, 32>}, {pipeline_mode = #tpu.pipeline_mode<synchronous>, transform_indices = @transform_8, window_bounds = array<i64: 2, 32, 64>}, {pipeline_mode = #tpu.pipeline_mode<synchronous>, transform_indices = @transform_9, window_bounds = array<i64: 2, 1, 64>}, {pipeline_mode = #tpu.pipeline_mode<synchronous>, transform_indices = @transform_10, window_bounds = array<i64: 2, 64, 32>}, {pipeline_mode = #tpu.pipeline_mode<synchronous>, transform_indices = @transform_11, window_bounds = array<i64: 2, 1, 32>}, {pipeline_mode = #tpu.pipeline_mode<synchronous>, transform_indices = @transform_12, window_bounds = array<i64: 2, 2, 32>}, {pipeline_mode = #tpu.pipeline_mode<synchronous>, transform_indices = @transform_13, window_bounds = array<i64: 32, 32>}, {pipeline_mode = #tpu.pipeline_mode<synchronous>, transform_indices = @transform_14, window_bounds = array<i64: 1, 32>}, {pipeline_mode = #tpu.pipeline_mode<synchronous>, transform_indices = @transform_15, window_bounds = array<i64: 1, 32>}, {pipeline_mode = #tpu.pipeline_mode<synchronous>, transform_indices = @transform_16, window_bounds = array<i64: 1, 1>}, {transform_indices = @transform_17, window_bounds = array<i64: 1, 1, 4>}]} {
    %c0 = arith.constant 0 : index
    %c0_0 = arith.constant 0 : index
    %c0_1 = arith.constant 0 : index
    %0 = vector.load %arg2[%c0, %c0_0, %c0_1] : memref<1x32x32xf32, #tpu.memory_space<vmem>>, vector<1x32x32xf32>
    %1 = vector.shape_cast %0 : vector<1x32x32xf32> to vector<32x32xf32>
    %c0_2 = arith.constant 0 : index
    %c0_3 = arith.constant 0 : index
    %2 = vector.load %arg1[%c0_2, %c0_3] : memref<32x32xf32, #tpu.memory_space<vmem>>, vector<32x32xf32>
    %c0_4 = arith.constant 0 : index
    %c0_5 = arith.constant 0 : index
    %3 = vector.load %arg3[%c0_4, %c0_5] : memref<2x32xf32, #tpu.memory_space<vmem>>, vector<2x32xf32>
    %4 = vector.extract_strided_slice %3 {offsets = [0, 0], sizes = [1, 32], strides = [1, 1]} : vector<2x32xf32> to vector<1x32xf32>
    %5 = vector.extract_strided_slice %3 {offsets = [1, 0], sizes = [1, 32], strides = [1, 1]} : vector<2x32xf32> to vector<1x32xf32>
    %cst = arith.constant dense<0.000000e+00> : vector<32xf32>
    %6 = vector.multi_reduction <add>, %2, %cst [1] : vector<32x32xf32> to vector<32xf32>
    %7 = vector.shape_cast %6 : vector<32xf32> to vector<32x1xf32>
    %cst_6 = arith.constant 3.200000e+01 : f32
    %8 = vector.broadcast %cst_6 : f32 to vector<32x1xf32>
    %9 = arith.divf %7, %8 : vector<32x1xf32>
    %10 = vector.broadcast %9 : vector<32x1xf32> to vector<32x32xf32>
    %11 = arith.subf %2, %10 : vector<32x32xf32>
    %12 = arith.mulf %11, %11 : vector<32x32xf32>
    %cst_7 = arith.constant dense<0.000000e+00> : vector<32xf32>
    %13 = vector.multi_reduction <add>, %12, %cst_7 [1] : vector<32x32xf32> to vector<32xf32>
    %14 = vector.shape_cast %13 : vector<32xf32> to vector<32x1xf32>
    %cst_8 = arith.constant 3.200000e+01 : f32
    %15 = vector.broadcast %cst_8 : f32 to vector<32x1xf32>
    %16 = arith.divf %14, %15 : vector<32x1xf32>
    %17 = vector.broadcast %9 : vector<32x1xf32> to vector<32x32xf32>
    %18 = arith.subf %2, %17 : vector<32x32xf32>
    %cst_9 = arith.constant 9.99999996E-13 : f32
    %19 = vector.broadcast %cst_9 : f32 to vector<32x1xf32>
    %20 = arith.addf %16, %19 : vector<32x1xf32>
    %21 = math.rsqrt %20 : vector<32x1xf32>
    %22 = vector.broadcast %21 : vector<32x1xf32> to vector<32x32xf32>
    %23 = arith.mulf %18, %22 : vector<32x32xf32>
    %24 = vector.broadcast %4 : vector<1x32xf32> to vector<32x32xf32>
    %25 = arith.mulf %23, %24 : vector<32x32xf32>
    %26 = vector.broadcast %5 : vector<1x32xf32> to vector<32x32xf32>
    %27 = arith.addf %25, %26 : vector<32x32xf32>
    %c0_10 = arith.constant 0 : index
    %c0_11 = arith.constant 0 : index
    %c0_12 = arith.constant 0 : index
    %28 = vector.load %arg4[%c0_10, %c0_11, %c0_12] : memref<2x32x96xf32, #tpu.memory_space<vmem>>, vector<1x32x96xf32>
    %29 = vector.shape_cast %28 : vector<1x32x96xf32> to vector<32x96xf32>
    %cst_13 = arith.constant dense<0.000000e+00> : vector<32x96xf32>
    %30 = tpu.matmul %27, %29, %cst_13 {dimension_numbers = #tpu.dot_dimension_numbers<[1], [0], [0], [1], [0, 0, 1, 1], [], []>} : vector<32x32xf32>, vector<32x96xf32>, vector<32x96xf32> -> vector<32x96xf32>
    %c0_14 = arith.constant 0 : index
    %c0_15 = arith.constant 0 : index
    %c0_16 = arith.constant 0 : index
    %31 = vector.load %arg5[%c0_14, %c0_15, %c0_16] : memref<2x1x96xf32, #tpu.memory_space<vmem>>, vector<1x1x96xf32>
    %32 = vector.shape_cast %31 : vector<1x1x96xf32> to vector<1x96xf32>
    %33 = vector.broadcast %32 : vector<1x96xf32> to vector<32x96xf32>
    %34 = arith.addf %30, %33 : vector<32x96xf32>
    %35 = vector.extract_strided_slice %34 {offsets = [0, 0], sizes = [32, 16], strides = [1, 1]} : vector<32x96xf32> to vector<32x16xf32>
    %36 = vector.extract_strided_slice %34 {offsets = [0, 32], sizes = [32, 16], strides = [1, 1]} : vector<32x96xf32> to vector<32x16xf32>
    %37 = vector.extract_strided_slice %34 {offsets = [0, 64], sizes = [32, 16], strides = [1, 1]} : vector<32x96xf32> to vector<32x16xf32>
    %cst_17 = arith.constant dense<0.000000e+00> : vector<32x32xf32>
    %38 = tpu.matmul %35, %36, %cst_17 {dimension_numbers = #tpu.dot_dimension_numbers<[1], [1], [0], [0], [0, 0, 1, 0], [], []>} : vector<32x16xf32>, vector<32x16xf32>, vector<32x32xf32> -> vector<32x32xf32>
    %cst_18 = arith.constant 2.500000e-01 : f32
    %39 = vector.broadcast %cst_18 : f32 to vector<32x32xf32>
    %40 = arith.mulf %38, %39 : vector<32x32xf32>
    %41 = arith.addf %40, %1 : vector<32x32xf32>
    %cst_19 = arith.constant dense<0xFF800000> : vector<32xf32>
    %42 = vector.multi_reduction <maximumf>, %41, %cst_19 [1] : vector<32x32xf32> to vector<32xf32>
    %43 = vector.shape_cast %42 : vector<32xf32> to vector<32x1xf32>
    %44 = vector.broadcast %43 : vector<32x1xf32> to vector<32x32xf32>
    %45 = arith.subf %41, %44 : vector<32x32xf32>
    %46 = math.exp %45 : vector<32x32xf32>
    %cst_20 = arith.constant dense<0.000000e+00> : vector<32xf32>
    %47 = vector.multi_reduction <add>, %46, %cst_20 [1] : vector<32x32xf32> to vector<32xf32>
    %48 = vector.shape_cast %47 : vector<32xf32> to vector<32x1xf32>
    %49 = tpu.reciprocal %48 {approx = true} : vector<32x1xf32> -> vector<32x1xf32>
    %50 = vector.broadcast %49 : vector<32x1xf32> to vector<32x32xf32>
    %51 = arith.mulf %46, %50 : vector<32x32xf32>
    %cst_21 = arith.constant dense<0.000000e+00> : vector<32x16xf32>
    %52 = tpu.matmul %51, %37, %cst_21 {dimension_numbers = #tpu.dot_dimension_numbers<[1], [0], [0], [1], [0, 0, 1, 1], [], []>} : vector<32x32xf32>, vector<32x16xf32>, vector<32x16xf32> -> vector<32x16xf32>
    %c0_22 = arith.constant 0 : index
    %c0_23 = arith.constant 0 : index
    %53 = vector.load %arg19[%c0_22, %c0_23] : memref<32x32xf32, #tpu.memory_space<vmem>>, vector<32x16xf32>
    tpu.vector_store %arg19[%c0_22, %c0_23], %52 {strides = array<i32>} : memref<32x32xf32, #tpu.memory_space<vmem>>, vector<32x16xf32>,
    %54 = vector.extract_strided_slice %34 {offsets = [0, 16], sizes = [32, 16], strides = [1, 1]} : vector<32x96xf32> to vector<32x16xf32>
    %55 = vector.extract_strided_slice %34 {offsets = [0, 48], sizes = [32, 16], strides = [1, 1]} : vector<32x96xf32> to vector<32x16xf32>
    %56 = vector.extract_strided_slice %34 {offsets = [0, 80], sizes = [32, 16], strides = [1, 1]} : vector<32x96xf32> to vector<32x16xf32>
    %cst_24 = arith.constant dense<0.000000e+00> : vector<32x32xf32>
    %57 = tpu.matmul %54, %55, %cst_24 {dimension_numbers = #tpu.dot_dimension_numbers<[1], [1], [0], [0], [0, 0, 1, 0], [], []>} : vector<32x16xf32>, vector<32x16xf32>, vector<32x32xf32> -> vector<32x32xf32>
    %cst_25 = arith.constant 2.500000e-01 : f32
    %58 = vector.broadcast %cst_25 : f32 to vector<32x32xf32>
    %59 = arith.mulf %57, %58 : vector<32x32xf32>
    %60 = arith.addf %59, %1 : vector<32x32xf32>
    %cst_26 = arith.constant dense<0xFF800000> : vector<32xf32>
    %61 = vector.multi_reduction <maximumf>, %60, %cst_26 [1] : vector<32x32xf32> to vector<32xf32>
    %62 = vector.shape_cast %61 : vector<32xf32> to vector<32x1xf32>
    %63 = vector.broadcast %62 : vector<32x1xf32> to vector<32x32xf32>
    %64 = arith.subf %60, %63 : vector<32x32xf32>
    %65 = math.exp %64 : vector<32x32xf32>
    %cst_27 = arith.constant dense<0.000000e+00> : vector<32xf32>
    %66 = vector.multi_reduction <add>, %65, %cst_27 [1] : vector<32x32xf32> to vector<32xf32>
    %67 = vector.shape_cast %66 : vector<32xf32> to vector<32x1xf32>
    %68 = tpu.reciprocal %67 {approx = true} : vector<32x1xf32> -> vector<32x1xf32>
    %69 = vector.broadcast %68 : vector<32x1xf32> to vector<32x32xf32>
    %70 = arith.mulf %65, %69 : vector<32x32xf32>
    %cst_28 = arith.constant dense<0.000000e+00> : vector<32x16xf32>
    %71 = tpu.matmul %70, %56, %cst_28 {dimension_numbers = #tpu.dot_dimension_numbers<[1], [0], [0], [1], [0, 0, 1, 1], [], []>} : vector<32x32xf32>, vector<32x16xf32>, vector<32x16xf32> -> vector<32x16xf32>
    %c0_29 = arith.constant 0 : index
    %c16 = arith.constant 16 : index
    %72 = vector.load %arg19[%c0_29, %c16] : memref<32x32xf32, #tpu.memory_space<vmem>>, vector<32x16xf32>
    tpu.vector_store %arg19[%c0_29, %c16], %71 {strides = array<i32>} : memref<32x32xf32, #tpu.memory_space<vmem>>, vector<32x16xf32>,
    %c0_30 = arith.constant 0 : index
    %c0_31 = arith.constant 0 : index
    %73 = vector.load %arg19[%c0_30, %c0_31] : memref<32x32xf32, #tpu.memory_space<vmem>>, vector<32x32xf32>
    %c0_32 = arith.constant 0 : index
    %c0_33 = arith.constant 0 : index
    %c0_34 = arith.constant 0 : index
    %74 = vector.load %arg6[%c0_32, %c0_33, %c0_34] : memref<2x32x32xf32, #tpu.memory_space<vmem>>, vector<1x32x32xf32>
    %75 = vector.shape_cast %74 : vector<1x32x32xf32> to vector<32x32xf32>
    %cst_35 = arith.constant dense<0.000000e+00> : vector<32x32xf32>
    %76 = tpu.matmul %73, %75, %cst_35 {dimension_numbers = #tpu.dot_dimension_numbers<[1], [0], [0], [1], [0, 0, 1, 1], [], []>} : vector<32x32xf32>, vector<32x32xf32>, vector<32x32xf32> -> vector<32x32xf32>
    %c0_36 = arith.constant 0 : index
    %c0_37 = arith.constant 0 : index
    %c0_38 = arith.constant 0 : index
    %77 = vector.load %arg7[%c0_36, %c0_37, %c0_38] : memref<2x1x32xf32, #tpu.memory_space<vmem>>, vector<1x1x32xf32>
    %78 = vector.shape_cast %77 : vector<1x1x32xf32> to vector<1x32xf32>
    %79 = vector.broadcast %78 : vector<1x32xf32> to vector<32x32xf32>
    %80 = arith.addf %76, %79 : vector<32x32xf32>
    %81 = arith.addf %80, %27 : vector<32x32xf32>
    %c0_39 = arith.constant 0 : index
    %c0_40 = arith.constant 0 : index
    %c0_41 = arith.constant 0 : index
    %82 = vector.load %arg8[%c0_39, %c0_40, %c0_41] : memref<2x2x32xf32, #tpu.memory_space<vmem>>, vector<1x2x32xf32>
    %83 = vector.shape_cast %82 : vector<1x2x32xf32> to vector<2x32xf32>
    %84 = vector.extract_strided_slice %83 {offsets = [0, 0], sizes = [1, 32], strides = [1, 1]} : vector<2x32xf32> to vector<1x32xf32>
    %85 = vector.extract_strided_slice %83 {offsets = [1, 0], sizes = [1, 32], strides = [1, 1]} : vector<2x32xf32> to vector<1x32xf32>
    %cst_42 = arith.constant dense<0.000000e+00> : vector<32xf32>
    %86 = vector.multi_reduction <add>, %81, %cst_42 [1] : vector<32x32xf32> to vector<32xf32>
    %87 = vector.shape_cast %86 : vector<32xf32> to vector<32x1xf32>
    %cst_43 = arith.constant 3.200000e+01 : f32
    %88 = vector.broadcast %cst_43 : f32 to vector<32x1xf32>
    %89 = arith.divf %87, %88 : vector<32x1xf32>
    %90 = vector.broadcast %89 : vector<32x1xf32> to vector<32x32xf32>
    %91 = arith.subf %81, %90 : vector<32x32xf32>
    %92 = arith.mulf %91, %91 : vector<32x32xf32>
    %cst_44 = arith.constant dense<0.000000e+00> : vector<32xf32>
    %93 = vector.multi_reduction <add>, %92, %cst_44 [1] : vector<32x32xf32> to vector<32xf32>
    %94 = vector.shape_cast %93 : vector<32xf32> to vector<32x1xf32>
    %cst_45 = arith.constant 3.200000e+01 : f32
    %95 = vector.broadcast %cst_45 : f32 to vector<32x1xf32>
    %96 = arith.divf %94, %95 : vector<32x1xf32>
    %97 = vector.broadcast %89 : vector<32x1xf32> to vector<32x32xf32>
    %98 = arith.subf %81, %97 : vector<32x32xf32>
    %cst_46 = arith.constant 9.99999996E-13 : f32
    %99 = vector.broadcast %cst_46 : f32 to vector<32x1xf32>
    %100 = arith.addf %96, %99 : vector<32x1xf32>
    %101 = math.rsqrt %100 : vector<32x1xf32>
    %102 = vector.broadcast %101 : vector<32x1xf32> to vector<32x32xf32>
    %103 = arith.mulf %98, %102 : vector<32x32xf32>
    %104 = vector.broadcast %84 : vector<1x32xf32> to vector<32x32xf32>
    %105 = arith.mulf %103, %104 : vector<32x32xf32>
    %106 = vector.broadcast %85 : vector<1x32xf32> to vector<32x32xf32>
    %107 = arith.addf %105, %106 : vector<32x32xf32>
    %c0_47 = arith.constant 0 : index
    %c0_48 = arith.constant 0 : index
    %c0_49 = arith.constant 0 : index
    %108 = vector.load %arg9[%c0_47, %c0_48, %c0_49] : memref<2x32x64xf32, #tpu.memory_space<vmem>>, vector<1x32x64xf32>
    %109 = vector.shape_cast %108 : vector<1x32x64xf32> to vector<32x64xf32>
    %cst_50 = arith.constant dense<0.000000e+00> : vector<32x64xf32>
    %110 = tpu.matmul %107, %109, %cst_50 {dimension_numbers = #tpu.dot_dimension_numbers<[1], [0], [0], [1], [0, 0, 1, 1], [], []>} : vector<32x32xf32>, vector<32x64xf32>, vector<32x64xf32> -> vector<32x64xf32>
    %c0_51 = arith.constant 0 : index
    %c0_52 = arith.constant 0 : index
    %c0_53 = arith.constant 0 : index
    %111 = vector.load %arg10[%c0_51, %c0_52, %c0_53] : memref<2x1x64xf32, #tpu.memory_space<vmem>>, vector<1x1x64xf32>
    %112 = vector.shape_cast %111 : vector<1x1x64xf32> to vector<1x64xf32>
    %113 = vector.broadcast %112 : vector<1x64xf32> to vector<32x64xf32>
    %114 = arith.addf %110, %113 : vector<32x64xf32>
    %cst_54 = arith.constant 5.000000e-01 : f32
    %115 = vector.broadcast %cst_54 : f32 to vector<32x64xf32>
    %116 = arith.mulf %115, %114 : vector<32x64xf32>
    %cst_55 = arith.constant 0.707106769 : f32
    %117 = vector.broadcast %cst_55 : f32 to vector<32x64xf32>
    %118 = arith.mulf %114, %117 : vector<32x64xf32>
    %119 = math.erf %118 : vector<32x64xf32>
    %cst_56 = arith.constant 1.000000e+00 : f32
    %120 = vector.broadcast %cst_56 : f32 to vector<32x64xf32>
    %121 = arith.addf %120, %119 : vector<32x64xf32>
    %122 = arith.mulf %116, %121 : vector<32x64xf32>
    %c0_57 = arith.constant 0 : index
    %c0_58 = arith.constant 0 : index
    %c0_59 = arith.constant 0 : index
    %123 = vector.load %arg11[%c0_57, %c0_58, %c0_59] : memref<2x64x32xf32, #tpu.memory_space<vmem>>, vector<1x64x32xf32>
    %124 = vector.shape_cast %123 : vector<1x64x32xf32> to vector<64x32xf32>
    %cst_60 = arith.constant dense<0.000000e+00> : vector<32x32xf32>
    %125 = tpu.matmul %122, %124, %cst_60 {dimension_numbers = #tpu.dot_dimension_numbers<[1], [0], [0], [1], [0, 0, 1, 1], [], []>} : vector<32x64xf32>, vector<64x32xf32>, vector<32x32xf32> -> vector<32x32xf32>
    %c0_61 = arith.constant 0 : index
    %c0_62 = arith.constant 0 : index
    %c0_63 = arith.constant 0 : index
    %126 = vector.load %arg12[%c0_61, %c0_62, %c0_63] : memref<2x1x32xf32, #tpu.memory_space<vmem>>, vector<1x1x32xf32>
    %127 = vector.shape_cast %126 : vector<1x1x32xf32> to vector<1x32xf32>
    %128 = vector.broadcast %127 : vector<1x32xf32> to vector<32x32xf32>
    %129 = arith.addf %125, %128 : vector<32x32xf32>
    %130 = arith.addf %129, %107 : vector<32x32xf32>
    %c0_64 = arith.constant 0 : index
    %c0_65 = arith.constant 0 : index
    %c0_66 = arith.constant 0 : index
    %131 = vector.load %arg13[%c0_64, %c0_65, %c0_66] : memref<2x2x32xf32, #tpu.memory_space<vmem>>, vector<1x2x32xf32>
    %132 = vector.shape_cast %131 : vector<1x2x32xf32> to vector<2x32xf32>
    %133 = vector.extract_strided_slice %132 {offsets = [0, 0], sizes = [1, 32], strides = [1, 1]} : vector<2x32xf32> to vector<1x32xf32>
    %134 = vector.extract_strided_slice %132 {offsets = [1, 0], sizes = [1, 32], strides = [1, 1]} : vector<2x32xf32> to vector<1x32xf32>
    %cst_67 = arith.constant dense<0.000000e+00> : vector<32xf32>
    %135 = vector.multi_reduction <add>, %130, %cst_67 [1] : vector<32x32xf32> to vector<32xf32>
    %136 = vector.shape_cast %135 : vector<32xf32> to vector<32x1xf32>
    %cst_68 = arith.constant 3.200000e+01 : f32
    %137 = vector.broadcast %cst_68 : f32 to vector<32x1xf32>
    %138 = arith.divf %136, %137 : vector<32x1xf32>
    %139 = vector.broadcast %138 : vector<32x1xf32> to vector<32x32xf32>
    %140 = arith.subf %130, %139 : vector<32x32xf32>
    %141 = arith.mulf %140, %140 : vector<32x32xf32>
    %cst_69 = arith.constant dense<0.000000e+00> : vector<32xf32>
    %142 = vector.multi_reduction <add>, %141, %cst_69 [1] : vector<32x32xf32> to vector<32xf32>
    %143 = vector.shape_cast %142 : vector<32xf32> to vector<32x1xf32>
    %cst_70 = arith.constant 3.200000e+01 : f32
    %144 = vector.broadcast %cst_70 : f32 to vector<32x1xf32>
    %145 = arith.divf %143, %144 : vector<32x1xf32>
    %146 = vector.broadcast %138 : vector<32x1xf32> to vector<32x32xf32>
    %147 = arith.subf %130, %146 : vector<32x32xf32>
    %cst_71 = arith.constant 9.99999996E-13 : f32
    %148 = vector.broadcast %cst_71 : f32 to vector<32x1xf32>
    %149 = arith.addf %145, %148 : vector<32x1xf32>
    %150 = math.rsqrt %149 : vector<32x1xf32>
    %151 = vector.broadcast %150 : vector<32x1xf32> to vector<32x32xf32>
    %152 = arith.mulf %147, %151 : vector<32x32xf32>
    %153 = vector.broadcast %133 : vector<1x32xf32> to vector<32x32xf32>
    %154 = arith.mulf %152, %153 : vector<32x32xf32>
    %155 = vector.broadcast %134 : vector<1x32xf32> to vector<32x32xf32>
    %156 = arith.addf %154, %155 : vector<32x32xf32>
    %c1 = arith.constant 1 : index
    %c0_72 = arith.constant 0 : index
    %c0_73 = arith.constant 0 : index
    %157 = vector.load %arg4[%c1, %c0_72, %c0_73] : memref<2x32x96xf32, #tpu.memory_space<vmem>>, vector<1x32x96xf32>
    %158 = vector.shape_cast %157 : vector<1x32x96xf32> to vector<32x96xf32>
    %cst_74 = arith.constant dense<0.000000e+00> : vector<32x96xf32>
    %159 = tpu.matmul %156, %158, %cst_74 {dimension_numbers = #tpu.dot_dimension_numbers<[1], [0], [0], [1], [0, 0, 1, 1], [], []>} : vector<32x32xf32>, vector<32x96xf32>, vector<32x96xf32> -> vector<32x96xf32>
    %c1_75 = arith.constant 1 : index
    %c0_76 = arith.constant 0 : index
    %c0_77 = arith.constant 0 : index
    %160 = vector.load %arg5[%c1_75, %c0_76, %c0_77] : memref<2x1x96xf32, #tpu.memory_space<vmem>>, vector<1x1x96xf32>
    %161 = vector.shape_cast %160 : vector<1x1x96xf32> to vector<1x96xf32>
    %162 = vector.broadcast %161 : vector<1x96xf32> to vector<32x96xf32>
    %163 = arith.addf %159, %162 : vector<32x96xf32>
    %164 = vector.extract_strided_slice %163 {offsets = [0, 0], sizes = [32, 16], strides = [1, 1]} : vector<32x96xf32> to vector<32x16xf32>
    %165 = vector.extract_strided_slice %163 {offsets = [0, 32], sizes = [32, 16], strides = [1, 1]} : vector<32x96xf32> to vector<32x16xf32>
    %166 = vector.extract_strided_slice %163 {offsets = [0, 64], sizes = [32, 16], strides = [1, 1]} : vector<32x96xf32> to vector<32x16xf32>
    %cst_78 = arith.constant dense<0.000000e+00> : vector<32x32xf32>
    %167 = tpu.matmul %164, %165, %cst_78 {dimension_numbers = #tpu.dot_dimension_numbers<[1], [1], [0], [0], [0, 0, 1, 0], [], []>} : vector<32x16xf32>, vector<32x16xf32>, vector<32x32xf32> -> vector<32x32xf32>
    %cst_79 = arith.constant 2.500000e-01 : f32
    %168 = vector.broadcast %cst_79 : f32 to vector<32x32xf32>
    %169 = arith.mulf %167, %168 : vector<32x32xf32>
    %170 = arith.addf %169, %1 : vector<32x32xf32>
    %cst_80 = arith.constant dense<0xFF800000> : vector<32xf32>
    %171 = vector.multi_reduction <maximumf>, %170, %cst_80 [1] : vector<32x32xf32> to vector<32xf32>
    %172 = vector.shape_cast %171 : vector<32xf32> to vector<32x1xf32>
    %173 = vector.broadcast %172 : vector<32x1xf32> to vector<32x32xf32>
    %174 = arith.subf %170, %173 : vector<32x32xf32>
    %175 = math.exp %174 : vector<32x32xf32>
    %cst_81 = arith.constant dense<0.000000e+00> : vector<32xf32>
    %176 = vector.multi_reduction <add>, %175, %cst_81 [1] : vector<32x32xf32> to vector<32xf32>
    %177 = vector.shape_cast %176 : vector<32xf32> to vector<32x1xf32>
    %178 = tpu.reciprocal %177 {approx = true} : vector<32x1xf32> -> vector<32x1xf32>
    %179 = vector.broadcast %178 : vector<32x1xf32> to vector<32x32xf32>
    %180 = arith.mulf %175, %179 : vector<32x32xf32>
    %cst_82 = arith.constant dense<0.000000e+00> : vector<32x16xf32>
    %181 = tpu.matmul %180, %166, %cst_82 {dimension_numbers = #tpu.dot_dimension_numbers<[1], [0], [0], [1], [0, 0, 1, 1], [], []>} : vector<32x32xf32>, vector<32x16xf32>, vector<32x16xf32> -> vector<32x16xf32>
    %c0_83 = arith.constant 0 : index
    %c0_84 = arith.constant 0 : index
    %182 = vector.load %arg19[%c0_83, %c0_84] : memref<32x32xf32, #tpu.memory_space<vmem>>, vector<32x16xf32>
    tpu.vector_store %arg19[%c0_83, %c0_84], %181 {strides = array<i32>} : memref<32x32xf32, #tpu.memory_space<vmem>>, vector<32x16xf32>,
    %183 = vector.extract_strided_slice %163 {offsets = [0, 16], sizes = [32, 16], strides = [1, 1]} : vector<32x96xf32> to vector<32x16xf32>
    %184 = vector.extract_strided_slice %163 {offsets = [0, 48], sizes = [32, 16], strides = [1, 1]} : vector<32x96xf32> to vector<32x16xf32>
    %185 = vector.extract_strided_slice %163 {offsets = [0, 80], sizes = [32, 16], strides = [1, 1]} : vector<32x96xf32> to vector<32x16xf32>
    %cst_85 = arith.constant dense<0.000000e+00> : vector<32x32xf32>
    %186 = tpu.matmul %183, %184, %cst_85 {dimension_numbers = #tpu.dot_dimension_numbers<[1], [1], [0], [0], [0, 0, 1, 0], [], []>} : vector<32x16xf32>, vector<32x16xf32>, vector<32x32xf32> -> vector<32x32xf32>
    %cst_86 = arith.constant 2.500000e-01 : f32
    %187 = vector.broadcast %cst_86 : f32 to vector<32x32xf32>
    %188 = arith.mulf %186, %187 : vector<32x32xf32>
    %189 = arith.addf %188, %1 : vector<32x32xf32>
    %cst_87 = arith.constant dense<0xFF800000> : vector<32xf32>
    %190 = vector.multi_reduction <maximumf>, %189, %cst_87 [1] : vector<32x32xf32> to vector<32xf32>
    %191 = vector.shape_cast %190 : vector<32xf32> to vector<32x1xf32>
    %192 = vector.broadcast %191 : vector<32x1xf32> to vector<32x32xf32>
    %193 = arith.subf %189, %192 : vector<32x32xf32>
    %194 = math.exp %193 : vector<32x32xf32>
    %cst_88 = arith.constant dense<0.000000e+00> : vector<32xf32>
    %195 = vector.multi_reduction <add>, %194, %cst_88 [1] : vector<32x32xf32> to vector<32xf32>
    %196 = vector.shape_cast %195 : vector<32xf32> to vector<32x1xf32>
    %197 = tpu.reciprocal %196 {approx = true} : vector<32x1xf32> -> vector<32x1xf32>
    %198 = vector.broadcast %197 : vector<32x1xf32> to vector<32x32xf32>
    %199 = arith.mulf %194, %198 : vector<32x32xf32>
    %cst_89 = arith.constant dense<0.000000e+00> : vector<32x16xf32>
    %200 = tpu.matmul %199, %185, %cst_89 {dimension_numbers = #tpu.dot_dimension_numbers<[1], [0], [0], [1], [0, 0, 1, 1], [], []>} : vector<32x32xf32>, vector<32x16xf32>, vector<32x16xf32> -> vector<32x16xf32>
    %c0_90 = arith.constant 0 : index
    %c16_91 = arith.constant 16 : index
    %201 = vector.load %arg19[%c0_90, %c16_91] : memref<32x32xf32, #tpu.memory_space<vmem>>, vector<32x16xf32>
    tpu.vector_store %arg19[%c0_90, %c16_91], %200 {strides = array<i32>} : memref<32x32xf32, #tpu.memory_space<vmem>>, vector<32x16xf32>,
    %c0_92 = arith.constant 0 : index
    %c0_93 = arith.constant 0 : index
    %202 = vector.load %arg19[%c0_92, %c0_93] : memref<32x32xf32, #tpu.memory_space<vmem>>, vector<32x32xf32>
    %c1_94 = arith.constant 1 : index
    %c0_95 = arith.constant 0 : index
    %c0_96 = arith.constant 0 : index
    %203 = vector.load %arg6[%c1_94, %c0_95, %c0_96] : memref<2x32x32xf32, #tpu.memory_space<vmem>>, vector<1x32x32xf32>
    %204 = vector.shape_cast %203 : vector<1x32x32xf32> to vector<32x32xf32>
    %cst_97 = arith.constant dense<0.000000e+00> : vector<32x32xf32>
    %205 = tpu.matmul %202, %204, %cst_97 {dimension_numbers = #tpu.dot_dimension_numbers<[1], [0], [0], [1], [0, 0, 1, 1], [], []>} : vector<32x32xf32>, vector<32x32xf32>, vector<32x32xf32> -> vector<32x32xf32>
    %c1_98 = arith.constant 1 : index
    %c0_99 = arith.constant 0 : index
    %c0_100 = arith.constant 0 : index
    %206 = vector.load %arg7[%c1_98, %c0_99, %c0_100] : memref<2x1x32xf32, #tpu.memory_space<vmem>>, vector<1x1x32xf32>
    %207 = vector.shape_cast %206 : vector<1x1x32xf32> to vector<1x32xf32>
    %208 = vector.broadcast %207 : vector<1x32xf32> to vector<32x32xf32>
    %209 = arith.addf %205, %208 : vector<32x32xf32>
    %210 = arith.addf %209, %156 : vector<32x32xf32>
    %c1_101 = arith.constant 1 : index
    %c0_102 = arith.constant 0 : index
    %c0_103 = arith.constant 0 : index
    %211 = vector.load %arg8[%c1_101, %c0_102, %c0_103] : memref<2x2x32xf32, #tpu.memory_space<vmem>>, vector<1x2x32xf32>
    %212 = vector.shape_cast %211 : vector<1x2x32xf32> to vector<2x32xf32>
    %213 = vector.extract_strided_slice %212 {offsets = [0, 0], sizes = [1, 32], strides = [1, 1]} : vector<2x32xf32> to vector<1x32xf32>
    %214 = vector.extract_strided_slice %212 {offsets = [1, 0], sizes = [1, 32], strides = [1, 1]} : vector<2x32xf32> to vector<1x32xf32>
    %cst_104 = arith.constant dense<0.000000e+00> : vector<32xf32>
    %215 = vector.multi_reduction <add>, %210, %cst_104 [1] : vector<32x32xf32> to vector<32xf32>
    %216 = vector.shape_cast %215 : vector<32xf32> to vector<32x1xf32>
    %cst_105 = arith.constant 3.200000e+01 : f32
    %217 = vector.broadcast %cst_105 : f32 to vector<32x1xf32>
    %218 = arith.divf %216, %217 : vector<32x1xf32>
    %219 = vector.broadcast %218 : vector<32x1xf32> to vector<32x32xf32>
    %220 = arith.subf %210, %219 : vector<32x32xf32>
    %221 = arith.mulf %220, %220 : vector<32x32xf32>
    %cst_106 = arith.constant dense<0.000000e+00> : vector<32xf32>
    %222 = vector.multi_reduction <add>, %221, %cst_106 [1] : vector<32x32xf32> to vector<32xf32>
    %223 = vector.shape_cast %222 : vector<32xf32> to vector<32x1xf32>
    %cst_107 = arith.constant 3.200000e+01 : f32
    %224 = vector.broadcast %cst_107 : f32 to vector<32x1xf32>
    %225 = arith.divf %223, %224 : vector<32x1xf32>
    %226 = vector.broadcast %218 : vector<32x1xf32> to vector<32x32xf32>
    %227 = arith.subf %210, %226 : vector<32x32xf32>
    %cst_108 = arith.constant 9.99999996E-13 : f32
    %228 = vector.broadcast %cst_108 : f32 to vector<32x1xf32>
    %229 = arith.addf %225, %228 : vector<32x1xf32>
    %230 = math.rsqrt %229 : vector<32x1xf32>
    %231 = vector.broadcast %230 : vector<32x1xf32> to vector<32x32xf32>
    %232 = arith.mulf %227, %231 : vector<32x32xf32>
    %233 = vector.broadcast %213 : vector<1x32xf32> to vector<32x32xf32>
    %234 = arith.mulf %232, %233 : vector<32x32xf32>
    %235 = vector.broadcast %214 : vector<1x32xf32> to vector<32x32xf32>
    %236 = arith.addf %234, %235 : vector<32x32xf32>
    %c1_109 = arith.constant 1 : index
    %c0_110 = arith.constant 0 : index
    %c0_111 = arith.constant 0 : index
    %237 = vector.load %arg9[%c1_109, %c0_110, %c0_111] : memref<2x32x64xf32, #tpu.memory_space<vmem>>, vector<1x32x64xf32>
    %238 = vector.shape_cast %237 : vector<1x32x64xf32> to vector<32x64xf32>
    %cst_112 = arith.constant dense<0.000000e+00> : vector<32x64xf32>
    %239 = tpu.matmul %236, %238, %cst_112 {dimension_numbers = #tpu.dot_dimension_numbers<[1], [0], [0], [1], [0, 0, 1, 1], [], []>} : vector<32x32xf32>, vector<32x64xf32>, vector<32x64xf32> -> vector<32x64xf32>
    %c1_113 = arith.constant 1 : index
    %c0_114 = arith.constant 0 : index
    %c0_115 = arith.constant 0 : index
    %240 = vector.load %arg10[%c1_113, %c0_114, %c0_115] : memref<2x1x64xf32, #tpu.memory_space<vmem>>, vector<1x1x64xf32>
    %241 = vector.shape_cast %240 : vector<1x1x64xf32> to vector<1x64xf32>
    %242 = vector.broadcast %241 : vector<1x64xf32> to vector<32x64xf32>
    %243 = arith.addf %239, %242 : vector<32x64xf32>
    %cst_116 = arith.constant 5.000000e-01 : f32
    %244 = vector.broadcast %cst_116 : f32 to vector<32x64xf32>
    %245 = arith.mulf %244, %243 : vector<32x64xf32>
    %cst_117 = arith.constant 0.707106769 : f32
    %246 = vector.broadcast %cst_117 : f32 to vector<32x64xf32>
    %247 = arith.mulf %243, %246 : vector<32x64xf32>
    %248 = math.erf %247 : vector<32x64xf32>
    %cst_118 = arith.constant 1.000000e+00 : f32
    %249 = vector.broadcast %cst_118 : f32 to vector<32x64xf32>
    %250 = arith.addf %249, %248 : vector<32x64xf32>
    %251 = arith.mulf %245, %250 : vector<32x64xf32>
    %c1_119 = arith.constant 1 : index
    %c0_120 = arith.constant 0 : index
    %c0_121 = arith.constant 0 : index
    %252 = vector.load %arg11[%c1_119, %c0_120, %c0_121] : memref<2x64x32xf32, #tpu.memory_space<vmem>>, vector<1x64x32xf32>
    %253 = vector.shape_cast %252 : vector<1x64x32xf32> to vector<64x32xf32>
    %cst_122 = arith.constant dense<0.000000e+00> : vector<32x32xf32>
    %254 = tpu.matmul %251, %253, %cst_122 {dimension_numbers = #tpu.dot_dimension_numbers<[1], [0], [0], [1], [0, 0, 1, 1], [], []>} : vector<32x64xf32>, vector<64x32xf32>, vector<32x32xf32> -> vector<32x32xf32>
    %c1_123 = arith.constant 1 : index
    %c0_124 = arith.constant 0 : index
    %c0_125 = arith.constant 0 : index
    %255 = vector.load %arg12[%c1_123, %c0_124, %c0_125] : memref<2x1x32xf32, #tpu.memory_space<vmem>>, vector<1x1x32xf32>
    %256 = vector.shape_cast %255 : vector<1x1x32xf32> to vector<1x32xf32>
    %257 = vector.broadcast %256 : vector<1x32xf32> to vector<32x32xf32>
    %258 = arith.addf %254, %257 : vector<32x32xf32>
    %259 = arith.addf %258, %236 : vector<32x32xf32>
    %c1_126 = arith.constant 1 : index
    %c0_127 = arith.constant 0 : index
    %c0_128 = arith.constant 0 : index
    %260 = vector.load %arg13[%c1_126, %c0_127, %c0_128] : memref<2x2x32xf32, #tpu.memory_space<vmem>>, vector<1x2x32xf32>
    %261 = vector.shape_cast %260 : vector<1x2x32xf32> to vector<2x32xf32>
    %262 = vector.extract_strided_slice %261 {offsets = [0, 0], sizes = [1, 32], strides = [1, 1]} : vector<2x32xf32> to vector<1x32xf32>
    %263 = vector.extract_strided_slice %261 {offsets = [1, 0], sizes = [1, 32], strides = [1, 1]} : vector<2x32xf32> to vector<1x32xf32>
    %cst_129 = arith.constant dense<0.000000e+00> : vector<32xf32>
    %264 = vector.multi_reduction <add>, %259, %cst_129 [1] : vector<32x32xf32> to vector<32xf32>
    %265 = vector.shape_cast %264 : vector<32xf32> to vector<32x1xf32>
    %cst_130 = arith.constant 3.200000e+01 : f32
    %266 = vector.broadcast %cst_130 : f32 to vector<32x1xf32>
    %267 = arith.divf %265, %266 : vector<32x1xf32>
    %268 = vector.broadcast %267 : vector<32x1xf32> to vector<32x32xf32>
    %269 = arith.subf %259, %268 : vector<32x32xf32>
    %270 = arith.mulf %269, %269 : vector<32x32xf32>
    %cst_131 = arith.constant dense<0.000000e+00> : vector<32xf32>
    %271 = vector.multi_reduction <add>, %270, %cst_131 [1] : vector<32x32xf32> to vector<32xf32>
    %272 = vector.shape_cast %271 : vector<32xf32> to vector<32x1xf32>
    %cst_132 = arith.constant 3.200000e+01 : f32
    %273 = vector.broadcast %cst_132 : f32 to vector<32x1xf32>
    %274 = arith.divf %272, %273 : vector<32x1xf32>
    %275 = vector.broadcast %267 : vector<32x1xf32> to vector<32x32xf32>
    %276 = arith.subf %259, %275 : vector<32x32xf32>
    %cst_133 = arith.constant 9.99999996E-13 : f32
    %277 = vector.broadcast %cst_133 : f32 to vector<32x1xf32>
    %278 = arith.addf %274, %277 : vector<32x1xf32>
    %279 = math.rsqrt %278 : vector<32x1xf32>
    %280 = vector.broadcast %279 : vector<32x1xf32> to vector<32x32xf32>
    %281 = arith.mulf %276, %280 : vector<32x32xf32>
    %282 = vector.broadcast %262 : vector<1x32xf32> to vector<32x32xf32>
    %283 = arith.mulf %281, %282 : vector<32x32xf32>
    %284 = vector.broadcast %263 : vector<1x32xf32> to vector<32x32xf32>
    %285 = arith.addf %283, %284 : vector<32x32xf32>
    %286 = vector.extract_strided_slice %285 {offsets = [0, 0], sizes = [1, 32], strides = [1, 1]} : vector<32x32xf32> to vector<1x32xf32>
    %c0_134 = arith.constant 0 : index
    %c0_135 = arith.constant 0 : index
    %287 = vector.load %arg20[%c0_134, %c0_135] : memref<4x32xf32, #tpu.memory_space<vmem>>, vector<1x32xf32>
    tpu.vector_store %arg20[%c0_134, %c0_135], %286 {strides = array<i32>} : memref<4x32xf32, #tpu.memory_space<vmem>>, vector<1x32xf32>,
    %288 = vector.extract_strided_slice %285 {offsets = [8, 0], sizes = [1, 32], strides = [1, 1]} : vector<32x32xf32> to vector<1x32xf32>
    %c1_136 = arith.constant 1 : index
    %c0_137 = arith.constant 0 : index
    %289 = vector.load %arg20[%c1_136, %c0_137] : memref<4x32xf32, #tpu.memory_space<vmem>>, vector<1x32xf32>
    tpu.vector_store %arg20[%c1_136, %c0_137], %288 {strides = array<i32>} : memref<4x32xf32, #tpu.memory_space<vmem>>, vector<1x32xf32>,
    %290 = vector.extract_strided_slice %285 {offsets = [16, 0], sizes = [1, 32], strides = [1, 1]} : vector<32x32xf32> to vector<1x32xf32>
    %c2 = arith.constant 2 : index
    %c0_138 = arith.constant 0 : index
    %291 = vector.load %arg20[%c2, %c0_138] : memref<4x32xf32, #tpu.memory_space<vmem>>, vector<1x32xf32>
    tpu.vector_store %arg20[%c2, %c0_138], %290 {strides = array<i32>} : memref<4x32xf32, #tpu.memory_space<vmem>>, vector<1x32xf32>,
    %292 = vector.extract_strided_slice %285 {offsets = [24, 0], sizes = [1, 32], strides = [1, 1]} : vector<32x32xf32> to vector<1x32xf32>
    %c3 = arith.constant 3 : index
    %c0_139 = arith.constant 0 : index
    %293 = vector.load %arg20[%c3, %c0_139] : memref<4x32xf32, #tpu.memory_space<vmem>>, vector<1x32xf32>
    tpu.vector_store %arg20[%c3, %c0_139], %292 {strides = array<i32>} : memref<4x32xf32, #tpu.memory_space<vmem>>, vector<1x32xf32>,
    %c0_140 = arith.constant 0 : index
    %c0_141 = arith.constant 0 : index
    %294 = vector.load %arg20[%c0_140, %c0_141] : memref<4x32xf32, #tpu.memory_space<vmem>>, vector<4x32xf32>
    %c0_142 = arith.constant 0 : index
    %c0_143 = arith.constant 0 : index
    %295 = vector.load %arg14[%c0_142, %c0_143] : memref<32x32xf32, #tpu.memory_space<vmem>>, vector<32x32xf32>
    %cst_144 = arith.constant dense<0.000000e+00> : vector<4x32xf32>
    %296 = tpu.matmul %294, %295, %cst_144 {dimension_numbers = #tpu.dot_dimension_numbers<[1], [0], [0], [1], [0, 0, 1, 1], [], []>} : vector<4x32xf32>, vector<32x32xf32>, vector<4x32xf32> -> vector<4x32xf32>
    %c0_145 = arith.constant 0 : index
    %c0_146 = arith.constant 0 : index
    %297 = vector.load %arg15[%c0_145, %c0_146] : memref<1x32xf32, #tpu.memory_space<vmem>>, vector<1x32xf32>
    %298 = vector.broadcast %297 : vector<1x32xf32> to vector<4x32xf32>
    %299 = arith.addf %296, %298 : vector<4x32xf32>
    %300 = math.tanh %299 : vector<4x32xf32>
    %cst_147 = arith.constant 5.000000e-01 : f32
    %301 = vector.broadcast %cst_147 : f32 to vector<4x32xf32>
    %302 = arith.mulf %301, %300 : vector<4x32xf32>
    %cst_148 = arith.constant 0.707106769 : f32
    %303 = vector.broadcast %cst_148 : f32 to vector<4x32xf32>
    %304 = arith.mulf %300, %303 : vector<4x32xf32>
    %305 = math.erf %304 : vector<4x32xf32>
    %cst_149 = arith.constant 1.000000e+00 : f32
    %306 = vector.broadcast %cst_149 : f32 to vector<4x32xf32>
    %307 = arith.addf %306, %305 : vector<4x32xf32>
    %308 = arith.mulf %302, %307 : vector<4x32xf32>
    %c0_150 = arith.constant 0 : index
    %c0_151 = arith.constant 0 : index
    %309 = vector.load %arg16[%c0_150, %c0_151] : memref<1x32xf32, #tpu.memory_space<vmem>>, vector<1x32xf32>
    %cst_152 = arith.constant dense<0.000000e+00> : vector<1x4xf32>
    %310 = tpu.matmul %309, %308, %cst_152 {dimension_numbers = #tpu.dot_dimension_numbers<[1], [1], [0], [0], [0, 0, 1, 0], [], []>} : vector<1x32xf32>, vector<4x32xf32>, vector<1x4xf32> -> vector<1x4xf32>
    %c0_153 = arith.constant 0 : index
    %c0_154 = arith.constant 0 : index
    %311 = vector.load %arg17[%c0_153, %c0_154] : memref<1x1xf32, #tpu.memory_space<vmem>>, vector<1x1xf32>
    %312 = vector.broadcast %311 : vector<1x1xf32> to vector<1x4xf32>
    %313 = arith.addf %310, %312 : vector<1x4xf32>
    %c0_155 = arith.constant 0 : index
    %c0_156 = arith.constant 0 : index
    %c0_157 = arith.constant 0 : index
    %314 = vector.load %arg18[%c0_155, %c0_156, %c0_157] : memref<1x1x4xf32, #tpu.memory_space<vmem>>, vector<1x1x4xf32>
    %315 = vector.shape_cast %314 : vector<1x1x4xf32> to vector<1x4xf32>
    %316 = vector.shape_cast %313 : vector<1x4xf32> to vector<1x1x4xf32>
    tpu.vector_store %arg18[%c0_155, %c0_156, %c0_157], %316 {strides = array<i32>} : memref<1x1x4xf32, #tpu.memory_space<vmem>>, vector<1x1x4xf32>,
    return
  }
  func.func @transform_0(%arg0: i32) -> (i32, i32) {
    %c0_i32 = arith.constant 0 : i32
    %c0_i32_0 = arith.constant 0 : i32
    return %arg0, %c0_i32 : i32, i32
  }
  func.func @transform_1(%arg0: i32) -> (i32, i32, i32) {
    %c0_i32 = arith.constant 0 : i32
    %c0_i32_0 = arith.constant 0 : i32
    %c0_i32_1 = arith.constant 0 : i32
    return %arg0, %c0_i32, %c0_i32_0 : i32, i32, i32
  }
  func.func @transform_2(%arg0: i32) -> (i32, i32) {
    %c0_i32 = arith.constant 0 : i32
    %c0_i32_0 = arith.constant 0 : i32
    %c0_i32_1 = arith.constant 0 : i32
    return %c0_i32, %c0_i32_0 : i32, i32
  }
  func.func @transform_3(%arg0: i32) -> (i32, i32, i32) {
    %c0_i32 = arith.constant 0 : i32
    %c0_i32_0 = arith.constant 0 : i32
    %c0_i32_1 = arith.constant 0 : i32
    %c0_i32_2 = arith.constant 0 : i32
    return %c0_i32, %c0_i32_0, %c0_i32_1 : i32, i32, i32
  }
  func.func @transform_4(%arg0: i32) -> (i32, i32, i32) {
    %c0_i32 = arith.constant 0 : i32
    %c0_i32_0 = arith.constant 0 : i32
    %c0_i32_1 = arith.constant 0 : i32
    %c0_i32_2 = arith.constant 0 : i32
    return %c0_i32, %c0_i32_0, %c0_i32_1 : i32, i32, i32
  }
  func.func @transform_5(%arg0: i32) -> (i32, i32, i32) {
    %c0_i32 = arith.constant 0 : i32
    %c0_i32_0 = arith.constant 0 : i32
    %c0_i32_1 = arith.constant 0 : i32
    %c0_i32_2 = arith.constant 0 : i32
    return %c0_i32, %c0_i32_0, %c0_i32_1 : i32, i32, i32
  }
  func.func @transform_6(%arg0: i32) -> (i32, i32, i32) {
    %c0_i32 = arith.constant 0 : i32
    %c0_i32_0 = arith.constant 0 : i32
    %c0_i32_1 = arith.constant 0 : i32
    %c0_i32_2 = arith.constant 0 : i32
    return %c0_i32, %c0_i32_0, %c0_i32_1 : i32, i32, i32
  }
  func.func @transform_7(%arg0: i32) -> (i32, i32, i32) {
    %c0_i32 = arith.constant 0 : i32
    %c0_i32_0 = arith.constant 0 : i32
    %c0_i32_1 = arith.constant 0 : i32
    %c0_i32_2 = arith.constant 0 : i32
    return %c0_i32, %c0_i32_0, %c0_i32_1 : i32, i32, i32
  }
  func.func @transform_8(%arg0: i32) -> (i32, i32, i32) {
    %c0_i32 = arith.constant 0 : i32
    %c0_i32_0 = arith.constant 0 : i32
    %c0_i32_1 = arith.constant 0 : i32
    %c0_i32_2 = arith.constant 0 : i32
    return %c0_i32, %c0_i32_0, %c0_i32_1 : i32, i32, i32
  }
  func.func @transform_9(%arg0: i32) -> (i32, i32, i32) {
    %c0_i32 = arith.constant 0 : i32
    %c0_i32_0 = arith.constant 0 : i32
    %c0_i32_1 = arith.constant 0 : i32
    %c0_i32_2 = arith.constant 0 : i32
    return %c0_i32, %c0_i32_0, %c0_i32_1 : i32, i32, i32
  }
  func.func @transform_10(%arg0: i32) -> (i32, i32, i32) {
    %c0_i32 = arith.constant 0 : i32
    %c0_i32_0 = arith.constant 0 : i32
    %c0_i32_1 = arith.constant 0 : i32
    %c0_i32_2 = arith.constant 0 : i32
    return %c0_i32, %c0_i32_0, %c0_i32_1 : i32, i32, i32
  }
  func.func @transform_11(%arg0: i32) -> (i32, i32, i32) {
    %c0_i32 = arith.constant 0 : i32
    %c0_i32_0 = arith.constant 0 : i32
    %c0_i32_1 = arith.constant 0 : i32
    %c0_i32_2 = arith.constant 0 : i32
    return %c0_i32, %c0_i32_0, %c0_i32_1 : i32, i32, i32
  }
  func.func @transform_12(%arg0: i32) -> (i32, i32, i32) {
    %c0_i32 = arith.constant 0 : i32
    %c0_i32_0 = arith.constant 0 : i32
    %c0_i32_1 = arith.constant 0 : i32
    %c0_i32_2 = arith.constant 0 : i32
    return %c0_i32, %c0_i32_0, %c0_i32_1 : i32, i32, i32
  }
  func.func @transform_13(%arg0: i32) -> (i32, i32) {
    %c0_i32 = arith.constant 0 : i32
    %c0_i32_0 = arith.constant 0 : i32
    %c0_i32_1 = arith.constant 0 : i32
    return %c0_i32, %c0_i32_0 : i32, i32
  }
  func.func @transform_14(%arg0: i32) -> (i32, i32) {
    %c0_i32 = arith.constant 0 : i32
    %c0_i32_0 = arith.constant 0 : i32
    %c0_i32_1 = arith.constant 0 : i32
    return %c0_i32, %c0_i32_0 : i32, i32
  }
  func.func @transform_15(%arg0: i32) -> (i32, i32) {
    %c0_i32 = arith.constant 0 : i32
    %c0_i32_0 = arith.constant 0 : i32
    %c0_i32_1 = arith.constant 0 : i32
    return %c0_i32, %c0_i32_0 : i32, i32
  }
  func.func @transform_16(%arg0: i32) -> (i32, i32) {
    %c0_i32 = arith.constant 0 : i32
    %c0_i32_0 = arith.constant 0 : i32
    %c0_i32_1 = arith.constant 0 : i32
    return %c0_i32, %c0_i32_0 : i32, i32
  }
  func.func @transform_17(%arg0: i32) -> (i32, i32, i32) {
    %c0_i32 = arith.constant 0 : i32
    %c0_i32_0 = arith.constant 0 : i32
    %c0_i32_1 = arith.constant 0 : i32
    return %arg0, %c0_i32, %c0_i32_0 : i32, i32, i32
  }
}

</mosaic_0001>

<llo_original>
// kernel: bert_simple_forward.1
$region0: #{bert_simple_forward.1}
  #allocation0 [shape = 'u32[]', space=smem, size = 0x4, offset = 0x4, fixed_abs, tag = 'smem constant byte address 0x4 - core index']
  #allocation1 [shape = 'u32[144,128]{1,0:T(1,128)}', space=vmem, size = 0x12000, scoped, tag = 'internal scratch']
  #allocation2 [shape = 'f32[32,32]{1,0:T(8,128)}', space=vmem, size = 0x4000, scoped, tag = 'scratch operand']
  #allocation3 [shape = 'f32[4,32]{1,0:T(4,128)}', space=vmem, size = 0x800, scoped, tag = 'scratch operand']
  #allocation4 [shape = 'f32[1,1]{1,0:T(1,128)S(1)}', space=vmem, size = 0x200, scoped, tag = 'scoped memory for bert_simple_forward.1']
  %s0 = inlined_call_operand.vmem [shape: f32[64,32], index: 0, kind: input, shape index: {}]
  %s1 = inlined_call_operand.vmem [shape: f32[2,32,32], index: 1, kind: input, shape index: {}]
  %s2 = inlined_call_operand.vmem [shape: f32[2,32], index: 2, kind: input, shape index: {}]
  %s3 = inlined_call_operand.vmem [shape: f32[2,32,96], index: 3, kind: input, shape index: {}]
  %s4 = inlined_call_operand.vmem [shape: f32[2,1,96], index: 4, kind: input, shape index: {}]
  %s5 = inlined_call_operand.vmem [shape: f32[2,32,32], index: 5, kind: input, shape index: {}]
  %s6 = inlined_call_operand.vmem [shape: f32[2,1,32], index: 6, kind: input, shape index: {}]
  %s7 = inlined_call_operand.vmem [shape: f32[2,2,32], index: 7, kind: input, shape index: {}]
  %s8 = inlined_call_operand.vmem [shape: f32[2,32,64], index: 8, kind: input, shape index: {}]
  %s9 = inlined_call_operand.vmem [shape: f32[2,1,64], index: 9, kind: input, shape index: {}]
  %s10 = inlined_call_operand.vmem [shape: f32[2,64,32], index: 10, kind: input, shape index: {}]
  %s11 = inlined_call_operand.vmem [shape: f32[2,1,32], index: 11, kind: input, shape index: {}]
  %s12 = inlined_call_operand.vmem [shape: f32[2,2,32], index: 12, kind: input, shape index: {}]
  %s13 = inlined_call_operand.vmem [shape: f32[32,32], index: 13, kind: input, shape index: {}]
  %s14 = inlined_call_operand.vmem [shape: f32[1,32], index: 14, kind: input, shape index: {}]
  %s15 = inlined_call_operand.vmem [shape: f32[1,32], index: 15, kind: input, shape index: {}]
  %s16 = inlined_call_operand.<no memory space> [shape: f32[1,1], index: 16, kind: input, shape index: {}]
  %s17 = inlined_call_operand.vmem [shape: f32[2,1,4], index: 17, kind: output, shape index: {}]
  %s18 = sld [smem:[#allocation0]]
  $region101: #{bert_simple_forward.1} parent=0
    _
  %s20 = ssub.s32 1, %s18
  %s21 = scalar_select 0, %s20, %s18
  %v22 = vstv %s16
  %23 = vst [vmem:[#allocation4] sm:$0x1] %v22
  loop: start=0, step=1, limit=4
  $region2: #{bert_simple_forward.1} parent=0 // loop_pre_header
    _
  $region3: #{bert_simple_forward.1} parent=0 // loop_header
    %s25 = sphi 0, %s29
    %p26 = scmp.ge.s32.totalorder %s25, 4
    %s35 = sphi 0, %s37
    %s38 = sphi 0, %s35
    %s39 = sphi 0, %s38
    %s55 = sphi 0, %s39
    %s61 = sphi 0, %s63
    %s64 = sphi 0, %s61
    %s65 = sphi 0, %s64
    %s81 = sphi 0, %s65
    %s85 = sphi 0, %s85
    %s87 = sphi 0, %s85
    %s88 = sphi 0, %s87
    %s102 = sphi 0, %s88
    %s106 = sphi 0, %s106
    %s108 = sphi 0, %s106
    %s109 = sphi 0, %s108
    %s123 = sphi 0, %s109
    %s127 = sphi 0, %s127
    %s129 = sphi 0, %s127
    %s130 = sphi 0, %s129
    %s144 = sphi 0, %s130
    %s148 = sphi 0, %s148
    %s150 = sphi 0, %s148
    %s151 = sphi 0, %s150
    %s165 = sphi 0, %s151
    %s169 = sphi 0, %s169
    %s171 = sphi 0, %s169
    %s172 = sphi 0, %s171
    %s186 = sphi 0, %s172
    %s190 = sphi 0, %s190
    %s192 = sphi 0, %s190
    %s193 = sphi 0, %s192
    %s207 = sphi 0, %s193
    %s211 = sphi 0, %s211
    %s213 = sphi 0, %s211
    %s214 = sphi 0, %s213
    %s228 = sphi 0, %s214
    %s232 = sphi 0, %s232
    %s234 = sphi 0, %s232
    %s235 = sphi 0, %s234
    %s249 = sphi 0, %s235
    %s253 = sphi 0, %s253
    %s255 = sphi 0, %s253
    %s256 = sphi 0, %s255
    %s270 = sphi 0, %s256
    %s274 = sphi 0, %s274
    %s276 = sphi 0, %s274
    %s277 = sphi 0, %s276
    %s291 = sphi 0, %s277
    %s295 = sphi 0, %s295
    %s297 = sphi 0, %s295
    %s298 = sphi 0, %s297
    %s312 = sphi 0, %s298
    %s316 = sphi 0, %s316
    %s318 = sphi 0, %s316
    %s319 = sphi 0, %s318
    %s333 = sphi 0, %s319
    %s337 = sphi 0, %s337
    %s339 = sphi 0, %s337
    %s340 = sphi 0, %s339
    %s354 = sphi 0, %s340
    %s358 = sphi 0, %s358
    %s360 = sphi 0, %s358
    %s361 = sphi 0, %s360
    %s375 = sphi 0, %s361
    %s379 = sphi 0, %s379
    %s381 = sphi 0, %s379
    %s382 = sphi 0, %s381
    %s396 = sphi 0, %s382
    %s402 = sphi 0, %s404
    %s405 = sphi 0, %s402
    %s406 = sphi 0, %s405
    %s422 = sphi 0, %s406
  $region4: #{bert_simple_forward.1} parent=0 // loop_header_branch
    %28 = sbr.rel (%p26) target = $region8
  $region5: #{bert_simple_forward.1} parent=0 // loop_body
    %s30 = ssub.s32 %s25, 1
    %s31 = ssub.s32 %s25, 2
    %s32 = sadd.s32 %s25, 1
    %s33 = ssub.s32 %s25, %s32
    %p34 = scmp.eq.s32.totalorder %s33, 0
    %s36 = sadd.s32 %s35, 1
    %s37 = scalar_select %p34, %s35, %s36
    %p40 = pneg %p34
    %p41 = scmp.eq.s32.totalorder %s25, 1
    %p42 = por %p40, %p41
    %p43 = scmp.ne.s32.totalorder %s35, %s38
    %p44 = scmp.eq.s32.totalorder %s25, 0
    %p45 = por %p43, %p44
    %p46 = scmp.ne.s32.totalorder %s35, %s38
    %p47 = scmp.eq.s32.totalorder %s30, 1
    %p48 = por %p46, %p47
    %p49 = scmp.ne.s32.totalorder %s38, %s39
    %p50 = scmp.eq.s32.totalorder %s30, 0
    %p51 = por %p49, %p50
    %p52 = scmp.ne.s32.totalorder %s38, %s39
    %p53 = scmp.eq.s32.totalorder %s31, 1
    %p54 = por %p52, %p53
    %p56 = scmp.ne.s32.totalorder %s39, %s55
    %p57 = scmp.eq.s32.totalorder %s31, 0
    %p58 = por %p56, %p57
    %s59 = ssub.s32 %s25, %s32
    %p60 = scmp.eq.s32.totalorder %s59, 0
    %s62 = sadd.s32 %s61, 1
    %s63 = scalar_select %p60, %s61, %s62
    %p66 = pneg %p60
    %p67 = scmp.eq.s32.totalorder %s25, 1
    %p68 = por %p66, %p67
    %p69 = scmp.ne.s32.totalorder %s61, %s64
    %p70 = scmp.eq.s32.totalorder %s25, 0
    %p71 = por %p69, %p70
    %p72 = scmp.ne.s32.totalorder %s61, %s64
    %p73 = scmp.eq.s32.totalorder %s30, 1
    %p74 = por %p72, %p73
    %p75 = scmp.ne.s32.totalorder %s64, %s65
    %p76 = scmp.eq.s32.totalorder %s30, 0
    %p77 = por %p75, %p76
    %p78 = scmp.ne.s32.totalorder %s64, %s65
    %p79 = scmp.eq.s32.totalorder %s31, 1
    %p80 = por %p78, %p79
    %p82 = scmp.ne.s32.totalorder %s65, %s81
    %p83 = scmp.eq.s32.totalorder %s31, 0
    %p84 = por %p82, %p83
    %s86 = sadd.s32 %s85, 1
    %p89 = scmp.eq.s32.totalorder %s25, 1
    %p90 = scmp.ne.s32.totalorder %s85, %s87
    %p91 = scmp.eq.s32.totalorder %s25, 0
    %p92 = por %p90, %p91
    %p93 = scmp.ne.s32.totalorder %s85, %s87
    %p94 = scmp.eq.s32.totalorder %s30, 1
    %p95 = por %p93, %p94
    %p96 = scmp.ne.s32.totalorder %s87, %s88
    %p97 = scmp.eq.s32.totalorder %s30, 0
    %p98 = por %p96, %p97
    %p99 = scmp.ne.s32.totalorder %s87, %s88
    %p100 = scmp.eq.s32.totalorder %s31, 1
    %p101 = por %p99, %p100
    %p103 = scmp.ne.s32.totalorder %s88, %s102
    %p104 = scmp.eq.s32.totalorder %s31, 0
    %p105 = por %p103, %p104
    %s107 = sadd.s32 %s106, 1
    %p110 = scmp.eq.s32.totalorder %s25, 1
    %p111 = scmp.ne.s32.totalorder %s106, %s108
    %p112 = scmp.eq.s32.totalorder %s25, 0
    %p113 = por %p111, %p112
    %p114 = scmp.ne.s32.totalorder %s106, %s108
    %p115 = scmp.eq.s32.totalorder %s30, 1
    %p116 = por %p114, %p115
    %p117 = scmp.ne.s32.totalorder %s108, %s109
    %p118 = scmp.eq.s32.totalorder %s30, 0
    %p119 = por %p117, %p118
    %p120 = scmp.ne.s32.totalorder %s108, %s109
    %p121 = scmp.eq.s32.totalorder %s31, 1
    %p122 = por %p120, %p121
    %p124 = scmp.ne.s32.totalorder %s109, %s123
    %p125 = scmp.eq.s32.totalorder %s31, 0
    %p126 = por %p124, %p125
    %s128 = sadd.s32 %s127, 1
    %p131 = scmp.eq.s32.totalorder %s25, 1
    %p132 = scmp.ne.s32.totalorder %s127, %s129
    %p133 = scmp.eq.s32.totalorder %s25, 0
    %p134 = por %p132, %p133
    %p135 = scmp.ne.s32.totalorder %s127, %s129
    %p136 = scmp.eq.s32.totalorder %s30, 1
    %p137 = por %p135, %p136
    %p138 = scmp.ne.s32.totalorder %s129, %s130
    %p139 = scmp.eq.s32.totalorder %s30, 0
    %p140 = por %p138, %p139
    %p141 = scmp.ne.s32.totalorder %s129, %s130
    %p142 = scmp.eq.s32.totalorder %s31, 1
    %p143 = por %p141, %p142
    %p145 = scmp.ne.s32.totalorder %s130, %s144
    %p146 = scmp.eq.s32.totalorder %s31, 0
    %p147 = por %p145, %p146
    %s149 = sadd.s32 %s148, 1
    %p152 = scmp.eq.s32.totalorder %s25, 1
    %p153 = scmp.ne.s32.totalorder %s148, %s150
    %p154 = scmp.eq.s32.totalorder %s25, 0
    %p155 = por %p153, %p154
    %p156 = scmp.ne.s32.totalorder %s148, %s150
    %p157 = scmp.eq.s32.totalorder %s30, 1
    %p158 = por %p156, %p157
    %p159 = scmp.ne.s32.totalorder %s150, %s151
    %p160 = scmp.eq.s32.totalorder %s30, 0
    %p161 = por %p159, %p160
    %p162 = scmp.ne.s32.totalorder %s150, %s151
    %p163 = scmp.eq.s32.totalorder %s31, 1
    %p164 = por %p162, %p163
    %p166 = scmp.ne.s32.totalorder %s151, %s165
    %p167 = scmp.eq.s32.totalorder %s31, 0
    %p168 = por %p166, %p167
    %s170 = sadd.s32 %s169, 1
    %p173 = scmp.eq.s32.totalorder %s25, 1
    %p174 = scmp.ne.s32.totalorder %s169, %s171
    %p175 = scmp.eq.s32.totalorder %s25, 0
    %p176 = por %p174, %p175
    %p177 = scmp.ne.s32.totalorder %s169, %s171
    %p178 = scmp.eq.s32.totalorder %s30, 1
    %p179 = por %p177, %p178
    %p180 = scmp.ne.s32.totalorder %s171, %s172
    %p181 = scmp.eq.s32.totalorder %s30, 0
    %p182 = por %p180, %p181
    %p183 = scmp.ne.s32.totalorder %s171, %s172
    %p184 = scmp.eq.s32.totalorder %s31, 1
    %p185 = por %p183, %p184
    %p187 = scmp.ne.s32.totalorder %s172, %s186
    %p188 = scmp.eq.s32.totalorder %s31, 0
    %p189 = por %p187, %p188
    %s191 = sadd.s32 %s190, 1
    %p194 = scmp.eq.s32.totalorder %s25, 1
    %p195 = scmp.ne.s32.totalorder %s190, %s192
    %p196 = scmp.eq.s32.totalorder %s25, 0
    %p197 = por %p195, %p196
    %p198 = scmp.ne.s32.totalorder %s190, %s192
    %p199 = scmp.eq.s32.totalorder %s30, 1
    %p200 = por %p198, %p199
    %p201 = scmp.ne.s32.totalorder %s192, %s193
    %p202 = scmp.eq.s32.totalorder %s30, 0
    %p203 = por %p201, %p202
    %p204 = scmp.ne.s32.totalorder %s192, %s193
    %p205 = scmp.eq.s32.totalorder %s31, 1
    %p206 = por %p204, %p205
    %p208 = scmp.ne.s32.totalorder %s193, %s207
    %p209 = scmp.eq.s32.totalorder %s31, 0
    %p210 = por %p208, %p209
    %s212 = sadd.s32 %s211, 1
    %p215 = scmp.eq.s32.totalorder %s25, 1
    %p216 = scmp.ne.s32.totalorder %s211, %s213
    %p217 = scmp.eq.s32.totalorder %s25, 0
    %p218 = por %p216, %p217
    %p219 = scmp.ne.s32.totalorder %s211, %s213
    %p220 = scmp.eq.s32.totalorder %s30, 1
    %p221 = por %p219, %p220
    %p222 = scmp.ne.s32.totalorder %s213, %s214
    %p223 = scmp.eq.s32.totalorder %s30, 0
    %p224 = por %p222, %p223
    %p225 = scmp.ne.s32.totalorder %s213, %s214
    %p226 = scmp.eq.s32.totalorder %s31, 1
    %p227 = por %p225, %p226
    %p229 = scmp.ne.s32.totalorder %s214, %s228
    %p230 = scmp.eq.s32.totalorder %s31, 0
    %p231 = por %p229, %p230
    %s233 = sadd.s32 %s232, 1
    %p236 = scmp.eq.s32.totalorder %s25, 1
    %p237 = scmp.ne.s32.totalorder %s232, %s234
    %p238 = scmp.eq.s32.totalorder %s25, 0
    %p239 = por %p237, %p238
    %p240 = scmp.ne.s32.totalorder %s232, %s234
    %p241 = scmp.eq.s32.totalorder %s30, 1
    %p242 = por %p240, %p241
    %p243 = scmp.ne.s32.totalorder %s234, %s235
    %p244 = scmp.eq.s32.totalorder %s30, 0
    %p245 = por %p243, %p244
    %p246 = scmp.ne.s32.totalorder %s234, %s235
    %p247 = scmp.eq.s32.totalorder %s31, 1
    %p248 = por %p246, %p247
    %p250 = scmp.ne.s32.totalorder %s235, %s249
    %p251 = scmp.eq.s32.totalorder %s31, 0
    %p252 = por %p250, %p251
    %s254 = sadd.s32 %s253, 1
    %p257 = scmp.eq.s32.totalorder %s25, 1
    %p258 = scmp.ne.s32.totalorder %s253, %s255
    %p259 = scmp.eq.s32.totalorder %s25, 0
    %p260 = por %p258, %p259
    %p261 = scmp.ne.s32.totalorder %s253, %s255
    %p262 = scmp.eq.s32.totalorder %s30, 1
    %p263 = por %p261, %p262
    %p264 = scmp.ne.s32.totalorder %s255, %s256
    %p265 = scmp.eq.s32.totalorder %s30, 0
    %p266 = por %p264, %p265
    %p267 = scmp.ne.s32.totalorder %s255, %s256
    %p268 = scmp.eq.s32.totalorder %s31, 1
    %p269 = por %p267, %p268
    %p271 = scmp.ne.s32.totalorder %s256, %s270
    %p272 = scmp.eq.s32.totalorder %s31, 0
    %p273 = por %p271, %p272
    %s275 = sadd.s32 %s274, 1
    %p278 = scmp.eq.s32.totalorder %s25, 1
    %p279 = scmp.ne.s32.totalorder %s274, %s276
    %p280 = scmp.eq.s32.totalorder %s25, 0
    %p281 = por %p279, %p280
    %p282 = scmp.ne.s32.totalorder %s274, %s276
    %p283 = scmp.eq.s32.totalorder %s30, 1
    %p284 = por %p282, %p283
    %p285 = scmp.ne.s32.totalorder %s276, %s277
    %p286 = scmp.eq.s32.totalorder %s30, 0
    %p287 = por %p285, %p286
    %p288 = scmp.ne.s32.totalorder %s276, %s277
    %p289 = scmp.eq.s32.totalorder %s31, 1
    %p290 = por %p288, %p289
    %p292 = scmp.ne.s32.totalorder %s277, %s291
    %p293 = scmp.eq.s32.totalorder %s31, 0
    %p294 = por %p292, %p293
    %s296 = sadd.s32 %s295, 1
    %p299 = scmp.eq.s32.totalorder %s25, 1
    %p300 = scmp.ne.s32.totalorder %s295, %s297
    %p301 = scmp.eq.s32.totalorder %s25, 0
    %p302 = por %p300, %p301
    %p303 = scmp.ne.s32.totalorder %s295, %s297
    %p304 = scmp.eq.s32.totalorder %s30, 1
    %p305 = por %p303, %p304
    %p306 = scmp.ne.s32.totalorder %s297, %s298
    %p307 = scmp.eq.s32.totalorder %s30, 0
    %p308 = por %p306, %p307
    %p309 = scmp.ne.s32.totalorder %s297, %s298
    %p310 = scmp.eq.s32.totalorder %s31, 1
    %p311 = por %p309, %p310
    %p313 = scmp.ne.s32.totalorder %s298, %s312
    %p314 = scmp.eq.s32.totalorder %s31, 0
    %p315 = por %p313, %p314
    %s317 = sadd.s32 %s316, 1
    %p320 = scmp.eq.s32.totalorder %s25, 1
    %p321 = scmp.ne.s32.totalorder %s316, %s318
    %p322 = scmp.eq.s32.totalorder %s25, 0
    %p323 = por %p321, %p322
    %p324 = scmp.ne.s32.totalorder %s316, %s318
    %p325 = scmp.eq.s32.totalorder %s30, 1
    %p326 = por %p324, %p325
    %p327 = scmp.ne.s32.totalorder %s318, %s319
    %p328 = scmp.eq.s32.totalorder %s30, 0
    %p329 = por %p327, %p328
    %p330 = scmp.ne.s32.totalorder %s318, %s319
    %p331 = scmp.eq.s32.totalorder %s31, 1
    %p332 = por %p330, %p331
    %p334 = scmp.ne.s32.totalorder %s319, %s333
    %p335 = scmp.eq.s32.totalorder %s31, 0
    %p336 = por %p334, %p335
    %s338 = sadd.s32 %s337, 1
    %p341 = scmp.eq.s32.totalorder %s25, 1
    %p342 = scmp.ne.s32.totalorder %s337, %s339
    %p343 = scmp.eq.s32.totalorder %s25, 0
    %p344 = por %p342, %p343
    %p345 = scmp.ne.s32.totalorder %s337, %s339
    %p346 = scmp.eq.s32.totalorder %s30, 1
    %p347 = por %p345, %p346
    %p348 = scmp.ne.s32.totalorder %s339, %s340
    %p349 = scmp.eq.s32.totalorder %s30, 0
    %p350 = por %p348, %p349
    %p351 = scmp.ne.s32.totalorder %s339, %s340
    %p352 = scmp.eq.s32.totalorder %s31, 1
    %p353 = por %p351, %p352
    %p355 = scmp.ne.s32.totalorder %s340, %s354
    %p356 = scmp.eq.s32.totalorder %s31, 0
    %p357 = por %p355, %p356
    %s359 = sadd.s32 %s358, 1
    %p362 = scmp.eq.s32.totalorder %s25, 1
    %p363 = scmp.ne.s32.totalorder %s358, %s360
    %p364 = scmp.eq.s32.totalorder %s25, 0
    %p365 = por %p363, %p364
    %p366 = scmp.ne.s32.totalorder %s358, %s360
    %p367 = scmp.eq.s32.totalorder %s30, 1
    %p368 = por %p366, %p367
    %p369 = scmp.ne.s32.totalorder %s360, %s361
    %p370 = scmp.eq.s32.totalorder %s30, 0
    %p371 = por %p369, %p370
    %p372 = scmp.ne.s32.totalorder %s360, %s361
    %p373 = scmp.eq.s32.totalorder %s31, 1
    %p374 = por %p372, %p373
    %p376 = scmp.ne.s32.totalorder %s361, %s375
    %p377 = scmp.eq.s32.totalorder %s31, 0
    %p378 = por %p376, %p377
    %s380 = sadd.s32 %s379, 1
    %p383 = scmp.eq.s32.totalorder %s25, 1
    %p384 = scmp.ne.s32.totalorder %s379, %s381
    %p385 = scmp.eq.s32.totalorder %s25, 0
    %p386 = por %p384, %p385
    %p387 = scmp.ne.s32.totalorder %s379, %s381
    %p388 = scmp.eq.s32.totalorder %s30, 1
    %p389 = por %p387, %p388
    %p390 = scmp.ne.s32.totalorder %s381, %s382
    %p391 = scmp.eq.s32.totalorder %s30, 0
    %p392 = por %p390, %p391
    %p393 = scmp.ne.s32.totalorder %s381, %s382
    %p394 = scmp.eq.s32.totalorder %s31, 1
    %p395 = por %p393, %p394
    %p397 = scmp.ne.s32.totalorder %s382, %s396
    %p398 = scmp.eq.s32.totalorder %s31, 0
    %p399 = por %p397, %p398
    %s400 = ssub.s32 %s25, %s32
    %p401 = scmp.eq.s32.totalorder %s400, 0
    %s403 = sadd.s32 %s402, 1
    %s404 = scalar_select %p401, %s402, %s403
    %p407 = pneg %p401
    %p408 = scmp.eq.s32.totalorder %s25, 1
    %p409 = por %p407, %p408
    %p410 = scmp.ne.s32.totalorder %s402, %s405
    %p411 = scmp.eq.s32.totalorder %s25, 0
    %p412 = por %p410, %p411
    %p413 = scmp.ne.s32.totalorder %s402, %s405
    %p414 = scmp.eq.s32.totalorder %s30, 1
    %p415 = por %p413, %p414
    %p416 = scmp.ne.s32.totalorder %s405, %s406
    %p417 = scmp.eq.s32.totalorder %s30, 0
    %p418 = por %p416, %p417
    %p419 = scmp.ne.s32.totalorder %s405, %s406
    %p420 = scmp.eq.s32.totalorder %s31, 1
    %p421 = por %p419, %p420
    %p423 = scmp.ne.s32.totalorder %s406, %s422
    %p424 = scmp.eq.s32.totalorder %s31, 0
    %p425 = por %p423, %p424
    %p426 = scmp.le.s32.totalorder 1, %s25
    %p427 = scmp.lt.s32.totalorder %s25, 3
    %p428 = pnand %p426, %p427
    %p429 = pneg %p428
    // Predicated region
    $region9: #{bert_simple_forward.1} parent=5 // pred_check
      _
    $region10: #{bert_simple_forward.1} parent=5 // pred_check_branch
      %431 = sbr.rel (%p428) target = $region12
    $region11: #{bert_simple_forward.1} parent=5 // pred_region
      %s432 = ssub.s32 %s25, 1
      // Predicated region
      $region13: #{bert_simple_forward.1} parent=11 // pred_check
        %p433 = pneg %p98
      $region14: #{bert_simple_forward.1} parent=11 // pred_check_branch
        %435 = sbr.rel (%p433) target = $region16
      $region15: #{bert_simple_forward.1} parent=11 // pred_region
        _
      $region16: #{bert_simple_forward.1} parent=11 // pred_fallthru
        _
      // Predicated region
      $region17: #{bert_simple_forward.1} parent=11 // pred_check
        %p436 = pneg %p119
      $region18: #{bert_simple_forward.1} parent=11 // pred_check_branch
        %438 = sbr.rel (%p436) target = $region20
      $region19: #{bert_simple_forward.1} parent=11 // pred_region
        _
      $region20: #{bert_simple_forward.1} parent=11 // pred_fallthru
        _
      // Predicated region
      $region21: #{bert_simple_forward.1} parent=11 // pred_check
        %p439 = pneg %p140
      $region22: #{bert_simple_forward.1} parent=11 // pred_check_branch
        %441 = sbr.rel (%p439) target = $region24
      $region23: #{bert_simple_forward.1} parent=11 // pred_region
        _
      $region24: #{bert_simple_forward.1} parent=11 // pred_fallthru
        _
      // Predicated region
      $region25: #{bert_simple_forward.1} parent=11 // pred_check
        %p442 = pneg %p161
      $region26: #{bert_simple_forward.1} parent=11 // pred_check_branch
        %444 = sbr.rel (%p442) target = $region28
      $region27: #{bert_simple_forward.1} parent=11 // pred_region
        _
      $region28: #{bert_simple_forward.1} parent=11 // pred_fallthru
        _
      // Predicated region
      $region29: #{bert_simple_forward.1} parent=11 // pred_check
        %p445 = pneg %p182
      $region30: #{bert_simple_forward.1} parent=11 // pred_check_branch
        %447 = sbr.rel (%p445) target = $region32
      $region31: #{bert_simple_forward.1} parent=11 // pred_region
        _
      $region32: #{bert_simple_forward.1} parent=11 // pred_fallthru
        _
      // Predicated region
      $region33: #{bert_simple_forward.1} parent=11 // pred_check
        %p448 = pneg %p203
      $region34: #{bert_simple_forward.1} parent=11 // pred_check_branch
        %450 = sbr.rel (%p448) target = $region36
      $region35: #{bert_simple_forward.1} parent=11 // pred_region
        _
      $region36: #{bert_simple_forward.1} parent=11 // pred_fallthru
        _
      // Predicated region
      $region37: #{bert_simple_forward.1} parent=11 // pred_check
        %p451 = pneg %p224
      $region38: #{bert_simple_forward.1} parent=11 // pred_check_branch
        %453 = sbr.rel (%p451) target = $region40
      $region39: #{bert_simple_forward.1} parent=11 // pred_region
        _
      $region40: #{bert_simple_forward.1} parent=11 // pred_fallthru
        _
      // Predicated region
      $region41: #{bert_simple_forward.1} parent=11 // pred_check
        %p454 = pneg %p245
      $region42: #{bert_simple_forward.1} parent=11 // pred_check_branch
        %456 = sbr.rel (%p454) target = $region44
      $region43: #{bert_simple_forward.1} parent=11 // pred_region
        _
      $region44: #{bert_simple_forward.1} parent=11 // pred_fallthru
        _
      // Predicated region
      $region45: #{bert_simple_forward.1} parent=11 // pred_check
        %p457 = pneg %p266
      $region46: #{bert_simple_forward.1} parent=11 // pred_check_branch
        %459 = sbr.rel (%p457) target = $region48
      $region47: #{bert_simple_forward.1} parent=11 // pred_region
        _
      $region48: #{bert_simple_forward.1} parent=11 // pred_fallthru
        _
      // Predicated region
      $region49: #{bert_simple_forward.1} parent=11 // pred_check
        %p460 = pneg %p287
      $region50: #{bert_simple_forward.1} parent=11 // pred_check_branch
        %462 = sbr.rel (%p460) target = $region52
      $region51: #{bert_simple_forward.1} parent=11 // pred_region
        _
      $region52: #{bert_simple_forward.1} parent=11 // pred_fallthru
        _
      // Predicated region
      $region53: #{bert_simple_forward.1} parent=11 // pred_check
        %p463 = pneg %p308
      $region54: #{bert_simple_forward.1} parent=11 // pred_check_branch
        %465 = sbr.rel (%p463) target = $region56
      $region55: #{bert_simple_forward.1} parent=11 // pred_region
        _
      $region56: #{bert_simple_forward.1} parent=11 // pred_fallthru
        _
      // Predicated region
      $region57: #{bert_simple_forward.1} parent=11 // pred_check
        %p466 = pneg %p329
      $region58: #{bert_simple_forward.1} parent=11 // pred_check_branch
        %468 = sbr.rel (%p466) target = $region60
      $region59: #{bert_simple_forward.1} parent=11 // pred_region
        _
      $region60: #{bert_simple_forward.1} parent=11 // pred_fallthru
        _
      // Predicated region
      $region61: #{bert_simple_forward.1} parent=11 // pred_check
        %p469 = pneg %p350
      $region62: #{bert_simple_forward.1} parent=11 // pred_check_branch
        %471 = sbr.rel (%p469) target = $region64
      $region63: #{bert_simple_forward.1} parent=11 // pred_region
        _
      $region64: #{bert_simple_forward.1} parent=11 // pred_fallthru
        _
      // Predicated region
      $region65: #{bert_simple_forward.1} parent=11 // pred_check
        %p472 = pneg %p371
      $region66: #{bert_simple_forward.1} parent=11 // pred_check_branch
        %474 = sbr.rel (%p472) target = $region68
      $region67: #{bert_simple_forward.1} parent=11 // pred_region
        _
      $region68: #{bert_simple_forward.1} parent=11 // pred_fallthru
        _
      // Predicated region
      $region69: #{bert_simple_forward.1} parent=11 // pred_check
        %p475 = pneg %p392
      $region70: #{bert_simple_forward.1} parent=11 // pred_check_branch
        %477 = sbr.rel (%p475) target = $region72
      $region71: #{bert_simple_forward.1} parent=11 // pred_region
        _
      $region72: #{bert_simple_forward.1} parent=11 // pred_fallthru
        _
    $region12: #{bert_simple_forward.1} parent=5 // pred_fallthru
      _
    %p478 = scmp.lt.s32.totalorder %s25, 2
    // Predicated region
    $region73: #{bert_simple_forward.1} parent=5 // pred_check
      %p479 = pneg %p478
    $region74: #{bert_simple_forward.1} parent=5 // pred_check_branch
      %481 = sbr.rel (%p479) target = $region76
    $region75: #{bert_simple_forward.1} parent=5 // pred_region
      // Predicated region
      $region77: #{bert_simple_forward.1} parent=75 // pred_check
        %p482 = pneg %p45
      $region78: #{bert_simple_forward.1} parent=75 // pred_check_branch
        %484 = sbr.rel (%p482) target = $region80
      $region79: #{bert_simple_forward.1} parent=75 // pred_region
        %s485 = smul.u32 4, %s25
        %p486 = scmp.lt.s32.totalorder %s485, 7
        %s487 = scalar_select %p486, %s485, 7
        %s488 = smul.addr %s487, 8
        %s489 = scalar_lea.vmem %s0, %s488
        %s490 = smul.u32 4, %s25
      $region80: #{bert_simple_forward.1} parent=75 // pred_fallthru
        _
      // Predicated region
      $region81: #{bert_simple_forward.1} parent=75 // pred_check
        %p491 = pneg %p71
      $region82: #{bert_simple_forward.1} parent=75 // pred_check_branch
        %493 = sbr.rel (%p491) target = $region84
      $region83: #{bert_simple_forward.1} parent=75 // pred_region
        %p494 = scmp.lt.s32.totalorder %s25, 1
        %s495 = scalar_select %p494, %s25, 1
        %s496 = smul.addr %s495, 4
        %s497 = smul.addr %s496, 8
        %s498 = scalar_lea.vmem %s1, %s497
      $region84: #{bert_simple_forward.1} parent=75 // pred_fallthru
        _
    $region76: #{bert_simple_forward.1} parent=5 // pred_fallthru
      _
    %p499 = scmp.le.s32.totalorder 1, %s25
    %p500 = scmp.lt.s32.totalorder %s25, 3
    %p501 = pnand %p499, %p500
    %p502 = pneg %p501
    // Predicated region
    $region85: #{bert_simple_forward.1} parent=5 // pred_check
      _
    $region86: #{bert_simple_forward.1} parent=5 // pred_check_branch
      %504 = sbr.rel (%p501) target = $region88
    $region87: #{bert_simple_forward.1} parent=5 // pred_region
      %s505 = ssub.s32 %s25, 1
      %s506 = smul.u32 4, %s30
      %p507 = scmp.lt.s32.totalorder %s506, 7
      %s508 = scalar_select %p507, %s506, 7
      %s509 = smul.addr %s508, 8
      %s510 = scalar_lea.vmem %s0, %s509
      %p511 = pneg %p51
      %p512 = pneg %p48
      %p513 = scmp.lt.s32.totalorder %s30, 1
      %s514 = scalar_select %p513, %s30, 1
      %s515 = smul.addr %s514, 4
      %s516 = smul.addr %s515, 8
      %s517 = scalar_lea.vmem %s1, %s516
      %p518 = pneg %p77
      %p519 = pneg %p74
      %p520 = pneg %p98
      %p521 = pneg %p95
      %p522 = pneg %p119
      %p523 = pneg %p116
      %p524 = pneg %p140
      %p525 = pneg %p137
      %p526 = pneg %p161
      %p527 = pneg %p158
      %p528 = pneg %p182
      %p529 = pneg %p179
      %p530 = pneg %p203
      %p531 = pneg %p200
      %p532 = pneg %p224
      %p533 = pneg %p221
      %p534 = pneg %p245
      %p535 = pneg %p242
      %p536 = pneg %p266
      %p537 = pneg %p263
      %p538 = pneg %p287
      %p539 = pneg %p284
      %p540 = pneg %p308
      %p541 = pneg %p305
      %p542 = pneg %p329
      %p543 = pneg %p326
      %p544 = pneg %p350
      %p545 = pneg %p347
      %p546 = pneg %p371
      %p547 = pneg %p368
      %p548 = pneg %p392
      %p549 = pneg %p389
      %p550 = pneg %p418
      %p551 = pneg %p415
      %p552 = scmp.lt.s32.totalorder %s30, 1
      %s553 = scalar_select %p552, %s30, 1
      %s554 = scalar_lea.vmem %s17, %s553
      %s555 = smul.u32 4, %s30
      %p556 = scmp.lt.s32.totalorder %s555, 7
      %s557 = scalar_select %p556, %s555, 7
      %s558 = smul.addr %s557, 8
      %s559 = scalar_lea.vmem %s0, %s558
      %s560 = smul.u32 4, %s30
      %p561 = scmp.lt.s32.totalorder %s30, 1
      %s562 = scalar_select %p561, %s30, 1
      %s563 = smul.addr %s562, 4
      %s564 = smul.addr %s563, 8
      %s565 = scalar_lea.vmem %s1, %s564
      %p566 = scmp.lt.s32.totalorder %s30, 1
      %s567 = scalar_select %p566, %s30, 1
      %s568 = scalar_lea.vmem %s17, %s567
      %v569 = vld [vmem:[%s565] sm:$0xff]
      %v570 = vld [vmem:[%s565 + $0x8] sm:$0xff]
      %v571 = vld [vmem:[%s565 + $0x10] sm:$0xff]
      %v572 = vld [vmem:[%s565 + $0x18] sm:$0xff]
      %v573 = vld [vmem:[%s559] sm:$0xff]
      %v574 = vld [vmem:[%s559 + $0x8] sm:$0xff]
      %v575 = vld [vmem:[%s559 + $0x10] sm:$0xff]
      %v576 = vld [vmem:[%s559 + $0x18] sm:$0xff]
      %v577 = vld [vmem:[%s2] sm:$0x3]
      %vm578 = vcmask 261120
      %v579 = vsel %vm578, %v573, 0.0
      %580 = vadd.xlane.f32.xlu0 %v579
      %v581 = vpop.xlane.xlu0 %580
      %v582 = vsel %vm578, %v574, 0.0
      %583 = vadd.xlane.f32.xlu0 %v582
      %v584 = vpop.xlane.xlu0 %583
      %v585 = vsel %vm578, %v575, 0.0
      %586 = vadd.xlane.f32.xlu0 %v585
      %v587 = vpop.xlane.xlu0 %586
      %v588 = vsel %vm578, %v576, 0.0
      %589 = vadd.xlane.f32.xlu0 %v588
      %v590 = vpop.xlane.xlu0 %589
      %v591 = vrcp.pop 32.0
      %v592 = vmul.f32 %v581, %v591
      %v593 = vmul.f32 %v584, %v591
      %v594 = vmul.f32 %v587, %v591
      %v595 = vmul.f32 %v590, %v591
      %v596 = vsub.f32 %v573, %v592
      %v597 = vsub.f32 %v574, %v593
      %v598 = vsub.f32 %v575, %v594
      %v599 = vsub.f32 %v576, %v595
      %v600 = vmul.f32 %v596, %v596
      %v601 = vmul.f32 %v597, %v597
      %v602 = vmul.f32 %v598, %v598
      %v603 = vmul.f32 %v599, %v599
      %v604 = vsel %vm578, %v600, 0.0
      %605 = vadd.xlane.f32.xlu0 %v604
      %v606 = vpop.xlane.xlu0 %605
      %v607 = vsel %vm578, %v601, 0.0
      %608 = vadd.xlane.f32.xlu0 %v607
      %v609 = vpop.xlane.xlu0 %608
      %v610 = vsel %vm578, %v602, 0.0
      %611 = vadd.xlane.f32.xlu0 %v610
      %v612 = vpop.xlane.xlu0 %611
      %v613 = vsel %vm578, %v603, 0.0
      %614 = vadd.xlane.f32.xlu0 %v613
      %v615 = vpop.xlane.xlu0 %614
      %v616 = vmul.f32 %v606, %v591
      %v617 = vmul.f32 %v609, %v591
      %v618 = vmul.f32 %v612, %v591
      %v619 = vmul.f32 %v615, %v591
      %v620 = vadd.f32 %v616, 1e-12
      %v621 = vadd.f32 %v617, 1e-12
      %v622 = vadd.f32 %v618, 1e-12
      %v623 = vadd.f32 %v619, 1e-12
      %v624 = vrsqrt.pop %v620
      %v625 = vrsqrt.pop %v621
      %v626 = vrsqrt.pop %v622
      %v627 = vrsqrt.pop %v623
      %v628 = vmul.f32 %v596, %v624
      %v629 = vmul.f32 %v597, %v625
      %v630 = vmul.f32 %v598, %v626
      %v631 = vmul.f32 %v599, %v627
      %v632 = vlaneseq
      %v633 = vshrl.u32 %v632, 7
      %v634 = vsub.s32 0, %v633
      %v635 = vrot.slane %v577, %v634
      %v636 = vmul.f32 %v628, %v635
      %v637 = vmul.f32 %v629, %v635
      %v638 = vmul.f32 %v630, %v635
      %v639 = vmul.f32 %v631, %v635
      %v640 = vlaneseq
      %v641 = vshrl.u32 %v640, 7
      %v642 = vsub.s32 1, %v641
      %v643 = vrot.slane %v577, %v642
      %v644 = vadd.f32 %v636, %v643
      %v645 = vadd.f32 %v637, %v643
      %v646 = vadd.f32 %v638, %v643
      %v647 = vadd.f32 %v639, %v643
      %v648 = vld [vmem:[%s3] sm:$0xff]
      %v649 = vld [vmem:[%s3 + $0x8] sm:$0xff]
      %v650 = vld [vmem:[%s3 + $0x10] sm:$0xff]
      %v651 = vld [vmem:[%s3 + $0x18] sm:$0xff]
      %v652 = vld [vmem:[%s4] sm:$0x1]
      %v654 = vlaneseq
      %v655 = vshrl.u32 %v654, 7
      %v656 = vsub.s32 0, %v655
      %v657 = vrot.slane %v652, %v656
      %v660 = vsel %vm578, %v644, 0
      %v663 = vsel %vm578, %v645, 0
      %v666 = vsel %vm578, %v646, 0
      %v669 = vsel %vm578, %v647, 0
      %671 = vmatprep.subr.mxu0 0.0
      %672 = vmatpush1.msra.mxu0 %v648
      %673 = vmatprep.subr.mxu0 0.0
      %674 = vmatpush1.msra.mxu0 %v649
      %675 = vmatprep.subr.mxu0 0.0
      %676 = vmatpush1.msra.mxu0 %v650
      %677 = vmatprep.subr.mxu0 0.0
      %678 = vmatpush1.msra.mxu0 %v651
      %679 = vmatprep.subr.mxu0 0.0
      %680 = vmatpush1.msra.mxu0 0.0
      %681 = vmatprep.subr.mxu0 0.0
      %682 = vmatpush1.msra.mxu0 0.0
      %683 = vmatprep.subr.mxu0 0.0
      %684 = vmatpush1.msra.mxu0 0.0
      %685 = vmatprep.subr.mxu0 0.0
      %686 = vmatpush1.msra.mxu0 0.0
      %687 = vmatprep.subr.mxu0 0.0
      %688 = vmatpush1.msra.mxu0 0.0
      %689 = vmatprep.subr.mxu0 0.0
      %690 = vmatpush1.msra.mxu0 0.0
      %691 = vmatprep.subr.mxu0 0.0
      %692 = vmatpush1.msra.mxu0 0.0
      %693 = vmatprep.subr.mxu0 0.0
      %694 = vmatpush1.msra.mxu0 0.0
      %695 = vmatprep.subr.mxu0 0.0
      %696 = vmatpush1.msra.mxu0 0.0
      %697 = vmatprep.subr.mxu0 0.0
      %698 = vmatpush1.msra.mxu0 0.0
      %699 = vmatprep.subr.mxu0 0.0
      %700 = vmatpush1.msra.mxu0 0.0
      %701 = vmatprep.subr.mxu0 0.0
      %702 = vmatpush1.msra.mxu0 0.0
      %703 = vmatprep.subr.mxu0 0.0
      %704 = vmatpush1.msra.mxu0 0.0
      %705 = vmatprep.subr.mxu0 0.0
      %706 = vmatpush1.msra.mxu0 0.0
      %707 = vmatprep.subr.mxu0 0.0
      %708 = vmatpush1.msra.mxu0 0.0
      %709 = vmatprep.subr.mxu0 0.0
      %710 = vmatpush1.msra.mxu0 0.0
      %711 = vmatprep.subr.mxu0 0.0
      %712 = vmatpush1.msra.mxu0 0.0
      %713 = vmatprep.subr.mxu0 0.0
      %714 = vmatpush1.msra.mxu0 0.0
      %715 = vmatprep.subr.mxu0 0.0
      %716 = vmatpush1.msra.mxu0 0.0
      %717 = vmatprep.subr.mxu0 0.0
      %718 = vmatpush1.msra.mxu0 0.0
      %719 = vmatprep.subr.mxu0 0.0
      %720 = vmatpush1.msra.mxu0 0.0
      %721 = vmatprep.subr.mxu0 0.0
      %722 = vmatpush1.msra.mxu0 0.0
      %723 = vmatprep.subr.mxu0 0.0
      %724 = vmatpush1.msra.mxu0 0.0
      %725 = vmatprep.subr.mxu0 0.0
      %726 = vmatpush1.msra.mxu0 0.0
      %727 = vmatprep.subr.mxu0 0.0
      %728 = vmatpush1.msra.mxu0 0.0
      %729 = vmatprep.subr.mxu0 0.0
      %730 = vmatpush1.msra.mxu0 0.0
      %731 = vmatprep.subr.mxu0 0.0
      %732 = vmatpush1.msra.mxu0 0.0
      %733 = vmatprep.subr.mxu0 0.0
      %734 = vmatpush1.msra.mxu0 0.0
      %735 = vmatprep.mubr.f32.mxu0 0.0
      %736 = vmatmul.mubr.f32.gmra.mrb[0].mxu0 %v660
      %v737 = vpop.f32.mrb[0].mxu0
      %v738 = vadd.f32 %v657, %v737
      %v739 = vpop.f32.mrb[0].mxu0
      %740 = vmatprep.mubr.f32.mxu0 0.0
      %741 = vmatmul.mubr.f32.gmra.mrb[0].mxu0 %v663
      %v742 = vpop.f32.mrb[0].mxu0
      %v743 = vadd.f32 %v657, %v742
      %v744 = vpop.f32.mrb[0].mxu0
      %745 = vmatprep.mubr.f32.mxu0 0.0
      %746 = vmatmul.mubr.f32.gmra.mrb[0].mxu0 %v666
      %v747 = vpop.f32.mrb[0].mxu0
      %v748 = vadd.f32 %v657, %v747
      %v749 = vpop.f32.mrb[0].mxu0
      %750 = vmatprep.mubr.f32.mxu0 0.0
      %751 = vmatmul.mubr.f32.gmra.mrb[0].mxu0 %v669
      %v752 = vpop.f32.mrb[0].mxu0
      %v753 = vadd.f32 %v657, %v752
      %v754 = vpop.f32.mrb[0].mxu0
      %755 = vdwg.mxu0
      %760 = vrot.lane.b32.xlu0 %v738, 96
      %v761 = vpop.permute.xlu0 %760
      %762 = vrot.lane.b32.xlu0 %v743, 96
      %v763 = vpop.permute.xlu0 %762
      %764 = vrot.lane.b32.xlu0 %v748, 96
      %v765 = vpop.permute.xlu0 %764
      %766 = vrot.lane.b32.xlu0 %v753, 96
      %v767 = vpop.permute.xlu0 %766
      %vm768 = vcmask 130048
      %v769 = vsel %vm768, %v738, 0
      %v771 = vsel %vm768, %v743, 0
      %v773 = vsel %vm768, %v748, 0
      %v775 = vsel %vm768, %v753, 0
      %v777 = vsel %vm768, %v761, 0
      %v779 = vsel %vm768, %v763, 0
      %v781 = vsel %vm768, %v765, 0
      %v783 = vsel %vm768, %v767, 0
      %785 = vmatprep.subr.mxu0 0.0
      %786 = vmatpush1.xpose.msra.mxu0 %v777
      %787 = vmatprep.subr.mxu0 0.0
      %788 = vmatpush1.xpose.msra.mxu0 %v779
      %789 = vmatprep.subr.mxu0 0.0
      %790 = vmatpush1.xpose.msra.mxu0 %v781
      %791 = vmatprep.subr.mxu0 0.0
      %792 = vmatpush1.xpose.msra.mxu0 %v783
      %793 = vmatprep.subr.mxu0 0.0
      %794 = vmatpush1.xpose.msra.mxu0 0.0
      %795 = vmatprep.subr.mxu0 0.0
      %796 = vmatpush1.xpose.msra.mxu0 0.0
      %797 = vmatprep.subr.mxu0 0.0
      %798 = vmatpush1.xpose.msra.mxu0 0.0
      %799 = vmatprep.subr.mxu0 0.0
      %800 = vmatpush1.xpose.msra.mxu0 0.0
      %801 = vmatprep.subr.mxu0 0.0
      %802 = vmatpush1.xpose.msra.mxu0 0.0
      %803 = vmatprep.subr.mxu0 0.0
      %804 = vmatpush1.xpose.msra.mxu0 0.0
      %805 = vmatprep.subr.mxu0 0.0
      %806 = vmatpush1.xpose.msra.mxu0 0.0
      %807 = vmatprep.subr.mxu0 0.0
      %808 = vmatpush1.xpose.msra.mxu0 0.0
      %809 = vmatprep.subr.mxu0 0.0
      %810 = vmatpush1.xpose.msra.mxu0 0.0
      %811 = vmatprep.subr.mxu0 0.0
      %812 = vmatpush1.xpose.msra.mxu0 0.0
      %813 = vmatprep.subr.mxu0 0.0
      %814 = vmatpush1.xpose.msra.mxu0 0.0
      %815 = vmatprep.subr.mxu0 0.0
      %816 = vmatpush1.xpose.msra.mxu0 0.0
      %817 = vmatprep.subr.mxu0 0.0
      %818 = vmatpush1.xpose.msra.mxu0 0.0
      %819 = vmatprep.subr.mxu0 0.0
      %820 = vmatpush1.xpose.msra.mxu0 0.0
      %821 = vmatprep.subr.mxu0 0.0
      %822 = vmatpush1.xpose.msra.mxu0 0.0
      %823 = vmatprep.subr.mxu0 0.0
      %824 = vmatpush1.xpose.msra.mxu0 0.0
      %825 = vmatprep.subr.mxu0 0.0
      %826 = vmatpush1.xpose.msra.mxu0 0.0
      %827 = vmatprep.subr.mxu0 0.0
      %828 = vmatpush1.xpose.msra.mxu0 0.0
      %829 = vmatprep.subr.mxu0 0.0
      %830 = vmatpush1.xpose.msra.mxu0 0.0
      %831 = vmatprep.subr.mxu0 0.0
      %832 = vmatpush1.xpose.msra.mxu0 0.0
      %833 = vmatprep.subr.mxu0 0.0
      %834 = vmatpush1.xpose.msra.mxu0 0.0
      %835 = vmatprep.subr.mxu0 0.0
      %836 = vmatpush1.xpose.msra.mxu0 0.0
      %837 = vmatprep.subr.mxu0 0.0
      %838 = vmatpush1.xpose.msra.mxu0 0.0
      %839 = vmatprep.subr.mxu0 0.0
      %840 = vmatpush1.xpose.msra.mxu0 0.0
      %841 = vmatprep.subr.mxu0 0.0
      %842 = vmatpush1.xpose.msra.mxu0 0.0
      %843 = vmatprep.subr.mxu0 0.0
      %844 = vmatpush1.xpose.msra.mxu0 0.0
      %845 = vmatprep.subr.mxu0 0.0
      %846 = vmatpush1.xpose.msra.mxu0 0.0
      %847 = vmatprep.subr.mxu0 0.0
      %848 = vmatpush1.xpose.msra.mxu0 0.0
      %849 = vmatprep.mubr.f32.mxu0 0.0
      %850 = vmatmul.mubr.f32.gmra.mrb[0].mxu0 %v769
      %v851 = vpop.f32.mrb[0].mxu0
      %v852 = vadd.f32 0.0, %v851
      %v853 = vpop.f32.mrb[0].mxu0
      %854 = vmatprep.mubr.f32.mxu0 0.0
      %855 = vmatmul.mubr.f32.gmra.mrb[0].mxu0 %v771
      %v856 = vpop.f32.mrb[0].mxu0
      %v857 = vadd.f32 0.0, %v856
      %v858 = vpop.f32.mrb[0].mxu0
      %859 = vmatprep.mubr.f32.mxu0 0.0
      %860 = vmatmul.mubr.f32.gmra.mrb[0].mxu0 %v773
      %v861 = vpop.f32.mrb[0].mxu0
      %v862 = vadd.f32 0.0, %v861
      %v863 = vpop.f32.mrb[0].mxu0
      %864 = vmatprep.mubr.f32.mxu0 0.0
      %865 = vmatmul.mubr.f32.gmra.mrb[0].mxu0 %v775
      %v866 = vpop.f32.mrb[0].mxu0
      %v867 = vadd.f32 0.0, %v866
      %v868 = vpop.f32.mrb[0].mxu0
      %869 = vdwg.mxu0
      %v870 = vmul.f32 %v852, 0.25
      %v871 = vmul.f32 %v857, 0.25
      %v872 = vmul.f32 %v862, 0.25
      %v873 = vmul.f32 %v867, 0.25
      %v874 = vadd.f32 %v870, %v569
      %v875 = vadd.f32 %v871, %v570
      %v876 = vadd.f32 %v872, %v571
      %v877 = vadd.f32 %v873, %v572
      %v878 = vsel %vm578, %v874, -inf
      %879 = vmax.xlane.f32.xlu0 %v878
      %v880 = vpop.xlane.xlu0 %879
      %v881 = vsel %vm578, %v875, -inf
      %882 = vmax.xlane.f32.xlu0 %v881
      %v883 = vpop.xlane.xlu0 %882
      %v884 = vsel %vm578, %v876, -inf
      %885 = vmax.xlane.f32.xlu0 %v884
      %v886 = vpop.xlane.xlu0 %885
      %v887 = vsel %vm578, %v877, -inf
      %888 = vmax.xlane.f32.xlu0 %v887
      %v889 = vpop.xlane.xlu0 %888
      %v890 = vsub.f32 %v874, %v880
      %v891 = vsub.f32 %v875, %v883
      %v892 = vsub.f32 %v876, %v886
      %v893 = vsub.f32 %v877, %v889
      %v894 = vmul.f32 %v890, 1.442695
      %v895 = vpow.pop %v894
      %v896 = vmul.f32 %v891, 1.442695
      %v897 = vpow.pop %v896
      %v898 = vmul.f32 %v892, 1.442695
      %v899 = vpow.pop %v898
      %v900 = vmul.f32 %v893, 1.442695
      %v901 = vpow.pop %v900
      %v902 = vsel %vm578, %v895, 0.0
      %903 = vadd.xlane.f32.xlu0 %v902
      %v904 = vpop.xlane.xlu0 %903
      %v905 = vsel %vm578, %v897, 0.0
      %906 = vadd.xlane.f32.xlu0 %v905
      %v907 = vpop.xlane.xlu0 %906
      %v908 = vsel %vm578, %v899, 0.0
      %909 = vadd.xlane.f32.xlu0 %v908
      %v910 = vpop.xlane.xlu0 %909
      %v911 = vsel %vm578, %v901, 0.0
      %912 = vadd.xlane.f32.xlu0 %v911
      %v913 = vpop.xlane.xlu0 %912
      %v914 = vrcp.pop %v904
      %v915 = vrcp.pop %v907
      %v916 = vrcp.pop %v910
      %v917 = vrcp.pop %v913
      %v918 = vmul.f32 %v895, %v914
      %v919 = vmul.f32 %v897, %v915
      %v920 = vmul.f32 %v899, %v916
      %v921 = vmul.f32 %v901, %v917
      %922 = vrot.lane.b32.xlu0 %v738, 64
      %v923 = vpop.permute.xlu0 %922
      %924 = vrot.lane.b32.xlu0 %v743, 64
      %v925 = vpop.permute.xlu0 %924
      %926 = vrot.lane.b32.xlu0 %v748, 64
      %v927 = vpop.permute.xlu0 %926
      %928 = vrot.lane.b32.xlu0 %v753, 64
      %v929 = vpop.permute.xlu0 %928
      %v935 = vsel %vm578, %v918, 0
      %v938 = vsel %vm578, %v919, 0
      %v941 = vsel %vm578, %v920, 0
      %v944 = vsel %vm578, %v921, 0
      %946 = vmatprep.subr.mxu0 0.0
      %947 = vmatpush1.msra.mxu0 %v923
      %948 = vmatprep.subr.mxu0 0.0
      %949 = vmatpush1.msra.mxu0 %v925
      %950 = vmatprep.subr.mxu0 0.0
      %951 = vmatpush1.msra.mxu0 %v927
      %952 = vmatprep.subr.mxu0 0.0
      %953 = vmatpush1.msra.mxu0 %v929
      %954 = vmatprep.subr.mxu0 0.0
      %955 = vmatpush1.msra.mxu0 0.0
      %956 = vmatprep.subr.mxu0 0.0
      %957 = vmatpush1.msra.mxu0 0.0
      %958 = vmatprep.subr.mxu0 0.0
      %959 = vmatpush1.msra.mxu0 0.0
      %960 = vmatprep.subr.mxu0 0.0
      %961 = vmatpush1.msra.mxu0 0.0
      %962 = vmatprep.subr.mxu0 0.0
      %963 = vmatpush1.msra.mxu0 0.0
      %964 = vmatprep.subr.mxu0 0.0
      %965 = vmatpush1.msra.mxu0 0.0
      %966 = vmatprep.subr.mxu0 0.0
      %967 = vmatpush1.msra.mxu0 0.0
      %968 = vmatprep.subr.mxu0 0.0
      %969 = vmatpush1.msra.mxu0 0.0
      %970 = vmatprep.subr.mxu0 0.0
      %971 = vmatpush1.msra.mxu0 0.0
      %972 = vmatprep.subr.mxu0 0.0
      %973 = vmatpush1.msra.mxu0 0.0
      %974 = vmatprep.subr.mxu0 0.0
      %975 = vmatpush1.msra.mxu0 0.0
      %976 = vmatprep.subr.mxu0 0.0
      %977 = vmatpush1.msra.mxu0 0.0
      %978 = vmatprep.subr.mxu0 0.0
      %979 = vmatpush1.msra.mxu0 0.0
      %980 = vmatprep.subr.mxu0 0.0
      %981 = vmatpush1.msra.mxu0 0.0
      %982 = vmatprep.subr.mxu0 0.0
      %983 = vmatpush1.msra.mxu0 0.0
      %984 = vmatprep.subr.mxu0 0.0
      %985 = vmatpush1.msra.mxu0 0.0
      %986 = vmatprep.subr.mxu0 0.0
      %987 = vmatpush1.msra.mxu0 0.0
      %988 = vmatprep.subr.mxu0 0.0
      %989 = vmatpush1.msra.mxu0 0.0
      %990 = vmatprep.subr.mxu0 0.0
      %991 = vmatpush1.msra.mxu0 0.0
      %992 = vmatprep.subr.mxu0 0.0
      %993 = vmatpush1.msra.mxu0 0.0
      %994 = vmatprep.subr.mxu0 0.0
      %995 = vmatpush1.msra.mxu0 0.0
      %996 = vmatprep.subr.mxu0 0.0
      %997 = vmatpush1.msra.mxu0 0.0
      %998 = vmatprep.subr.mxu0 0.0
      %999 = vmatpush1.msra.mxu0 0.0
      %1000 = vmatprep.subr.mxu0 0.0
      %1001 = vmatpush1.msra.mxu0 0.0
      %1002 = vmatprep.subr.mxu0 0.0
      %1003 = vmatpush1.msra.mxu0 0.0
      %1004 = vmatprep.subr.mxu0 0.0
      %1005 = vmatpush1.msra.mxu0 0.0
      %1006 = vmatprep.subr.mxu0 0.0
      %1007 = vmatpush1.msra.mxu0 0.0
      %1008 = vmatprep.subr.mxu0 0.0
      %1009 = vmatpush1.msra.mxu0 0.0
      %1010 = vmatprep.mubr.f32.mxu0 0.0
      %1011 = vmatmul.mubr.f32.gmra.mrb[0].mxu0 %v935
      %v1012 = vpop.f32.mrb[0].mxu0
      %v1013 = vadd.f32 0.0, %v1012
      %v1014 = vpop.f32.mrb[0].mxu0
      %1015 = vmatprep.mubr.f32.mxu0 0.0
      %1016 = vmatmul.mubr.f32.gmra.mrb[0].mxu0 %v938
      %v1017 = vpop.f32.mrb[0].mxu0
      %v1018 = vadd.f32 0.0, %v1017
      %v1019 = vpop.f32.mrb[0].mxu0
      %1020 = vmatprep.mubr.f32.mxu0 0.0
      %1021 = vmatmul.mubr.f32.gmra.mrb[0].mxu0 %v941
      %v1022 = vpop.f32.mrb[0].mxu0
      %v1023 = vadd.f32 0.0, %v1022
      %v1024 = vpop.f32.mrb[0].mxu0
      %1025 = vmatprep.mubr.f32.mxu0 0.0
      %1026 = vmatmul.mubr.f32.gmra.mrb[0].mxu0 %v944
      %v1027 = vpop.f32.mrb[0].mxu0
      %v1028 = vadd.f32 0.0, %v1027
      %v1029 = vpop.f32.mrb[0].mxu0
      %1030 = vdwg.mxu0
      %1031 = vst.msk [vmem:[#allocation2] sm:$0xff] %vm768, %v1013
      %1032 = vst.msk [vmem:[#allocation2 + $0x8] sm:$0xff] %vm768, %v1018
      %1033 = vst.msk [vmem:[#allocation2 + $0x10] sm:$0xff] %vm768, %v1023
      %1034 = vst.msk [vmem:[#allocation2 + $0x18] sm:$0xff] %vm768, %v1028
      %1035 = vrot.lane.b32.xlu0 %v738, 112
      %v1036 = vpop.permute.xlu0 %1035
      %1037 = vrot.lane.b32.xlu0 %v743, 112
      %v1038 = vpop.permute.xlu0 %1037
      %1039 = vrot.lane.b32.xlu0 %v748, 112
      %v1040 = vpop.permute.xlu0 %1039
      %1041 = vrot.lane.b32.xlu0 %v753, 112
      %v1042 = vpop.permute.xlu0 %1041
      %1043 = vrot.lane.b32.xlu0 %v738, 80
      %v1044 = vpop.permute.xlu0 %1043
      %1045 = vrot.lane.b32.xlu0 %v743, 80
      %v1046 = vpop.permute.xlu0 %1045
      %1047 = vrot.lane.b32.xlu0 %v748, 80
      %v1048 = vpop.permute.xlu0 %1047
      %1049 = vrot.lane.b32.xlu0 %v753, 80
      %v1050 = vpop.permute.xlu0 %1049
      %v1051 = vsel %vm768, %v1036, 0
      %v1053 = vsel %vm768, %v1038, 0
      %v1055 = vsel %vm768, %v1040, 0
      %v1057 = vsel %vm768, %v1042, 0
      %v1059 = vsel %vm768, %v1044, 0
      %v1061 = vsel %vm768, %v1046, 0
      %v1063 = vsel %vm768, %v1048, 0
      %v1065 = vsel %vm768, %v1050, 0
      %1067 = vmatprep.subr.mxu0 0.0
      %1068 = vmatpush1.xpose.msra.mxu0 %v1059
      %1069 = vmatprep.subr.mxu0 0.0
      %1070 = vmatpush1.xpose.msra.mxu0 %v1061
      %1071 = vmatprep.subr.mxu0 0.0
      %1072 = vmatpush1.xpose.msra.mxu0 %v1063
      %1073 = vmatprep.subr.mxu0 0.0
      %1074 = vmatpush1.xpose.msra.mxu0 %v1065
      %1075 = vmatprep.subr.mxu0 0.0
      %1076 = vmatpush1.xpose.msra.mxu0 0.0
      %1077 = vmatprep.subr.mxu0 0.0
      %1078 = vmatpush1.xpose.msra.mxu0 0.0
      %1079 = vmatprep.subr.mxu0 0.0
      %1080 = vmatpush1.xpose.msra.mxu0 0.0
      %1081 = vmatprep.subr.mxu0 0.0
      %1082 = vmatpush1.xpose.msra.mxu0 0.0
      %1083 = vmatprep.subr.mxu0 0.0
      %1084 = vmatpush1.xpose.msra.mxu0 0.0
      %1085 = vmatprep.subr.mxu0 0.0
      %1086 = vmatpush1.xpose.msra.mxu0 0.0
      %1087 = vmatprep.subr.mxu0 0.0
      %1088 = vmatpush1.xpose.msra.mxu0 0.0
      %1089 = vmatprep.subr.mxu0 0.0
      %1090 = vmatpush1.xpose.msra.mxu0 0.0
      %1091 = vmatprep.subr.mxu0 0.0
      %1092 = vmatpush1.xpose.msra.mxu0 0.0
      %1093 = vmatprep.subr.mxu0 0.0
      %1094 = vmatpush1.xpose.msra.mxu0 0.0
      %1095 = vmatprep.subr.mxu0 0.0
      %1096 = vmatpush1.xpose.msra.mxu0 0.0
      %1097 = vmatprep.subr.mxu0 0.0
      %1098 = vmatpush1.xpose.msra.mxu0 0.0
      %1099 = vmatprep.subr.mxu0 0.0
      %1100 = vmatpush1.xpose.msra.mxu0 0.0
      %1101 = vmatprep.subr.mxu0 0.0
      %1102 = vmatpush1.xpose.msra.mxu0 0.0
      %1103 = vmatprep.subr.mxu0 0.0
      %1104 = vmatpush1.xpose.msra.mxu0 0.0
      %1105 = vmatprep.subr.mxu0 0.0
      %1106 = vmatpush1.xpose.msra.mxu0 0.0
      %1107 = vmatprep.subr.mxu0 0.0
      %1108 = vmatpush1.xpose.msra.mxu0 0.0
      %1109 = vmatprep.subr.mxu0 0.0
      %1110 = vmatpush1.xpose.msra.mxu0 0.0
      %1111 = vmatprep.subr.mxu0 0.0
      %1112 = vmatpush1.xpose.msra.mxu0 0.0
      %1113 = vmatprep.subr.mxu0 0.0
      %1114 = vmatpush1.xpose.msra.mxu0 0.0
      %1115 = vmatprep.subr.mxu0 0.0
      %1116 = vmatpush1.xpose.msra.mxu0 0.0
      %1117 = vmatprep.subr.mxu0 0.0
      %1118 = vmatpush1.xpose.msra.mxu0 0.0
      %1119 = vmatprep.subr.mxu0 0.0
      %1120 = vmatpush1.xpose.msra.mxu0 0.0
      %1121 = vmatprep.subr.mxu0 0.0
      %1122 = vmatpush1.xpose.msra.mxu0 0.0
      %1123 = vmatprep.subr.mxu0 0.0
      %1124 = vmatpush1.xpose.msra.mxu0 0.0
      %1125 = vmatprep.subr.mxu0 0.0
      %1126 = vmatpush1.xpose.msra.mxu0 0.0
      %1127 = vmatprep.subr.mxu0 0.0
      %1128 = vmatpush1.xpose.msra.mxu0 0.0
      %1129 = vmatprep.subr.mxu0 0.0
      %1130 = vmatpush1.xpose.msra.mxu0 0.0
      %1131 = vmatprep.mubr.f32.mxu0 0.0
      %1132 = vmatmul.mubr.f32.gmra.mrb[0].mxu0 %v1051
      %v1133 = vpop.f32.mrb[0].mxu0
      %v1134 = vadd.f32 0.0, %v1133
      %v1135 = vpop.f32.mrb[0].mxu0
      %1136 = vmatprep.mubr.f32.mxu0 0.0
      %1137 = vmatmul.mubr.f32.gmra.mrb[0].mxu0 %v1053
      %v1138 = vpop.f32.mrb[0].mxu0
      %v1139 = vadd.f32 0.0, %v1138
      %v1140 = vpop.f32.mrb[0].mxu0
      %1141 = vmatprep.mubr.f32.mxu0 0.0
      %1142 = vmatmul.mubr.f32.gmra.mrb[0].mxu0 %v1055
      %v1143 = vpop.f32.mrb[0].mxu0
      %v1144 = vadd.f32 0.0, %v1143
      %v1145 = vpop.f32.mrb[0].mxu0
      %1146 = vmatprep.mubr.f32.mxu0 0.0
      %1147 = vmatmul.mubr.f32.gmra.mrb[0].mxu0 %v1057
      %v1148 = vpop.f32.mrb[0].mxu0
      %v1149 = vadd.f32 0.0, %v1148
      %v1150 = vpop.f32.mrb[0].mxu0
      %1151 = vdwg.mxu0
      %v1152 = vmul.f32 %v1134, 0.25
      %v1153 = vmul.f32 %v1139, 0.25
      %v1154 = vmul.f32 %v1144, 0.25
      %v1155 = vmul.f32 %v1149, 0.25
      %v1156 = vadd.f32 %v1152, %v569
      %v1157 = vadd.f32 %v1153, %v570
      %v1158 = vadd.f32 %v1154, %v571
      %v1159 = vadd.f32 %v1155, %v572
      %v1160 = vsel %vm578, %v1156, -inf
      %1161 = vmax.xlane.f32.xlu0 %v1160
      %v1162 = vpop.xlane.xlu0 %1161
      %v1163 = vsel %vm578, %v1157, -inf
      %1164 = vmax.xlane.f32.xlu0 %v1163
      %v1165 = vpop.xlane.xlu0 %1164
      %v1166 = vsel %vm578, %v1158, -inf
      %1167 = vmax.xlane.f32.xlu0 %v1166
      %v1168 = vpop.xlane.xlu0 %1167
      %v1169 = vsel %vm578, %v1159, -inf
      %1170 = vmax.xlane.f32.xlu0 %v1169
      %v1171 = vpop.xlane.xlu0 %1170
      %v1172 = vsub.f32 %v1156, %v1162
      %v1173 = vsub.f32 %v1157, %v1165
      %v1174 = vsub.f32 %v1158, %v1168
      %v1175 = vsub.f32 %v1159, %v1171
      %v1176 = vmul.f32 %v1172, 1.442695
      %v1177 = vpow.pop %v1176
      %v1178 = vmul.f32 %v1173, 1.442695
      %v1179 = vpow.pop %v1178
      %v1180 = vmul.f32 %v1174, 1.442695
      %v1181 = vpow.pop %v1180
      %v1182 = vmul.f32 %v1175, 1.442695
      %v1183 = vpow.pop %v1182
      %v1184 = vsel %vm578, %v1177, 0.0
      %1185 = vadd.xlane.f32.xlu0 %v1184
      %v1186 = vpop.xlane.xlu0 %1185
      %v1187 = vsel %vm578, %v1179, 0.0
      %1188 = vadd.xlane.f32.xlu0 %v1187
      %v1189 = vpop.xlane.xlu0 %1188
      %v1190 = vsel %vm578, %v1181, 0.0
      %1191 = vadd.xlane.f32.xlu0 %v1190
      %v1192 = vpop.xlane.xlu0 %1191
      %v1193 = vsel %vm578, %v1183, 0.0
      %1194 = vadd.xlane.f32.xlu0 %v1193
      %v1195 = vpop.xlane.xlu0 %1194
      %v1196 = vrcp.pop %v1186
      %v1197 = vrcp.pop %v1189
      %v1198 = vrcp.pop %v1192
      %v1199 = vrcp.pop %v1195
      %v1200 = vmul.f32 %v1177, %v1196
      %v1201 = vmul.f32 %v1179, %v1197
      %v1202 = vmul.f32 %v1181, %v1198
      %v1203 = vmul.f32 %v1183, %v1199
      %1204 = vrot.lane.b32.xlu0 %v738, 48
      %v1205 = vpop.permute.xlu0 %1204
      %1206 = vrot.lane.b32.xlu0 %v743, 48
      %v1207 = vpop.permute.xlu0 %1206
      %1208 = vrot.lane.b32.xlu0 %v748, 48
      %v1209 = vpop.permute.xlu0 %1208
      %1210 = vrot.lane.b32.xlu0 %v753, 48
      %v1211 = vpop.permute.xlu0 %1210
      %v1217 = vsel %vm578, %v1200, 0
      %v1220 = vsel %vm578, %v1201, 0
      %v1223 = vsel %vm578, %v1202, 0
      %v1226 = vsel %vm578, %v1203, 0
      %1228 = vmatprep.subr.mxu0 0.0
      %1229 = vmatpush1.msra.mxu0 %v1205
      %1230 = vmatprep.subr.mxu0 0.0
      %1231 = vmatpush1.msra.mxu0 %v1207
      %1232 = vmatprep.subr.mxu0 0.0
      %1233 = vmatpush1.msra.mxu0 %v1209
      %1234 = vmatprep.subr.mxu0 0.0
      %1235 = vmatpush1.msra.mxu0 %v1211
      %1236 = vmatprep.subr.mxu0 0.0
      %1237 = vmatpush1.msra.mxu0 0.0
      %1238 = vmatprep.subr.mxu0 0.0
      %1239 = vmatpush1.msra.mxu0 0.0
      %1240 = vmatprep.subr.mxu0 0.0
      %1241 = vmatpush1.msra.mxu0 0.0
      %1242 = vmatprep.subr.mxu0 0.0
      %1243 = vmatpush1.msra.mxu0 0.0
      %1244 = vmatprep.subr.mxu0 0.0
      %1245 = vmatpush1.msra.mxu0 0.0
      %1246 = vmatprep.subr.mxu0 0.0
      %1247 = vmatpush1.msra.mxu0 0.0
      %1248 = vmatprep.subr.mxu0 0.0
      %1249 = vmatpush1.msra.mxu0 0.0
      %1250 = vmatprep.subr.mxu0 0.0
      %1251 = vmatpush1.msra.mxu0 0.0
      %1252 = vmatprep.subr.mxu0 0.0
      %1253 = vmatpush1.msra.mxu0 0.0
      %1254 = vmatprep.subr.mxu0 0.0
      %1255 = vmatpush1.msra.mxu0 0.0
      %1256 = vmatprep.subr.mxu0 0.0
      %1257 = vmatpush1.msra.mxu0 0.0
      %1258 = vmatprep.subr.mxu0 0.0
      %1259 = vmatpush1.msra.mxu0 0.0
      %1260 = vmatprep.subr.mxu0 0.0
      %1261 = vmatpush1.msra.mxu0 0.0
      %1262 = vmatprep.subr.mxu0 0.0
      %1263 = vmatpush1.msra.mxu0 0.0
      %1264 = vmatprep.subr.mxu0 0.0
      %1265 = vmatpush1.msra.mxu0 0.0
      %1266 = vmatprep.subr.mxu0 0.0
      %1267 = vmatpush1.msra.mxu0 0.0
      %1268 = vmatprep.subr.mxu0 0.0
      %1269 = vmatpush1.msra.mxu0 0.0
      %1270 = vmatprep.subr.mxu0 0.0
      %1271 = vmatpush1.msra.mxu0 0.0
      %1272 = vmatprep.subr.mxu0 0.0
      %1273 = vmatpush1.msra.mxu0 0.0
      %1274 = vmatprep.subr.mxu0 0.0
      %1275 = vmatpush1.msra.mxu0 0.0
      %1276 = vmatprep.subr.mxu0 0.0
      %1277 = vmatpush1.msra.mxu0 0.0
      %1278 = vmatprep.subr.mxu0 0.0
      %1279 = vmatpush1.msra.mxu0 0.0
      %1280 = vmatprep.subr.mxu0 0.0
      %1281 = vmatpush1.msra.mxu0 0.0
      %1282 = vmatprep.subr.mxu0 0.0
      %1283 = vmatpush1.msra.mxu0 0.0
      %1284 = vmatprep.subr.mxu0 0.0
      %1285 = vmatpush1.msra.mxu0 0.0
      %1286 = vmatprep.subr.mxu0 0.0
      %1287 = vmatpush1.msra.mxu0 0.0
      %1288 = vmatprep.subr.mxu0 0.0
      %1289 = vmatpush1.msra.mxu0 0.0
      %1290 = vmatprep.subr.mxu0 0.0
      %1291 = vmatpush1.msra.mxu0 0.0
      %1292 = vmatprep.mubr.f32.mxu0 0.0
      %1293 = vmatmul.mubr.f32.gmra.mrb[0].mxu0 %v1217
      %v1294 = vpop.f32.mrb[0].mxu0
      %v1295 = vadd.f32 0.0, %v1294
      %v1296 = vpop.f32.mrb[0].mxu0
      %1297 = vmatprep.mubr.f32.mxu0 0.0
      %1298 = vmatmul.mubr.f32.gmra.mrb[0].mxu0 %v1220
      %v1299 = vpop.f32.mrb[0].mxu0
      %v1300 = vadd.f32 0.0, %v1299
      %v1301 = vpop.f32.mrb[0].mxu0
      %1302 = vmatprep.mubr.f32.mxu0 0.0
      %1303 = vmatmul.mubr.f32.gmra.mrb[0].mxu0 %v1223
      %v1304 = vpop.f32.mrb[0].mxu0
      %v1305 = vadd.f32 0.0, %v1304
      %v1306 = vpop.f32.mrb[0].mxu0
      %1307 = vmatprep.mubr.f32.mxu0 0.0
      %1308 = vmatmul.mubr.f32.gmra.mrb[0].mxu0 %v1226
      %v1309 = vpop.f32.mrb[0].mxu0
      %v1310 = vadd.f32 0.0, %v1309
      %v1311 = vpop.f32.mrb[0].mxu0
      %1312 = vdwg.mxu0
      %1317 = vrot.lane.b32.xlu0 %v1295, 16
      %v1318 = vpop.permute.xlu0 %1317
      %1319 = vrot.lane.b32.xlu0 %v1300, 16
      %v1320 = vpop.permute.xlu0 %1319
      %1321 = vrot.lane.b32.xlu0 %v1305, 16
      %v1322 = vpop.permute.xlu0 %1321
      %1323 = vrot.lane.b32.xlu0 %v1310, 16
      %v1324 = vpop.permute.xlu0 %1323
      %vm1329 = vcmask 261248
      %1330 = vst.msk [vmem:[#allocation2] sm:$0xff] %vm1329, %v1318
      %1331 = vst.msk [vmem:[#allocation2 + $0x8] sm:$0xff] %vm1329, %v1320
      %1332 = vst.msk [vmem:[#allocation2 + $0x10] sm:$0xff] %vm1329, %v1322
      %1333 = vst.msk [vmem:[#allocation2 + $0x18] sm:$0xff] %vm1329, %v1324
      %v1334 = vld [vmem:[#allocation2] sm:$0xff]
      %v1335 = vld [vmem:[#allocation2 + $0x8] sm:$0xff]
      %v1336 = vld [vmem:[#allocation2 + $0x10] sm:$0xff]
      %v1337 = vld [vmem:[#allocation2 + $0x18] sm:$0xff]
      %v1338 = vld [vmem:[%s5] sm:$0xff]
      %v1339 = vld [vmem:[%s5 + $0x8] sm:$0xff]
      %v1340 = vld [vmem:[%s5 + $0x10] sm:$0xff]
      %v1341 = vld [vmem:[%s5 + $0x18] sm:$0xff]
      %v1342 = vld [vmem:[%s6] sm:$0x1]
      %v1344 = vlaneseq
      %v1345 = vshrl.u32 %v1344, 7
      %v1346 = vsub.s32 0, %v1345
      %v1347 = vrot.slane %v1342, %v1346
      %v1350 = vsel %vm578, %v1334, 0
      %v1353 = vsel %vm578, %v1335, 0
      %v1356 = vsel %vm578, %v1336, 0
      %v1359 = vsel %vm578, %v1337, 0
      %1361 = vmatprep.subr.mxu0 0.0
      %1362 = vmatpush1.msra.mxu0 %v1338
      %1363 = vmatprep.subr.mxu0 0.0
      %1364 = vmatpush1.msra.mxu0 %v1339
      %1365 = vmatprep.subr.mxu0 0.0
      %1366 = vmatpush1.msra.mxu0 %v1340
      %1367 = vmatprep.subr.mxu0 0.0
      %1368 = vmatpush1.msra.mxu0 %v1341
      %1369 = vmatprep.subr.mxu0 0.0
      %1370 = vmatpush1.msra.mxu0 0.0
      %1371 = vmatprep.subr.mxu0 0.0
      %1372 = vmatpush1.msra.mxu0 0.0
      %1373 = vmatprep.subr.mxu0 0.0
      %1374 = vmatpush1.msra.mxu0 0.0
      %1375 = vmatprep.subr.mxu0 0.0
      %1376 = vmatpush1.msra.mxu0 0.0
      %1377 = vmatprep.subr.mxu0 0.0
      %1378 = vmatpush1.msra.mxu0 0.0
      %1379 = vmatprep.subr.mxu0 0.0
      %1380 = vmatpush1.msra.mxu0 0.0
      %1381 = vmatprep.subr.mxu0 0.0
      %1382 = vmatpush1.msra.mxu0 0.0
      %1383 = vmatprep.subr.mxu0 0.0
      %1384 = vmatpush1.msra.mxu0 0.0
      %1385 = vmatprep.subr.mxu0 0.0
      %1386 = vmatpush1.msra.mxu0 0.0
      %1387 = vmatprep.subr.mxu0 0.0
      %1388 = vmatpush1.msra.mxu0 0.0
      %1389 = vmatprep.subr.mxu0 0.0
      %1390 = vmatpush1.msra.mxu0 0.0
      %1391 = vmatprep.subr.mxu0 0.0
      %1392 = vmatpush1.msra.mxu0 0.0
      %1393 = vmatprep.subr.mxu0 0.0
      %1394 = vmatpush1.msra.mxu0 0.0
      %1395 = vmatprep.subr.mxu0 0.0
      %1396 = vmatpush1.msra.mxu0 0.0
      %1397 = vmatprep.subr.mxu0 0.0
      %1398 = vmatpush1.msra.mxu0 0.0
      %1399 = vmatprep.subr.mxu0 0.0
      %1400 = vmatpush1.msra.mxu0 0.0
      %1401 = vmatprep.subr.mxu0 0.0
      %1402 = vmatpush1.msra.mxu0 0.0
      %1403 = vmatprep.subr.mxu0 0.0
      %1404 = vmatpush1.msra.mxu0 0.0
      %1405 = vmatprep.subr.mxu0 0.0
      %1406 = vmatpush1.msra.mxu0 0.0
      %1407 = vmatprep.subr.mxu0 0.0
      %1408 = vmatpush1.msra.mxu0 0.0
      %1409 = vmatprep.subr.mxu0 0.0
      %1410 = vmatpush1.msra.mxu0 0.0
      %1411 = vmatprep.subr.mxu0 0.0
      %1412 = vmatpush1.msra.mxu0 0.0
      %1413 = vmatprep.subr.mxu0 0.0
      %1414 = vmatpush1.msra.mxu0 0.0
      %1415 = vmatprep.subr.mxu0 0.0
      %1416 = vmatpush1.msra.mxu0 0.0
      %1417 = vmatprep.subr.mxu0 0.0
      %1418 = vmatpush1.msra.mxu0 0.0
      %1419 = vmatprep.subr.mxu0 0.0
      %1420 = vmatpush1.msra.mxu0 0.0
      %1421 = vmatprep.subr.mxu0 0.0
      %1422 = vmatpush1.msra.mxu0 0.0
      %1423 = vmatprep.subr.mxu0 0.0
      %1424 = vmatpush1.msra.mxu0 0.0
      %1425 = vmatprep.mubr.f32.mxu0 0.0
      %1426 = vmatmul.mubr.f32.gmra.mrb[0].mxu0 %v1350
      %v1427 = vpop.f32.mrb[0].mxu0
      %v1428 = vadd.f32 %v1347, %v1427
      %v1429 = vpop.f32.mrb[0].mxu0
      %1430 = vmatprep.mubr.f32.mxu0 0.0
      %1431 = vmatmul.mubr.f32.gmra.mrb[0].mxu0 %v1353
      %v1432 = vpop.f32.mrb[0].mxu0
      %v1433 = vadd.f32 %v1347, %v1432
      %v1434 = vpop.f32.mrb[0].mxu0
      %1435 = vmatprep.mubr.f32.mxu0 0.0
      %1436 = vmatmul.mubr.f32.gmra.mrb[0].mxu0 %v1356
      %v1437 = vpop.f32.mrb[0].mxu0
      %v1438 = vadd.f32 %v1347, %v1437
      %v1439 = vpop.f32.mrb[0].mxu0
      %1440 = vmatprep.mubr.f32.mxu0 0.0
      %1441 = vmatmul.mubr.f32.gmra.mrb[0].mxu0 %v1359
      %v1442 = vpop.f32.mrb[0].mxu0
      %v1443 = vadd.f32 %v1347, %v1442
      %v1444 = vpop.f32.mrb[0].mxu0
      %1445 = vdwg.mxu0
      %v1446 = vadd.f32 %v1428, %v644
      %v1447 = vadd.f32 %v1433, %v645
      %v1448 = vadd.f32 %v1438, %v646
      %v1449 = vadd.f32 %v1443, %v647
      %v1450 = vld [vmem:[%s7] sm:$0x3]
      %v1451 = vsel %vm578, %v1446, 0.0
      %1452 = vadd.xlane.f32.xlu0 %v1451
      %v1453 = vpop.xlane.xlu0 %1452
      %v1454 = vsel %vm578, %v1447, 0.0
      %1455 = vadd.xlane.f32.xlu0 %v1454
      %v1456 = vpop.xlane.xlu0 %1455
      %v1457 = vsel %vm578, %v1448, 0.0
      %1458 = vadd.xlane.f32.xlu0 %v1457
      %v1459 = vpop.xlane.xlu0 %1458
      %v1460 = vsel %vm578, %v1449, 0.0
      %1461 = vadd.xlane.f32.xlu0 %v1460
      %v1462 = vpop.xlane.xlu0 %1461
      %v1463 = vmul.f32 %v1453, %v591
      %v1464 = vmul.f32 %v1456, %v591
      %v1465 = vmul.f32 %v1459, %v591
      %v1466 = vmul.f32 %v1462, %v591
      %v1467 = vsub.f32 %v1446, %v1463
      %v1468 = vsub.f32 %v1447, %v1464
      %v1469 = vsub.f32 %v1448, %v1465
      %v1470 = vsub.f32 %v1449, %v1466
      %v1471 = vmul.f32 %v1467, %v1467
      %v1472 = vmul.f32 %v1468, %v1468
      %v1473 = vmul.f32 %v1469, %v1469
      %v1474 = vmul.f32 %v1470, %v1470
      %v1475 = vsel %vm578, %v1471, 0.0
      %1476 = vadd.xlane.f32.xlu0 %v1475
      %v1477 = vpop.xlane.xlu0 %1476
      %v1478 = vsel %vm578, %v1472, 0.0
      %1479 = vadd.xlane.f32.xlu0 %v1478
      %v1480 = vpop.xlane.xlu0 %1479
      %v1481 = vsel %vm578, %v1473, 0.0
      %1482 = vadd.xlane.f32.xlu0 %v1481
      %v1483 = vpop.xlane.xlu0 %1482
      %v1484 = vsel %vm578, %v1474, 0.0
      %1485 = vadd.xlane.f32.xlu0 %v1484
      %v1486 = vpop.xlane.xlu0 %1485
      %v1487 = vmul.f32 %v1477, %v591
      %v1488 = vmul.f32 %v1480, %v591
      %v1489 = vmul.f32 %v1483, %v591
      %v1490 = vmul.f32 %v1486, %v591
      %v1491 = vadd.f32 %v1487, 1e-12
      %v1492 = vadd.f32 %v1488, 1e-12
      %v1493 = vadd.f32 %v1489, 1e-12
      %v1494 = vadd.f32 %v1490, 1e-12
      %v1495 = vrsqrt.pop %v1491
      %v1496 = vrsqrt.pop %v1492
      %v1497 = vrsqrt.pop %v1493
      %v1498 = vrsqrt.pop %v1494
      %v1499 = vmul.f32 %v1467, %v1495
      %v1500 = vmul.f32 %v1468, %v1496
      %v1501 = vmul.f32 %v1469, %v1497
      %v1502 = vmul.f32 %v1470, %v1498
      %v1503 = vlaneseq
      %v1504 = vshrl.u32 %v1503, 7
      %v1505 = vsub.s32 0, %v1504
      %v1506 = vrot.slane %v1450, %v1505
      %v1507 = vmul.f32 %v1499, %v1506
      %v1508 = vmul.f32 %v1500, %v1506
      %v1509 = vmul.f32 %v1501, %v1506
      %v1510 = vmul.f32 %v1502, %v1506
      %v1511 = vlaneseq
      %v1512 = vshrl.u32 %v1511, 7
      %v1513 = vsub.s32 1, %v1512
      %v1514 = vrot.slane %v1450, %v1513
      %v1515 = vadd.f32 %v1507, %v1514
      %v1516 = vadd.f32 %v1508, %v1514
      %v1517 = vadd.f32 %v1509, %v1514
      %v1518 = vadd.f32 %v1510, %v1514
      %v1519 = vld [vmem:[%s8] sm:$0xff]
      %v1520 = vld [vmem:[%s8 + $0x8] sm:$0xff]
      %v1521 = vld [vmem:[%s8 + $0x10] sm:$0xff]
      %v1522 = vld [vmem:[%s8 + $0x18] sm:$0xff]
      %v1523 = vld [vmem:[%s9] sm:$0x1]
      %v1525 = vlaneseq
      %v1526 = vshrl.u32 %v1525, 7
      %v1527 = vsub.s32 0, %v1526
      %v1528 = vrot.slane %v1523, %v1527
      %v1531 = vsel %vm578, %v1515, 0
      %v1534 = vsel %vm578, %v1516, 0
      %v1537 = vsel %vm578, %v1517, 0
      %v1540 = vsel %vm578, %v1518, 0
      %1542 = vmatprep.subr.mxu0 0.0
      %1543 = vmatpush1.msra.mxu0 %v1519
      %1544 = vmatprep.subr.mxu0 0.0
      %1545 = vmatpush1.msra.mxu0 %v1520
      %1546 = vmatprep.subr.mxu0 0.0
      %1547 = vmatpush1.msra.mxu0 %v1521
      %1548 = vmatprep.subr.mxu0 0.0
      %1549 = vmatpush1.msra.mxu0 %v1522
      %1550 = vmatprep.subr.mxu0 0.0
      %1551 = vmatpush1.msra.mxu0 0.0
      %1552 = vmatprep.subr.mxu0 0.0
      %1553 = vmatpush1.msra.mxu0 0.0
      %1554 = vmatprep.subr.mxu0 0.0
      %1555 = vmatpush1.msra.mxu0 0.0
      %1556 = vmatprep.subr.mxu0 0.0
      %1557 = vmatpush1.msra.mxu0 0.0
      %1558 = vmatprep.subr.mxu0 0.0
      %1559 = vmatpush1.msra.mxu0 0.0
      %1560 = vmatprep.subr.mxu0 0.0
      %1561 = vmatpush1.msra.mxu0 0.0
      %1562 = vmatprep.subr.mxu0 0.0
      %1563 = vmatpush1.msra.mxu0 0.0
      %1564 = vmatprep.subr.mxu0 0.0
      %1565 = vmatpush1.msra.mxu0 0.0
      %1566 = vmatprep.subr.mxu0 0.0
      %1567 = vmatpush1.msra.mxu0 0.0
      %1568 = vmatprep.subr.mxu0 0.0
      %1569 = vmatpush1.msra.mxu0 0.0
      %1570 = vmatprep.subr.mxu0 0.0
      %1571 = vmatpush1.msra.mxu0 0.0
      %1572 = vmatprep.subr.mxu0 0.0
      %1573 = vmatpush1.msra.mxu0 0.0
      %1574 = vmatprep.subr.mxu0 0.0
      %1575 = vmatpush1.msra.mxu0 0.0
      %1576 = vmatprep.subr.mxu0 0.0
      %1577 = vmatpush1.msra.mxu0 0.0
      %1578 = vmatprep.subr.mxu0 0.0
      %1579 = vmatpush1.msra.mxu0 0.0
      %1580 = vmatprep.subr.mxu0 0.0
      %1581 = vmatpush1.msra.mxu0 0.0
      %1582 = vmatprep.subr.mxu0 0.0
      %1583 = vmatpush1.msra.mxu0 0.0
      %1584 = vmatprep.subr.mxu0 0.0
      %1585 = vmatpush1.msra.mxu0 0.0
      %1586 = vmatprep.subr.mxu0 0.0
      %1587 = vmatpush1.msra.mxu0 0.0
      %1588 = vmatprep.subr.mxu0 0.0
      %1589 = vmatpush1.msra.mxu0 0.0
      %1590 = vmatprep.subr.mxu0 0.0
      %1591 = vmatpush1.msra.mxu0 0.0
      %1592 = vmatprep.subr.mxu0 0.0
      %1593 = vmatpush1.msra.mxu0 0.0
      %1594 = vmatprep.subr.mxu0 0.0
      %1595 = vmatpush1.msra.mxu0 0.0
      %1596 = vmatprep.subr.mxu0 0.0
      %1597 = vmatpush1.msra.mxu0 0.0
      %1598 = vmatprep.subr.mxu0 0.0
      %1599 = vmatpush1.msra.mxu0 0.0
      %1600 = vmatprep.subr.mxu0 0.0
      %1601 = vmatpush1.msra.mxu0 0.0
      %1602 = vmatprep.subr.mxu0 0.0
      %1603 = vmatpush1.msra.mxu0 0.0
      %1604 = vmatprep.subr.mxu0 0.0
      %1605 = vmatpush1.msra.mxu0 0.0
      %1606 = vmatprep.mubr.f32.mxu0 0.0
      %1607 = vmatmul.mubr.f32.gmra.mrb[0].mxu0 %v1531
      %v1608 = vpop.f32.mrb[0].mxu0
      %v1609 = vadd.f32 %v1528, %v1608
      %v1610 = vpop.f32.mrb[0].mxu0
      %1611 = vmatprep.mubr.f32.mxu0 0.0
      %1612 = vmatmul.mubr.f32.gmra.mrb[0].mxu0 %v1534
      %v1613 = vpop.f32.mrb[0].mxu0
      %v1614 = vadd.f32 %v1528, %v1613
      %v1615 = vpop.f32.mrb[0].mxu0
      %1616 = vmatprep.mubr.f32.mxu0 0.0
      %1617 = vmatmul.mubr.f32.gmra.mrb[0].mxu0 %v1537
      %v1618 = vpop.f32.mrb[0].mxu0
      %v1619 = vadd.f32 %v1528, %v1618
      %v1620 = vpop.f32.mrb[0].mxu0
      %1621 = vmatprep.mubr.f32.mxu0 0.0
      %1622 = vmatmul.mubr.f32.gmra.mrb[0].mxu0 %v1540
      %v1623 = vpop.f32.mrb[0].mxu0
      %v1624 = vadd.f32 %v1528, %v1623
      %v1625 = vpop.f32.mrb[0].mxu0
      %1626 = vdwg.mxu0
      %v1627 = vmul.f32 %v1609, 0.5
      %v1628 = vmul.f32 %v1614, 0.5
      %v1629 = vmul.f32 %v1619, 0.5
      %v1630 = vmul.f32 %v1624, 0.5
      %v1631 = vmul.f32 %v1609, 0.70710677
      %v1632 = vmul.f32 %v1614, 0.70710677
      %v1633 = vmul.f32 %v1619, 0.70710677
      %v1634 = vmul.f32 %v1624, 0.70710677
      %v1635 = verf.f32.pop %v1631
      %v1636 = verf.f32.pop %v1632
      %v1637 = verf.f32.pop %v1633
      %v1638 = verf.f32.pop %v1634
      %v1639 = vadd.f32 %v1635, 1.0
      %v1640 = vadd.f32 %v1636, 1.0
      %v1641 = vadd.f32 %v1637, 1.0
      %v1642 = vadd.f32 %v1638, 1.0
      %v1643 = vmul.f32 %v1627, %v1639
      %v1644 = vmul.f32 %v1628, %v1640
      %v1645 = vmul.f32 %v1629, %v1641
      %v1646 = vmul.f32 %v1630, %v1642
      %v1647 = vld [vmem:[%s10] sm:$0xff]
      %v1648 = vld [vmem:[%s10 + $0x8] sm:$0xff]
      %v1649 = vld [vmem:[%s10 + $0x10] sm:$0xff]
      %v1650 = vld [vmem:[%s10 + $0x18] sm:$0xff]
      %v1651 = vld [vmem:[%s10 + $0x20] sm:$0xff]
      %v1652 = vld [vmem:[%s10 + $0x28] sm:$0xff]
      %v1653 = vld [vmem:[%s10 + $0x30] sm:$0xff]
      %v1654 = vld [vmem:[%s10 + $0x38] sm:$0xff]
      %v1655 = vld [vmem:[%s11] sm:$0x1]
      %v1657 = vlaneseq
      %v1658 = vshrl.u32 %v1657, 7
      %v1659 = vsub.s32 0, %v1658
      %v1660 = vrot.slane %v1655, %v1659
      %vm1662 = vcmask 523264
      %v1664 = vsel %vm1662, %v1643, 0
      %v1667 = vsel %vm1662, %v1644, 0
      %v1670 = vsel %vm1662, %v1645, 0
      %v1673 = vsel %vm1662, %v1646, 0
      %1675 = vmatprep.subr.mxu0 0.0
      %1676 = vmatpush1.msra.mxu0 %v1647
      %1677 = vmatprep.subr.mxu0 0.0
      %1678 = vmatpush1.msra.mxu0 %v1648
      %1679 = vmatprep.subr.mxu0 0.0
      %1680 = vmatpush1.msra.mxu0 %v1649
      %1681 = vmatprep.subr.mxu0 0.0
      %1682 = vmatpush1.msra.mxu0 %v1650
      %1683 = vmatprep.subr.mxu0 0.0
      %1684 = vmatpush1.msra.mxu0 %v1651
      %1685 = vmatprep.subr.mxu0 0.0
      %1686 = vmatpush1.msra.mxu0 %v1652
      %1687 = vmatprep.subr.mxu0 0.0
      %1688 = vmatpush1.msra.mxu0 %v1653
      %1689 = vmatprep.subr.mxu0 0.0
      %1690 = vmatpush1.msra.mxu0 %v1654
      %1691 = vmatprep.subr.mxu0 0.0
      %1692 = vmatpush1.msra.mxu0 0.0
      %1693 = vmatprep.subr.mxu0 0.0
      %1694 = vmatpush1.msra.mxu0 0.0
      %1695 = vmatprep.subr.mxu0 0.0
      %1696 = vmatpush1.msra.mxu0 0.0
      %1697 = vmatprep.subr.mxu0 0.0
      %1698 = vmatpush1.msra.mxu0 0.0
      %1699 = vmatprep.subr.mxu0 0.0
      %1700 = vmatpush1.msra.mxu0 0.0
      %1701 = vmatprep.subr.mxu0 0.0
      %1702 = vmatpush1.msra.mxu0 0.0
      %1703 = vmatprep.subr.mxu0 0.0
      %1704 = vmatpush1.msra.mxu0 0.0
      %1705 = vmatprep.subr.mxu0 0.0
      %1706 = vmatpush1.msra.mxu0 0.0
      %1707 = vmatprep.subr.mxu0 0.0
      %1708 = vmatpush1.msra.mxu0 0.0
      %1709 = vmatprep.subr.mxu0 0.0
      %1710 = vmatpush1.msra.mxu0 0.0
      %1711 = vmatprep.subr.mxu0 0.0
      %1712 = vmatpush1.msra.mxu0 0.0
      %1713 = vmatprep.subr.mxu0 0.0
      %1714 = vmatpush1.msra.mxu0 0.0
      %1715 = vmatprep.subr.mxu0 0.0
      %1716 = vmatpush1.msra.mxu0 0.0
      %1717 = vmatprep.subr.mxu0 0.0
      %1718 = vmatpush1.msra.mxu0 0.0
      %1719 = vmatprep.subr.mxu0 0.0
      %1720 = vmatpush1.msra.mxu0 0.0
      %1721 = vmatprep.subr.mxu0 0.0
      %1722 = vmatpush1.msra.mxu0 0.0
      %1723 = vmatprep.subr.mxu0 0.0
      %1724 = vmatpush1.msra.mxu0 0.0
      %1725 = vmatprep.subr.mxu0 0.0
      %1726 = vmatpush1.msra.mxu0 0.0
      %1727 = vmatprep.subr.mxu0 0.0
      %1728 = vmatpush1.msra.mxu0 0.0
      %1729 = vmatprep.subr.mxu0 0.0
      %1730 = vmatpush1.msra.mxu0 0.0
      %1731 = vmatprep.subr.mxu0 0.0
      %1732 = vmatpush1.msra.mxu0 0.0
      %1733 = vmatprep.subr.mxu0 0.0
      %1734 = vmatpush1.msra.mxu0 0.0
      %1735 = vmatprep.subr.mxu0 0.0
      %1736 = vmatpush1.msra.mxu0 0.0
      %1737 = vmatprep.subr.mxu0 0.0
      %1738 = vmatpush1.msra.mxu0 0.0
      %1739 = vmatprep.mubr.f32.mxu0 0.0
      %1740 = vmatmul.mubr.f32.gmra.mrb[0].mxu0 %v1664
      %v1741 = vpop.f32.mrb[0].mxu0
      %v1742 = vadd.f32 %v1660, %v1741
      %v1743 = vpop.f32.mrb[0].mxu0
      %1744 = vmatprep.mubr.f32.mxu0 0.0
      %1745 = vmatmul.mubr.f32.gmra.mrb[0].mxu0 %v1667
      %v1746 = vpop.f32.mrb[0].mxu0
      %v1747 = vadd.f32 %v1660, %v1746
      %v1748 = vpop.f32.mrb[0].mxu0
      %1749 = vmatprep.mubr.f32.mxu0 0.0
      %1750 = vmatmul.mubr.f32.gmra.mrb[0].mxu0 %v1670
      %v1751 = vpop.f32.mrb[0].mxu0
      %v1752 = vadd.f32 %v1660, %v1751
      %v1753 = vpop.f32.mrb[0].mxu0
      %1754 = vmatprep.mubr.f32.mxu0 0.0
      %1755 = vmatmul.mubr.f32.gmra.mrb[0].mxu0 %v1673
      %v1756 = vpop.f32.mrb[0].mxu0
      %v1757 = vadd.f32 %v1660, %v1756
      %v1758 = vpop.f32.mrb[0].mxu0
      %1759 = vdwg.mxu0
      %v1760 = vadd.f32 %v1742, %v1515
      %v1761 = vadd.f32 %v1747, %v1516
      %v1762 = vadd.f32 %v1752, %v1517
      %v1763 = vadd.f32 %v1757, %v1518
      %v1764 = vld [vmem:[%s12] sm:$0x3]
      %v1765 = vsel %vm578, %v1760, 0.0
      %1766 = vadd.xlane.f32.xlu0 %v1765
      %v1767 = vpop.xlane.xlu0 %1766
      %v1768 = vsel %vm578, %v1761, 0.0
      %1769 = vadd.xlane.f32.xlu0 %v1768
      %v1770 = vpop.xlane.xlu0 %1769
      %v1771 = vsel %vm578, %v1762, 0.0
      %1772 = vadd.xlane.f32.xlu0 %v1771
      %v1773 = vpop.xlane.xlu0 %1772
      %v1774 = vsel %vm578, %v1763, 0.0
      %1775 = vadd.xlane.f32.xlu0 %v1774
      %v1776 = vpop.xlane.xlu0 %1775
      %v1777 = vmul.f32 %v1767, %v591
      %v1778 = vmul.f32 %v1770, %v591
      %v1779 = vmul.f32 %v1773, %v591
      %v1780 = vmul.f32 %v1776, %v591
      %v1781 = vsub.f32 %v1760, %v1777
      %v1782 = vsub.f32 %v1761, %v1778
      %v1783 = vsub.f32 %v1762, %v1779
      %v1784 = vsub.f32 %v1763, %v1780
      %v1785 = vmul.f32 %v1781, %v1781
      %v1786 = vmul.f32 %v1782, %v1782
      %v1787 = vmul.f32 %v1783, %v1783
      %v1788 = vmul.f32 %v1784, %v1784
      %v1789 = vsel %vm578, %v1785, 0.0
      %1790 = vadd.xlane.f32.xlu0 %v1789
      %v1791 = vpop.xlane.xlu0 %1790
      %v1792 = vsel %vm578, %v1786, 0.0
      %1793 = vadd.xlane.f32.xlu0 %v1792
      %v1794 = vpop.xlane.xlu0 %1793
      %v1795 = vsel %vm578, %v1787, 0.0
      %1796 = vadd.xlane.f32.xlu0 %v1795
      %v1797 = vpop.xlane.xlu0 %1796
      %v1798 = vsel %vm578, %v1788, 0.0
      %1799 = vadd.xlane.f32.xlu0 %v1798
      %v1800 = vpop.xlane.xlu0 %1799
      %v1801 = vmul.f32 %v1791, %v591
      %v1802 = vmul.f32 %v1794, %v591
      %v1803 = vmul.f32 %v1797, %v591
      %v1804 = vmul.f32 %v1800, %v591
      %v1805 = vadd.f32 %v1801, 1e-12
      %v1806 = vadd.f32 %v1802, 1e-12
      %v1807 = vadd.f32 %v1803, 1e-12
      %v1808 = vadd.f32 %v1804, 1e-12
      %v1809 = vrsqrt.pop %v1805
      %v1810 = vrsqrt.pop %v1806
      %v1811 = vrsqrt.pop %v1807
      %v1812 = vrsqrt.pop %v1808
      %v1813 = vmul.f32 %v1781, %v1809
      %v1814 = vmul.f32 %v1782, %v1810
      %v1815 = vmul.f32 %v1783, %v1811
      %v1816 = vmul.f32 %v1784, %v1812
      %v1817 = vlaneseq
      %v1818 = vshrl.u32 %v1817, 7
      %v1819 = vsub.s32 0, %v1818
      %v1820 = vrot.slane %v1764, %v1819
      %v1821 = vmul.f32 %v1813, %v1820
      %v1822 = vmul.f32 %v1814, %v1820
      %v1823 = vmul.f32 %v1815, %v1820
      %v1824 = vmul.f32 %v1816, %v1820
      %v1825 = vlaneseq
      %v1826 = vshrl.u32 %v1825, 7
      %v1827 = vsub.s32 1, %v1826
      %v1828 = vrot.slane %v1764, %v1827
      %v1829 = vadd.f32 %v1821, %v1828
      %v1830 = vadd.f32 %v1822, %v1828
      %v1831 = vadd.f32 %v1823, %v1828
      %v1832 = vadd.f32 %v1824, %v1828
      %s1833 = scalar_lea.vmem %s3, 32
      %v1834 = vld [vmem:[%s1833] sm:$0xff]
      %v1835 = vld [vmem:[%s1833 + $0x8] sm:$0xff]
      %v1836 = vld [vmem:[%s1833 + $0x10] sm:$0xff]
      %v1837 = vld [vmem:[%s1833 + $0x18] sm:$0xff]
      %s1838 = scalar_lea.vmem %s4, 1
      %v1839 = vld [vmem:[%s1838] sm:$0x1]
      %v1841 = vlaneseq
      %v1842 = vshrl.u32 %v1841, 7
      %v1843 = vsub.s32 0, %v1842
      %v1844 = vrot.slane %v1839, %v1843
      %v1847 = vsel %vm578, %v1829, 0
      %v1850 = vsel %vm578, %v1830, 0
      %v1853 = vsel %vm578, %v1831, 0
      %v1856 = vsel %vm578, %v1832, 0
      %1858 = vmatprep.subr.mxu0 0.0
      %1859 = vmatpush1.msra.mxu0 %v1834
      %1860 = vmatprep.subr.mxu0 0.0
      %1861 = vmatpush1.msra.mxu0 %v1835
      %1862 = vmatprep.subr.mxu0 0.0
      %1863 = vmatpush1.msra.mxu0 %v1836
      %1864 = vmatprep.subr.mxu0 0.0
      %1865 = vmatpush1.msra.mxu0 %v1837
      %1866 = vmatprep.subr.mxu0 0.0
      %1867 = vmatpush1.msra.mxu0 0.0
      %1868 = vmatprep.subr.mxu0 0.0
      %1869 = vmatpush1.msra.mxu0 0.0
      %1870 = vmatprep.subr.mxu0 0.0
      %1871 = vmatpush1.msra.mxu0 0.0
      %1872 = vmatprep.subr.mxu0 0.0
      %1873 = vmatpush1.msra.mxu0 0.0
      %1874 = vmatprep.subr.mxu0 0.0
      %1875 = vmatpush1.msra.mxu0 0.0
      %1876 = vmatprep.subr.mxu0 0.0
      %1877 = vmatpush1.msra.mxu0 0.0
      %1878 = vmatprep.subr.mxu0 0.0
      %1879 = vmatpush1.msra.mxu0 0.0
      %1880 = vmatprep.subr.mxu0 0.0
      %1881 = vmatpush1.msra.mxu0 0.0
      %1882 = vmatprep.subr.mxu0 0.0
      %1883 = vmatpush1.msra.mxu0 0.0
      %1884 = vmatprep.subr.mxu0 0.0
      %1885 = vmatpush1.msra.mxu0 0.0
      %1886 = vmatprep.subr.mxu0 0.0
      %1887 = vmatpush1.msra.mxu0 0.0
      %1888 = vmatprep.subr.mxu0 0.0
      %1889 = vmatpush1.msra.mxu0 0.0
      %1890 = vmatprep.subr.mxu0 0.0
      %1891 = vmatpush1.msra.mxu0 0.0
      %1892 = vmatprep.subr.mxu0 0.0
      %1893 = vmatpush1.msra.mxu0 0.0
      %1894 = vmatprep.subr.mxu0 0.0
      %1895 = vmatpush1.msra.mxu0 0.0
      %1896 = vmatprep.subr.mxu0 0.0
      %1897 = vmatpush1.msra.mxu0 0.0
      %1898 = vmatprep.subr.mxu0 0.0
      %1899 = vmatpush1.msra.mxu0 0.0
      %1900 = vmatprep.subr.mxu0 0.0
      %1901 = vmatpush1.msra.mxu0 0.0
      %1902 = vmatprep.subr.mxu0 0.0
      %1903 = vmatpush1.msra.mxu0 0.0
      %1904 = vmatprep.subr.mxu0 0.0
      %1905 = vmatpush1.msra.mxu0 0.0
      %1906 = vmatprep.subr.mxu0 0.0
      %1907 = vmatpush1.msra.mxu0 0.0
      %1908 = vmatprep.subr.mxu0 0.0
      %1909 = vmatpush1.msra.mxu0 0.0
      %1910 = vmatprep.subr.mxu0 0.0
      %1911 = vmatpush1.msra.mxu0 0.0
      %1912 = vmatprep.subr.mxu0 0.0
      %1913 = vmatpush1.msra.mxu0 0.0
      %1914 = vmatprep.subr.mxu0 0.0
      %1915 = vmatpush1.msra.mxu0 0.0
      %1916 = vmatprep.subr.mxu0 0.0
      %1917 = vmatpush1.msra.mxu0 0.0
      %1918 = vmatprep.subr.mxu0 0.0
      %1919 = vmatpush1.msra.mxu0 0.0
      %1920 = vmatprep.subr.mxu0 0.0
      %1921 = vmatpush1.msra.mxu0 0.0
      %1922 = vmatprep.mubr.f32.mxu0 0.0
      %1923 = vmatmul.mubr.f32.gmra.mrb[0].mxu0 %v1847
      %v1924 = vpop.f32.mrb[0].mxu0
      %v1925 = vadd.f32 %v1844, %v1924
      %v1926 = vpop.f32.mrb[0].mxu0
      %1927 = vmatprep.mubr.f32.mxu0 0.0
      %1928 = vmatmul.mubr.f32.gmra.mrb[0].mxu0 %v1850
      %v1929 = vpop.f32.mrb[0].mxu0
      %v1930 = vadd.f32 %v1844, %v1929
      %v1931 = vpop.f32.mrb[0].mxu0
      %1932 = vmatprep.mubr.f32.mxu0 0.0
      %1933 = vmatmul.mubr.f32.gmra.mrb[0].mxu0 %v1853
      %v1934 = vpop.f32.mrb[0].mxu0
      %v1935 = vadd.f32 %v1844, %v1934
      %v1936 = vpop.f32.mrb[0].mxu0
      %1937 = vmatprep.mubr.f32.mxu0 0.0
      %1938 = vmatmul.mubr.f32.gmra.mrb[0].mxu0 %v1856
      %v1939 = vpop.f32.mrb[0].mxu0
      %v1940 = vadd.f32 %v1844, %v1939
      %v1941 = vpop.f32.mrb[0].mxu0
      %1942 = vdwg.mxu0
      %1947 = vrot.lane.b32.xlu0 %v1925, 96
      %v1948 = vpop.permute.xlu0 %1947
      %1949 = vrot.lane.b32.xlu0 %v1930, 96
      %v1950 = vpop.permute.xlu0 %1949
      %1951 = vrot.lane.b32.xlu0 %v1935, 96
      %v1952 = vpop.permute.xlu0 %1951
      %1953 = vrot.lane.b32.xlu0 %v1940, 96
      %v1954 = vpop.permute.xlu0 %1953
      %v1955 = vsel %vm768, %v1925, 0
      %v1957 = vsel %vm768, %v1930, 0
      %v1959 = vsel %vm768, %v1935, 0
      %v1961 = vsel %vm768, %v1940, 0
      %v1963 = vsel %vm768, %v1948, 0
      %v1965 = vsel %vm768, %v1950, 0
      %v1967 = vsel %vm768, %v1952, 0
      %v1969 = vsel %vm768, %v1954, 0
      %1971 = vmatprep.subr.mxu0 0.0
      %1972 = vmatpush1.xpose.msra.mxu0 %v1963
      %1973 = vmatprep.subr.mxu0 0.0
      %1974 = vmatpush1.xpose.msra.mxu0 %v1965
      %1975 = vmatprep.subr.mxu0 0.0
      %1976 = vmatpush1.xpose.msra.mxu0 %v1967
      %1977 = vmatprep.subr.mxu0 0.0
      %1978 = vmatpush1.xpose.msra.mxu0 %v1969
      %1979 = vmatprep.subr.mxu0 0.0
      %1980 = vmatpush1.xpose.msra.mxu0 0.0
      %1981 = vmatprep.subr.mxu0 0.0
      %1982 = vmatpush1.xpose.msra.mxu0 0.0
      %1983 = vmatprep.subr.mxu0 0.0
      %1984 = vmatpush1.xpose.msra.mxu0 0.0
      %1985 = vmatprep.subr.mxu0 0.0
      %1986 = vmatpush1.xpose.msra.mxu0 0.0
      %1987 = vmatprep.subr.mxu0 0.0
      %1988 = vmatpush1.xpose.msra.mxu0 0.0
      %1989 = vmatprep.subr.mxu0 0.0
      %1990 = vmatpush1.xpose.msra.mxu0 0.0
      %1991 = vmatprep.subr.mxu0 0.0
      %1992 = vmatpush1.xpose.msra.mxu0 0.0
      %1993 = vmatprep.subr.mxu0 0.0
      %1994 = vmatpush1.xpose.msra.mxu0 0.0
      %1995 = vmatprep.subr.mxu0 0.0
      %1996 = vmatpush1.xpose.msra.mxu0 0.0
      %1997 = vmatprep.subr.mxu0 0.0
      %1998 = vmatpush1.xpose.msra.mxu0 0.0
      %1999 = vmatprep.subr.mxu0 0.0
      %2000 = vmatpush1.xpose.msra.mxu0 0.0
      %2001 = vmatprep.subr.mxu0 0.0
      %2002 = vmatpush1.xpose.msra.mxu0 0.0
      %2003 = vmatprep.subr.mxu0 0.0
      %2004 = vmatpush1.xpose.msra.mxu0 0.0
      %2005 = vmatprep.subr.mxu0 0.0
      %2006 = vmatpush1.xpose.msra.mxu0 0.0
      %2007 = vmatprep.subr.mxu0 0.0
      %2008 = vmatpush1.xpose.msra.mxu0 0.0
      %2009 = vmatprep.subr.mxu0 0.0
      %2010 = vmatpush1.xpose.msra.mxu0 0.0
      %2011 = vmatprep.subr.mxu0 0.0
      %2012 = vmatpush1.xpose.msra.mxu0 0.0
      %2013 = vmatprep.subr.mxu0 0.0
      %2014 = vmatpush1.xpose.msra.mxu0 0.0
      %2015 = vmatprep.subr.mxu0 0.0
      %2016 = vmatpush1.xpose.msra.mxu0 0.0
      %2017 = vmatprep.subr.mxu0 0.0
      %2018 = vmatpush1.xpose.msra.mxu0 0.0
      %2019 = vmatprep.subr.mxu0 0.0
      %2020 = vmatpush1.xpose.msra.mxu0 0.0
      %2021 = vmatprep.subr.mxu0 0.0
      %2022 = vmatpush1.xpose.msra.mxu0 0.0
      %2023 = vmatprep.subr.mxu0 0.0
      %2024 = vmatpush1.xpose.msra.mxu0 0.0
      %2025 = vmatprep.subr.mxu0 0.0
      %2026 = vmatpush1.xpose.msra.mxu0 0.0
      %2027 = vmatprep.subr.mxu0 0.0
      %2028 = vmatpush1.xpose.msra.mxu0 0.0
      %2029 = vmatprep.subr.mxu0 0.0
      %2030 = vmatpush1.xpose.msra.mxu0 0.0
      %2031 = vmatprep.subr.mxu0 0.0
      %2032 = vmatpush1.xpose.msra.mxu0 0.0
      %2033 = vmatprep.subr.mxu0 0.0
      %2034 = vmatpush1.xpose.msra.mxu0 0.0
      %2035 = vmatprep.mubr.f32.mxu0 0.0
      %2036 = vmatmul.mubr.f32.gmra.mrb[0].mxu0 %v1955
      %v2037 = vpop.f32.mrb[0].mxu0
      %v2038 = vadd.f32 0.0, %v2037
      %v2039 = vpop.f32.mrb[0].mxu0
      %2040 = vmatprep.mubr.f32.mxu0 0.0
      %2041 = vmatmul.mubr.f32.gmra.mrb[0].mxu0 %v1957
      %v2042 = vpop.f32.mrb[0].mxu0
      %v2043 = vadd.f32 0.0, %v2042
      %v2044 = vpop.f32.mrb[0].mxu0
      %2045 = vmatprep.mubr.f32.mxu0 0.0
      %2046 = vmatmul.mubr.f32.gmra.mrb[0].mxu0 %v1959
      %v2047 = vpop.f32.mrb[0].mxu0
      %v2048 = vadd.f32 0.0, %v2047
      %v2049 = vpop.f32.mrb[0].mxu0
      %2050 = vmatprep.mubr.f32.mxu0 0.0
      %2051 = vmatmul.mubr.f32.gmra.mrb[0].mxu0 %v1961
      %v2052 = vpop.f32.mrb[0].mxu0
      %v2053 = vadd.f32 0.0, %v2052
      %v2054 = vpop.f32.mrb[0].mxu0
      %2055 = vdwg.mxu0
      %v2056 = vmul.f32 %v2038, 0.25
      %v2057 = vmul.f32 %v2043, 0.25
      %v2058 = vmul.f32 %v2048, 0.25
      %v2059 = vmul.f32 %v2053, 0.25
      %v2060 = vadd.f32 %v2056, %v569
      %v2061 = vadd.f32 %v2057, %v570
      %v2062 = vadd.f32 %v2058, %v571
      %v2063 = vadd.f32 %v2059, %v572
      %v2064 = vsel %vm578, %v2060, -inf
      %2065 = vmax.xlane.f32.xlu0 %v2064
      %v2066 = vpop.xlane.xlu0 %2065
      %v2067 = vsel %vm578, %v2061, -inf
      %2068 = vmax.xlane.f32.xlu0 %v2067
      %v2069 = vpop.xlane.xlu0 %2068
      %v2070 = vsel %vm578, %v2062, -inf
      %2071 = vmax.xlane.f32.xlu0 %v2070
      %v2072 = vpop.xlane.xlu0 %2071
      %v2073 = vsel %vm578, %v2063, -inf
      %2074 = vmax.xlane.f32.xlu0 %v2073
      %v2075 = vpop.xlane.xlu0 %2074
      %v2076 = vsub.f32 %v2060, %v2066
      %v2077 = vsub.f32 %v2061, %v2069
      %v2078 = vsub.f32 %v2062, %v2072
      %v2079 = vsub.f32 %v2063, %v2075
      %v2080 = vmul.f32 %v2076, 1.442695
      %v2081 = vpow.pop %v2080
      %v2082 = vmul.f32 %v2077, 1.442695
      %v2083 = vpow.pop %v2082
      %v2084 = vmul.f32 %v2078, 1.442695
      %v2085 = vpow.pop %v2084
      %v2086 = vmul.f32 %v2079, 1.442695
      %v2087 = vpow.pop %v2086
      %v2088 = vsel %vm578, %v2081, 0.0
      %2089 = vadd.xlane.f32.xlu0 %v2088
      %v2090 = vpop.xlane.xlu0 %2089
      %v2091 = vsel %vm578, %v2083, 0.0
      %2092 = vadd.xlane.f32.xlu0 %v2091
      %v2093 = vpop.xlane.xlu0 %2092
      %v2094 = vsel %vm578, %v2085, 0.0
      %2095 = vadd.xlane.f32.xlu0 %v2094
      %v2096 = vpop.xlane.xlu0 %2095
      %v2097 = vsel %vm578, %v2087, 0.0
      %2098 = vadd.xlane.f32.xlu0 %v2097
      %v2099 = vpop.xlane.xlu0 %2098
      %v2100 = vrcp.pop %v2090
      %v2101 = vrcp.pop %v2093
      %v2102 = vrcp.pop %v2096
      %v2103 = vrcp.pop %v2099
      %v2104 = vmul.f32 %v2081, %v2100
      %v2105 = vmul.f32 %v2083, %v2101
      %v2106 = vmul.f32 %v2085, %v2102
      %v2107 = vmul.f32 %v2087, %v2103
      %2108 = vrot.lane.b32.xlu0 %v1925, 64
      %v2109 = vpop.permute.xlu0 %2108
      %2110 = vrot.lane.b32.xlu0 %v1930, 64
      %v2111 = vpop.permute.xlu0 %2110
      %2112 = vrot.lane.b32.xlu0 %v1935, 64
      %v2113 = vpop.permute.xlu0 %2112
      %2114 = vrot.lane.b32.xlu0 %v1940, 64
      %v2115 = vpop.permute.xlu0 %2114
      %v2121 = vsel %vm578, %v2104, 0
      %v2124 = vsel %vm578, %v2105, 0
      %v2127 = vsel %vm578, %v2106, 0
      %v2130 = vsel %vm578, %v2107, 0
      %2132 = vmatprep.subr.mxu0 0.0
      %2133 = vmatpush1.msra.mxu0 %v2109
      %2134 = vmatprep.subr.mxu0 0.0
      %2135 = vmatpush1.msra.mxu0 %v2111
      %2136 = vmatprep.subr.mxu0 0.0
      %2137 = vmatpush1.msra.mxu0 %v2113
      %2138 = vmatprep.subr.mxu0 0.0
      %2139 = vmatpush1.msra.mxu0 %v2115
      %2140 = vmatprep.subr.mxu0 0.0
      %2141 = vmatpush1.msra.mxu0 0.0
      %2142 = vmatprep.subr.mxu0 0.0
      %2143 = vmatpush1.msra.mxu0 0.0
      %2144 = vmatprep.subr.mxu0 0.0
      %2145 = vmatpush1.msra.mxu0 0.0
      %2146 = vmatprep.subr.mxu0 0.0
      %2147 = vmatpush1.msra.mxu0 0.0
      %2148 = vmatprep.subr.mxu0 0.0
      %2149 = vmatpush1.msra.mxu0 0.0
      %2150 = vmatprep.subr.mxu0 0.0
      %2151 = vmatpush1.msra.mxu0 0.0
      %2152 = vmatprep.subr.mxu0 0.0
      %2153 = vmatpush1.msra.mxu0 0.0
      %2154 = vmatprep.subr.mxu0 0.0
      %2155 = vmatpush1.msra.mxu0 0.0
      %2156 = vmatprep.subr.mxu0 0.0
      %2157 = vmatpush1.msra.mxu0 0.0
      %2158 = vmatprep.subr.mxu0 0.0
      %2159 = vmatpush1.msra.mxu0 0.0
      %2160 = vmatprep.subr.mxu0 0.0
      %2161 = vmatpush1.msra.mxu0 0.0
      %2162 = vmatprep.subr.mxu0 0.0
      %2163 = vmatpush1.msra.mxu0 0.0
      %2164 = vmatprep.subr.mxu0 0.0
      %2165 = vmatpush1.msra.mxu0 0.0
      %2166 = vmatprep.subr.mxu0 0.0
      %2167 = vmatpush1.msra.mxu0 0.0
      %2168 = vmatprep.subr.mxu0 0.0
      %2169 = vmatpush1.msra.mxu0 0.0
      %2170 = vmatprep.subr.mxu0 0.0
      %2171 = vmatpush1.msra.mxu0 0.0
      %2172 = vmatprep.subr.mxu0 0.0
      %2173 = vmatpush1.msra.mxu0 0.0
      %2174 = vmatprep.subr.mxu0 0.0
      %2175 = vmatpush1.msra.mxu0 0.0
      %2176 = vmatprep.subr.mxu0 0.0
      %2177 = vmatpush1.msra.mxu0 0.0
      %2178 = vmatprep.subr.mxu0 0.0
      %2179 = vmatpush1.msra.mxu0 0.0
      %2180 = vmatprep.subr.mxu0 0.0
      %2181 = vmatpush1.msra.mxu0 0.0
      %2182 = vmatprep.subr.mxu0 0.0
      %2183 = vmatpush1.msra.mxu0 0.0
      %2184 = vmatprep.subr.mxu0 0.0
      %2185 = vmatpush1.msra.mxu0 0.0
      %2186 = vmatprep.subr.mxu0 0.0
      %2187 = vmatpush1.msra.mxu0 0.0
      %2188 = vmatprep.subr.mxu0 0.0
      %2189 = vmatpush1.msra.mxu0 0.0
      %2190 = vmatprep.subr.mxu0 0.0
      %2191 = vmatpush1.msra.mxu0 0.0
      %2192 = vmatprep.subr.mxu0 0.0
      %2193 = vmatpush1.msra.mxu0 0.0
      %2194 = vmatprep.subr.mxu0 0.0
      %2195 = vmatpush1.msra.mxu0 0.0
      %2196 = vmatprep.mubr.f32.mxu0 0.0
      %2197 = vmatmul.mubr.f32.gmra.mrb[0].mxu0 %v2121
      %v2198 = vpop.f32.mrb[0].mxu0
      %v2199 = vadd.f32 0.0, %v2198
      %v2200 = vpop.f32.mrb[0].mxu0
      %2201 = vmatprep.mubr.f32.mxu0 0.0
      %2202 = vmatmul.mubr.f32.gmra.mrb[0].mxu0 %v2124
      %v2203 = vpop.f32.mrb[0].mxu0
      %v2204 = vadd.f32 0.0, %v2203
      %v2205 = vpop.f32.mrb[0].mxu0
      %2206 = vmatprep.mubr.f32.mxu0 0.0
      %2207 = vmatmul.mubr.f32.gmra.mrb[0].mxu0 %v2127
      %v2208 = vpop.f32.mrb[0].mxu0
      %v2209 = vadd.f32 0.0, %v2208
      %v2210 = vpop.f32.mrb[0].mxu0
      %2211 = vmatprep.mubr.f32.mxu0 0.0
      %2212 = vmatmul.mubr.f32.gmra.mrb[0].mxu0 %v2130
      %v2213 = vpop.f32.mrb[0].mxu0
      %v2214 = vadd.f32 0.0, %v2213
      %v2215 = vpop.f32.mrb[0].mxu0
      %2216 = vdwg.mxu0
      %2217 = vst.msk [vmem:[#allocation2] sm:$0xff] %vm768, %v2199
      %2218 = vst.msk [vmem:[#allocation2 + $0x8] sm:$0xff] %vm768, %v2204
      %2219 = vst.msk [vmem:[#allocation2 + $0x10] sm:$0xff] %vm768, %v2209
      %2220 = vst.msk [vmem:[#allocation2 + $0x18] sm:$0xff] %vm768, %v2214
      %2221 = vrot.lane.b32.xlu0 %v1925, 112
      %v2222 = vpop.permute.xlu0 %2221
      %2223 = vrot.lane.b32.xlu0 %v1930, 112
      %v2224 = vpop.permute.xlu0 %2223
      %2225 = vrot.lane.b32.xlu0 %v1935, 112
      %v2226 = vpop.permute.xlu0 %2225
      %2227 = vrot.lane.b32.xlu0 %v1940, 112
      %v2228 = vpop.permute.xlu0 %2227
      %2229 = vrot.lane.b32.xlu0 %v1925, 80
      %v2230 = vpop.permute.xlu0 %2229
      %2231 = vrot.lane.b32.xlu0 %v1930, 80
      %v2232 = vpop.permute.xlu0 %2231
      %2233 = vrot.lane.b32.xlu0 %v1935, 80
      %v2234 = vpop.permute.xlu0 %2233
      %2235 = vrot.lane.b32.xlu0 %v1940, 80
      %v2236 = vpop.permute.xlu0 %2235
      %v2237 = vsel %vm768, %v2222, 0
      %v2239 = vsel %vm768, %v2224, 0
      %v2241 = vsel %vm768, %v2226, 0
      %v2243 = vsel %vm768, %v2228, 0
      %v2245 = vsel %vm768, %v2230, 0
      %v2247 = vsel %vm768, %v2232, 0
      %v2249 = vsel %vm768, %v2234, 0
      %v2251 = vsel %vm768, %v2236, 0
      %2253 = vmatprep.subr.mxu0 0.0
      %2254 = vmatpush1.xpose.msra.mxu0 %v2245
      %2255 = vmatprep.subr.mxu0 0.0
      %2256 = vmatpush1.xpose.msra.mxu0 %v2247
      %2257 = vmatprep.subr.mxu0 0.0
      %2258 = vmatpush1.xpose.msra.mxu0 %v2249
      %2259 = vmatprep.subr.mxu0 0.0
      %2260 = vmatpush1.xpose.msra.mxu0 %v2251
      %2261 = vmatprep.subr.mxu0 0.0
      %2262 = vmatpush1.xpose.msra.mxu0 0.0
      %2263 = vmatprep.subr.mxu0 0.0
      %2264 = vmatpush1.xpose.msra.mxu0 0.0
      %2265 = vmatprep.subr.mxu0 0.0
      %2266 = vmatpush1.xpose.msra.mxu0 0.0
      %2267 = vmatprep.subr.mxu0 0.0
      %2268 = vmatpush1.xpose.msra.mxu0 0.0
      %2269 = vmatprep.subr.mxu0 0.0
      %2270 = vmatpush1.xpose.msra.mxu0 0.0
      %2271 = vmatprep.subr.mxu0 0.0
      %2272 = vmatpush1.xpose.msra.mxu0 0.0
      %2273 = vmatprep.subr.mxu0 0.0
      %2274 = vmatpush1.xpose.msra.mxu0 0.0
      %2275 = vmatprep.subr.mxu0 0.0
      %2276 = vmatpush1.xpose.msra.mxu0 0.0
      %2277 = vmatprep.subr.mxu0 0.0
      %2278 = vmatpush1.xpose.msra.mxu0 0.0
      %2279 = vmatprep.subr.mxu0 0.0
      %2280 = vmatpush1.xpose.msra.mxu0 0.0
      %2281 = vmatprep.subr.mxu0 0.0
      %2282 = vmatpush1.xpose.msra.mxu0 0.0
      %2283 = vmatprep.subr.mxu0 0.0
      %2284 = vmatpush1.xpose.msra.mxu0 0.0
      %2285 = vmatprep.subr.mxu0 0.0
      %2286 = vmatpush1.xpose.msra.mxu0 0.0
      %2287 = vmatprep.subr.mxu0 0.0
      %2288 = vmatpush1.xpose.msra.mxu0 0.0
      %2289 = vmatprep.subr.mxu0 0.0
      %2290 = vmatpush1.xpose.msra.mxu0 0.0
      %2291 = vmatprep.subr.mxu0 0.0
      %2292 = vmatpush1.xpose.msra.mxu0 0.0
      %2293 = vmatprep.subr.mxu0 0.0
      %2294 = vmatpush1.xpose.msra.mxu0 0.0
      %2295 = vmatprep.subr.mxu0 0.0
      %2296 = vmatpush1.xpose.msra.mxu0 0.0
      %2297 = vmatprep.subr.mxu0 0.0
      %2298 = vmatpush1.xpose.msra.mxu0 0.0
      %2299 = vmatprep.subr.mxu0 0.0
      %2300 = vmatpush1.xpose.msra.mxu0 0.0
      %2301 = vmatprep.subr.mxu0 0.0
      %2302 = vmatpush1.xpose.msra.mxu0 0.0
      %2303 = vmatprep.subr.mxu0 0.0
      %2304 = vmatpush1.xpose.msra.mxu0 0.0
      %2305 = vmatprep.subr.mxu0 0.0
      %2306 = vmatpush1.xpose.msra.mxu0 0.0
      %2307 = vmatprep.subr.mxu0 0.0
      %2308 = vmatpush1.xpose.msra.mxu0 0.0
      %2309 = vmatprep.subr.mxu0 0.0
      %2310 = vmatpush1.xpose.msra.mxu0 0.0
      %2311 = vmatprep.subr.mxu0 0.0
      %2312 = vmatpush1.xpose.msra.mxu0 0.0
      %2313 = vmatprep.subr.mxu0 0.0
      %2314 = vmatpush1.xpose.msra.mxu0 0.0
      %2315 = vmatprep.subr.mxu0 0.0
      %2316 = vmatpush1.xpose.msra.mxu0 0.0
      %2317 = vmatprep.mubr.f32.mxu0 0.0
      %2318 = vmatmul.mubr.f32.gmra.mrb[0].mxu0 %v2237
      %v2319 = vpop.f32.mrb[0].mxu0
      %v2320 = vadd.f32 0.0, %v2319
      %v2321 = vpop.f32.mrb[0].mxu0
      %2322 = vmatprep.mubr.f32.mxu0 0.0
      %2323 = vmatmul.mubr.f32.gmra.mrb[0].mxu0 %v2239
      %v2324 = vpop.f32.mrb[0].mxu0
      %v2325 = vadd.f32 0.0, %v2324
      %v2326 = vpop.f32.mrb[0].mxu0
      %2327 = vmatprep.mubr.f32.mxu0 0.0
      %2328 = vmatmul.mubr.f32.gmra.mrb[0].mxu0 %v2241
      %v2329 = vpop.f32.mrb[0].mxu0
      %v2330 = vadd.f32 0.0, %v2329
      %v2331 = vpop.f32.mrb[0].mxu0
      %2332 = vmatprep.mubr.f32.mxu0 0.0
      %2333 = vmatmul.mubr.f32.gmra.mrb[0].mxu0 %v2243
      %v2334 = vpop.f32.mrb[0].mxu0
      %v2335 = vadd.f32 0.0, %v2334
      %v2336 = vpop.f32.mrb[0].mxu0
      %2337 = vdwg.mxu0
      %v2338 = vmul.f32 %v2320, 0.25
      %v2339 = vmul.f32 %v2325, 0.25
      %v2340 = vmul.f32 %v2330, 0.25
      %v2341 = vmul.f32 %v2335, 0.25
      %v2342 = vadd.f32 %v2338, %v569
      %v2343 = vadd.f32 %v2339, %v570
      %v2344 = vadd.f32 %v2340, %v571
      %v2345 = vadd.f32 %v2341, %v572
      %v2346 = vsel %vm578, %v2342, -inf
      %2347 = vmax.xlane.f32.xlu0 %v2346
      %v2348 = vpop.xlane.xlu0 %2347
      %v2349 = vsel %vm578, %v2343, -inf
      %2350 = vmax.xlane.f32.xlu0 %v2349
      %v2351 = vpop.xlane.xlu0 %2350
      %v2352 = vsel %vm578, %v2344, -inf
      %2353 = vmax.xlane.f32.xlu0 %v2352
      %v2354 = vpop.xlane.xlu0 %2353
      %v2355 = vsel %vm578, %v2345, -inf
      %2356 = vmax.xlane.f32.xlu0 %v2355
      %v2357 = vpop.xlane.xlu0 %2356
      %v2358 = vsub.f32 %v2342, %v2348
      %v2359 = vsub.f32 %v2343, %v2351
      %v2360 = vsub.f32 %v2344, %v2354
      %v2361 = vsub.f32 %v2345, %v2357
      %v2362 = vmul.f32 %v2358, 1.442695
      %v2363 = vpow.pop %v2362
      %v2364 = vmul.f32 %v2359, 1.442695
      %v2365 = vpow.pop %v2364
      %v2366 = vmul.f32 %v2360, 1.442695
      %v2367 = vpow.pop %v2366
      %v2368 = vmul.f32 %v2361, 1.442695
      %v2369 = vpow.pop %v2368
      %v2370 = vsel %vm578, %v2363, 0.0
      %2371 = vadd.xlane.f32.xlu0 %v2370
      %v2372 = vpop.xlane.xlu0 %2371
      %v2373 = vsel %vm578, %v2365, 0.0
      %2374 = vadd.xlane.f32.xlu0 %v2373
      %v2375 = vpop.xlane.xlu0 %2374
      %v2376 = vsel %vm578, %v2367, 0.0
      %2377 = vadd.xlane.f32.xlu0 %v2376
      %v2378 = vpop.xlane.xlu0 %2377
      %v2379 = vsel %vm578, %v2369, 0.0
      %2380 = vadd.xlane.f32.xlu0 %v2379
      %v2381 = vpop.xlane.xlu0 %2380
      %v2382 = vrcp.pop %v2372
      %v2383 = vrcp.pop %v2375
      %v2384 = vrcp.pop %v2378
      %v2385 = vrcp.pop %v2381
      %v2386 = vmul.f32 %v2363, %v2382
      %v2387 = vmul.f32 %v2365, %v2383
      %v2388 = vmul.f32 %v2367, %v2384
      %v2389 = vmul.f32 %v2369, %v2385
      %2390 = vrot.lane.b32.xlu0 %v1925, 48
      %v2391 = vpop.permute.xlu0 %2390
      %2392 = vrot.lane.b32.xlu0 %v1930, 48
      %v2393 = vpop.permute.xlu0 %2392
      %2394 = vrot.lane.b32.xlu0 %v1935, 48
      %v2395 = vpop.permute.xlu0 %2394
      %2396 = vrot.lane.b32.xlu0 %v1940, 48
      %v2397 = vpop.permute.xlu0 %2396
      %v2403 = vsel %vm578, %v2386, 0
      %v2406 = vsel %vm578, %v2387, 0
      %v2409 = vsel %vm578, %v2388, 0
      %v2412 = vsel %vm578, %v2389, 0
      %2414 = vmatprep.subr.mxu0 0.0
      %2415 = vmatpush1.msra.mxu0 %v2391
      %2416 = vmatprep.subr.mxu0 0.0
      %2417 = vmatpush1.msra.mxu0 %v2393
      %2418 = vmatprep.subr.mxu0 0.0
      %2419 = vmatpush1.msra.mxu0 %v2395
      %2420 = vmatprep.subr.mxu0 0.0
      %2421 = vmatpush1.msra.mxu0 %v2397
      %2422 = vmatprep.subr.mxu0 0.0
      %2423 = vmatpush1.msra.mxu0 0.0
      %2424 = vmatprep.subr.mxu0 0.0
      %2425 = vmatpush1.msra.mxu0 0.0
      %2426 = vmatprep.subr.mxu0 0.0
      %2427 = vmatpush1.msra.mxu0 0.0
      %2428 = vmatprep.subr.mxu0 0.0
      %2429 = vmatpush1.msra.mxu0 0.0
      %2430 = vmatprep.subr.mxu0 0.0
      %2431 = vmatpush1.msra.mxu0 0.0
      %2432 = vmatprep.subr.mxu0 0.0
      %2433 = vmatpush1.msra.mxu0 0.0
      %2434 = vmatprep.subr.mxu0 0.0
      %2435 = vmatpush1.msra.mxu0 0.0
      %2436 = vmatprep.subr.mxu0 0.0
      %2437 = vmatpush1.msra.mxu0 0.0
      %2438 = vmatprep.subr.mxu0 0.0
      %2439 = vmatpush1.msra.mxu0 0.0
      %2440 = vmatprep.subr.mxu0 0.0
      %2441 = vmatpush1.msra.mxu0 0.0
      %2442 = vmatprep.subr.mxu0 0.0
      %2443 = vmatpush1.msra.mxu0 0.0
      %2444 = vmatprep.subr.mxu0 0.0
      %2445 = vmatpush1.msra.mxu0 0.0
      %2446 = vmatprep.subr.mxu0 0.0
      %2447 = vmatpush1.msra.mxu0 0.0
      %2448 = vmatprep.subr.mxu0 0.0
      %2449 = vmatpush1.msra.mxu0 0.0
      %2450 = vmatprep.subr.mxu0 0.0
      %2451 = vmatpush1.msra.mxu0 0.0
      %2452 = vmatprep.subr.mxu0 0.0
      %2453 = vmatpush1.msra.mxu0 0.0
      %2454 = vmatprep.subr.mxu0 0.0
      %2455 = vmatpush1.msra.mxu0 0.0
      %2456 = vmatprep.subr.mxu0 0.0
      %2457 = vmatpush1.msra.mxu0 0.0
      %2458 = vmatprep.subr.mxu0 0.0
      %2459 = vmatpush1.msra.mxu0 0.0
      %2460 = vmatprep.subr.mxu0 0.0
      %2461 = vmatpush1.msra.mxu0 0.0
      %2462 = vmatprep.subr.mxu0 0.0
      %2463 = vmatpush1.msra.mxu0 0.0
      %2464 = vmatprep.subr.mxu0 0.0
      %2465 = vmatpush1.msra.mxu0 0.0
      %2466 = vmatprep.subr.mxu0 0.0
      %2467 = vmatpush1.msra.mxu0 0.0
      %2468 = vmatprep.subr.mxu0 0.0
      %2469 = vmatpush1.msra.mxu0 0.0
      %2470 = vmatprep.subr.mxu0 0.0
      %2471 = vmatpush1.msra.mxu0 0.0
      %2472 = vmatprep.subr.mxu0 0.0
      %2473 = vmatpush1.msra.mxu0 0.0
      %2474 = vmatprep.subr.mxu0 0.0
      %2475 = vmatpush1.msra.mxu0 0.0
      %2476 = vmatprep.subr.mxu0 0.0
      %2477 = vmatpush1.msra.mxu0 0.0
      %2478 = vmatprep.mubr.f32.mxu0 0.0
      %2479 = vmatmul.mubr.f32.gmra.mrb[0].mxu0 %v2403
      %v2480 = vpop.f32.mrb[0].mxu0
      %v2481 = vadd.f32 0.0, %v2480
      %v2482 = vpop.f32.mrb[0].mxu0
      %2483 = vmatprep.mubr.f32.mxu0 0.0
      %2484 = vmatmul.mubr.f32.gmra.mrb[0].mxu0 %v2406
      %v2485 = vpop.f32.mrb[0].mxu0
      %v2486 = vadd.f32 0.0, %v2485
      %v2487 = vpop.f32.mrb[0].mxu0
      %2488 = vmatprep.mubr.f32.mxu0 0.0
      %2489 = vmatmul.mubr.f32.gmra.mrb[0].mxu0 %v2409
      %v2490 = vpop.f32.mrb[0].mxu0
      %v2491 = vadd.f32 0.0, %v2490
      %v2492 = vpop.f32.mrb[0].mxu0
      %2493 = vmatprep.mubr.f32.mxu0 0.0
      %2494 = vmatmul.mubr.f32.gmra.mrb[0].mxu0 %v2412
      %v2495 = vpop.f32.mrb[0].mxu0
      %v2496 = vadd.f32 0.0, %v2495
      %v2497 = vpop.f32.mrb[0].mxu0
      %2498 = vdwg.mxu0
      %2503 = vrot.lane.b32.xlu0 %v2481, 16
      %v2504 = vpop.permute.xlu0 %2503
      %2505 = vrot.lane.b32.xlu0 %v2486, 16
      %v2506 = vpop.permute.xlu0 %2505
      %2507 = vrot.lane.b32.xlu0 %v2491, 16
      %v2508 = vpop.permute.xlu0 %2507
      %2509 = vrot.lane.b32.xlu0 %v2496, 16
      %v2510 = vpop.permute.xlu0 %2509
      %2515 = vst.msk [vmem:[#allocation2] sm:$0xff] %vm1329, %v2504
      %2516 = vst.msk [vmem:[#allocation2 + $0x8] sm:$0xff] %vm1329, %v2506
      %2517 = vst.msk [vmem:[#allocation2 + $0x10] sm:$0xff] %vm1329, %v2508
      %2518 = vst.msk [vmem:[#allocation2 + $0x18] sm:$0xff] %vm1329, %v2510
      %v2519 = vld [vmem:[#allocation2] sm:$0xff]
      %v2520 = vld [vmem:[#allocation2 + $0x8] sm:$0xff]
      %v2521 = vld [vmem:[#allocation2 + $0x10] sm:$0xff]
      %v2522 = vld [vmem:[#allocation2 + $0x18] sm:$0xff]
      %s2523 = scalar_lea.vmem %s5, 32
      %v2524 = vld [vmem:[%s2523] sm:$0xff]
      %v2525 = vld [vmem:[%s2523 + $0x8] sm:$0xff]
      %v2526 = vld [vmem:[%s2523 + $0x10] sm:$0xff]
      %v2527 = vld [vmem:[%s2523 + $0x18] sm:$0xff]
      %s2528 = scalar_lea.vmem %s6, 1
      %v2529 = vld [vmem:[%s2528] sm:$0x1]
      %v2531 = vlaneseq
      %v2532 = vshrl.u32 %v2531, 7
      %v2533 = vsub.s32 0, %v2532
      %v2534 = vrot.slane %v2529, %v2533
      %v2537 = vsel %vm578, %v2519, 0
      %v2540 = vsel %vm578, %v2520, 0
      %v2543 = vsel %vm578, %v2521, 0
      %v2546 = vsel %vm578, %v2522, 0
      %2548 = vmatprep.subr.mxu0 0.0
      %2549 = vmatpush1.msra.mxu0 %v2524
      %2550 = vmatprep.subr.mxu0 0.0
      %2551 = vmatpush1.msra.mxu0 %v2525
      %2552 = vmatprep.subr.mxu0 0.0
      %2553 = vmatpush1.msra.mxu0 %v2526
      %2554 = vmatprep.subr.mxu0 0.0
      %2555 = vmatpush1.msra.mxu0 %v2527
      %2556 = vmatprep.subr.mxu0 0.0
      %2557 = vmatpush1.msra.mxu0 0.0
      %2558 = vmatprep.subr.mxu0 0.0
      %2559 = vmatpush1.msra.mxu0 0.0
      %2560 = vmatprep.subr.mxu0 0.0
      %2561 = vmatpush1.msra.mxu0 0.0
      %2562 = vmatprep.subr.mxu0 0.0
      %2563 = vmatpush1.msra.mxu0 0.0
      %2564 = vmatprep.subr.mxu0 0.0
      %2565 = vmatpush1.msra.mxu0 0.0
      %2566 = vmatprep.subr.mxu0 0.0
      %2567 = vmatpush1.msra.mxu0 0.0
      %2568 = vmatprep.subr.mxu0 0.0
      %2569 = vmatpush1.msra.mxu0 0.0
      %2570 = vmatprep.subr.mxu0 0.0
      %2571 = vmatpush1.msra.mxu0 0.0
      %2572 = vmatprep.subr.mxu0 0.0
      %2573 = vmatpush1.msra.mxu0 0.0
      %2574 = vmatprep.subr.mxu0 0.0
      %2575 = vmatpush1.msra.mxu0 0.0
      %2576 = vmatprep.subr.mxu0 0.0
      %2577 = vmatpush1.msra.mxu0 0.0
      %2578 = vmatprep.subr.mxu0 0.0
      %2579 = vmatpush1.msra.mxu0 0.0
      %2580 = vmatprep.subr.mxu0 0.0
      %2581 = vmatpush1.msra.mxu0 0.0
      %2582 = vmatprep.subr.mxu0 0.0
      %2583 = vmatpush1.msra.mxu0 0.0
      %2584 = vmatprep.subr.mxu0 0.0
      %2585 = vmatpush1.msra.mxu0 0.0
      %2586 = vmatprep.subr.mxu0 0.0
      %2587 = vmatpush1.msra.mxu0 0.0
      %2588 = vmatprep.subr.mxu0 0.0
      %2589 = vmatpush1.msra.mxu0 0.0
      %2590 = vmatprep.subr.mxu0 0.0
      %2591 = vmatpush1.msra.mxu0 0.0
      %2592 = vmatprep.subr.mxu0 0.0
      %2593 = vmatpush1.msra.mxu0 0.0
      %2594 = vmatprep.subr.mxu0 0.0
      %2595 = vmatpush1.msra.mxu0 0.0
      %2596 = vmatprep.subr.mxu0 0.0
      %2597 = vmatpush1.msra.mxu0 0.0
      %2598 = vmatprep.subr.mxu0 0.0
      %2599 = vmatpush1.msra.mxu0 0.0
      %2600 = vmatprep.subr.mxu0 0.0
      %2601 = vmatpush1.msra.mxu0 0.0
      %2602 = vmatprep.subr.mxu0 0.0
      %2603 = vmatpush1.msra.mxu0 0.0
      %2604 = vmatprep.subr.mxu0 0.0
      %2605 = vmatpush1.msra.mxu0 0.0
      %2606 = vmatprep.subr.mxu0 0.0
      %2607 = vmatpush1.msra.mxu0 0.0
      %2608 = vmatprep.subr.mxu0 0.0
      %2609 = vmatpush1.msra.mxu0 0.0
      %2610 = vmatprep.subr.mxu0 0.0
      %2611 = vmatpush1.msra.mxu0 0.0
      %2612 = vmatprep.mubr.f32.mxu0 0.0
      %2613 = vmatmul.mubr.f32.gmra.mrb[0].mxu0 %v2537
      %v2614 = vpop.f32.mrb[0].mxu0
      %v2615 = vadd.f32 %v2534, %v2614
      %v2616 = vpop.f32.mrb[0].mxu0
      %2617 = vmatprep.mubr.f32.mxu0 0.0
      %2618 = vmatmul.mubr.f32.gmra.mrb[0].mxu0 %v2540
      %v2619 = vpop.f32.mrb[0].mxu0
      %v2620 = vadd.f32 %v2534, %v2619
      %v2621 = vpop.f32.mrb[0].mxu0
      %2622 = vmatprep.mubr.f32.mxu0 0.0
      %2623 = vmatmul.mubr.f32.gmra.mrb[0].mxu0 %v2543
      %v2624 = vpop.f32.mrb[0].mxu0
      %v2625 = vadd.f32 %v2534, %v2624
      %v2626 = vpop.f32.mrb[0].mxu0
      %2627 = vmatprep.mubr.f32.mxu0 0.0
      %2628 = vmatmul.mubr.f32.gmra.mrb[0].mxu0 %v2546
      %v2629 = vpop.f32.mrb[0].mxu0
      %v2630 = vadd.f32 %v2534, %v2629
      %v2631 = vpop.f32.mrb[0].mxu0
      %2632 = vdwg.mxu0
      %v2633 = vadd.f32 %v2615, %v1829
      %v2634 = vadd.f32 %v2620, %v1830
      %v2635 = vadd.f32 %v2625, %v1831
      %v2636 = vadd.f32 %v2630, %v1832
      %s2637 = scalar_lea.vmem %s7, 2
      %v2638 = vld [vmem:[%s2637] sm:$0x3]
      %v2639 = vsel %vm578, %v2633, 0.0
      %2640 = vadd.xlane.f32.xlu0 %v2639
      %v2641 = vpop.xlane.xlu0 %2640
      %v2642 = vsel %vm578, %v2634, 0.0
      %2643 = vadd.xlane.f32.xlu0 %v2642
      %v2644 = vpop.xlane.xlu0 %2643
      %v2645 = vsel %vm578, %v2635, 0.0
      %2646 = vadd.xlane.f32.xlu0 %v2645
      %v2647 = vpop.xlane.xlu0 %2646
      %v2648 = vsel %vm578, %v2636, 0.0
      %2649 = vadd.xlane.f32.xlu0 %v2648
      %v2650 = vpop.xlane.xlu0 %2649
      %v2651 = vmul.f32 %v2641, %v591
      %v2652 = vmul.f32 %v2644, %v591
      %v2653 = vmul.f32 %v2647, %v591
      %v2654 = vmul.f32 %v2650, %v591
      %v2655 = vsub.f32 %v2633, %v2651
      %v2656 = vsub.f32 %v2634, %v2652
      %v2657 = vsub.f32 %v2635, %v2653
      %v2658 = vsub.f32 %v2636, %v2654
      %v2659 = vmul.f32 %v2655, %v2655
      %v2660 = vmul.f32 %v2656, %v2656
      %v2661 = vmul.f32 %v2657, %v2657
      %v2662 = vmul.f32 %v2658, %v2658
      %v2663 = vsel %vm578, %v2659, 0.0
      %2664 = vadd.xlane.f32.xlu0 %v2663
      %v2665 = vpop.xlane.xlu0 %2664
      %v2666 = vsel %vm578, %v2660, 0.0
      %2667 = vadd.xlane.f32.xlu0 %v2666
      %v2668 = vpop.xlane.xlu0 %2667
      %v2669 = vsel %vm578, %v2661, 0.0
      %2670 = vadd.xlane.f32.xlu0 %v2669
      %v2671 = vpop.xlane.xlu0 %2670
      %v2672 = vsel %vm578, %v2662, 0.0
      %2673 = vadd.xlane.f32.xlu0 %v2672
      %v2674 = vpop.xlane.xlu0 %2673
      %v2675 = vmul.f32 %v2665, %v591
      %v2676 = vmul.f32 %v2668, %v591
      %v2677 = vmul.f32 %v2671, %v591
      %v2678 = vmul.f32 %v2674, %v591
      %v2679 = vadd.f32 %v2675, 1e-12
      %v2680 = vadd.f32 %v2676, 1e-12
      %v2681 = vadd.f32 %v2677, 1e-12
      %v2682 = vadd.f32 %v2678, 1e-12
      %v2683 = vrsqrt.pop %v2679
      %v2684 = vrsqrt.pop %v2680
      %v2685 = vrsqrt.pop %v2681
      %v2686 = vrsqrt.pop %v2682
      %v2687 = vmul.f32 %v2655, %v2683
      %v2688 = vmul.f32 %v2656, %v2684
      %v2689 = vmul.f32 %v2657, %v2685
      %v2690 = vmul.f32 %v2658, %v2686
      %v2691 = vlaneseq
      %v2692 = vshrl.u32 %v2691, 7
      %v2693 = vsub.s32 0, %v2692
      %v2694 = vrot.slane %v2638, %v2693
      %v2695 = vmul.f32 %v2687, %v2694
      %v2696 = vmul.f32 %v2688, %v2694
      %v2697 = vmul.f32 %v2689, %v2694
      %v2698 = vmul.f32 %v2690, %v2694
      %v2699 = vlaneseq
      %v2700 = vshrl.u32 %v2699, 7
      %v2701 = vsub.s32 1, %v2700
      %v2702 = vrot.slane %v2638, %v2701
      %v2703 = vadd.f32 %v2695, %v2702
      %v2704 = vadd.f32 %v2696, %v2702
      %v2705 = vadd.f32 %v2697, %v2702
      %v2706 = vadd.f32 %v2698, %v2702
      %s2707 = scalar_lea.vmem %s8, 32
      %v2708 = vld [vmem:[%s2707] sm:$0xff]
      %v2709 = vld [vmem:[%s2707 + $0x8] sm:$0xff]
      %v2710 = vld [vmem:[%s2707 + $0x10] sm:$0xff]
      %v2711 = vld [vmem:[%s2707 + $0x18] sm:$0xff]
      %s2712 = scalar_lea.vmem %s9, 1
      %v2713 = vld [vmem:[%s2712] sm:$0x1]
      %v2715 = vlaneseq
      %v2716 = vshrl.u32 %v2715, 7
      %v2717 = vsub.s32 0, %v2716
      %v2718 = vrot.slane %v2713, %v2717
      %v2721 = vsel %vm578, %v2703, 0
      %v2724 = vsel %vm578, %v2704, 0
      %v2727 = vsel %vm578, %v2705, 0
      %v2730 = vsel %vm578, %v2706, 0
      %2732 = vmatprep.subr.mxu0 0.0
      %2733 = vmatpush1.msra.mxu0 %v2708
      %2734 = vmatprep.subr.mxu0 0.0
      %2735 = vmatpush1.msra.mxu0 %v2709
      %2736 = vmatprep.subr.mxu0 0.0
      %2737 = vmatpush1.msra.mxu0 %v2710
      %2738 = vmatprep.subr.mxu0 0.0
      %2739 = vmatpush1.msra.mxu0 %v2711
      %2740 = vmatprep.subr.mxu0 0.0
      %2741 = vmatpush1.msra.mxu0 0.0
      %2742 = vmatprep.subr.mxu0 0.0
      %2743 = vmatpush1.msra.mxu0 0.0
      %2744 = vmatprep.subr.mxu0 0.0
      %2745 = vmatpush1.msra.mxu0 0.0
      %2746 = vmatprep.subr.mxu0 0.0
      %2747 = vmatpush1.msra.mxu0 0.0
      %2748 = vmatprep.subr.mxu0 0.0
      %2749 = vmatpush1.msra.mxu0 0.0
      %2750 = vmatprep.subr.mxu0 0.0
      %2751 = vmatpush1.msra.mxu0 0.0
      %2752 = vmatprep.subr.mxu0 0.0
      %2753 = vmatpush1.msra.mxu0 0.0
      %2754 = vmatprep.subr.mxu0 0.0
      %2755 = vmatpush1.msra.mxu0 0.0
      %2756 = vmatprep.subr.mxu0 0.0
      %2757 = vmatpush1.msra.mxu0 0.0
      %2758 = vmatprep.subr.mxu0 0.0
      %2759 = vmatpush1.msra.mxu0 0.0
      %2760 = vmatprep.subr.mxu0 0.0
      %2761 = vmatpush1.msra.mxu0 0.0
      %2762 = vmatprep.subr.mxu0 0.0
      %2763 = vmatpush1.msra.mxu0 0.0
      %2764 = vmatprep.subr.mxu0 0.0
      %2765 = vmatpush1.msra.mxu0 0.0
      %2766 = vmatprep.subr.mxu0 0.0
      %2767 = vmatpush1.msra.mxu0 0.0
      %2768 = vmatprep.subr.mxu0 0.0
      %2769 = vmatpush1.msra.mxu0 0.0
      %2770 = vmatprep.subr.mxu0 0.0
      %2771 = vmatpush1.msra.mxu0 0.0
      %2772 = vmatprep.subr.mxu0 0.0
      %2773 = vmatpush1.msra.mxu0 0.0
      %2774 = vmatprep.subr.mxu0 0.0
      %2775 = vmatpush1.msra.mxu0 0.0
      %2776 = vmatprep.subr.mxu0 0.0
      %2777 = vmatpush1.msra.mxu0 0.0
      %2778 = vmatprep.subr.mxu0 0.0
      %2779 = vmatpush1.msra.mxu0 0.0
      %2780 = vmatprep.subr.mxu0 0.0
      %2781 = vmatpush1.msra.mxu0 0.0
      %2782 = vmatprep.subr.mxu0 0.0
      %2783 = vmatpush1.msra.mxu0 0.0
      %2784 = vmatprep.subr.mxu0 0.0
      %2785 = vmatpush1.msra.mxu0 0.0
      %2786 = vmatprep.subr.mxu0 0.0
      %2787 = vmatpush1.msra.mxu0 0.0
      %2788 = vmatprep.subr.mxu0 0.0
      %2789 = vmatpush1.msra.mxu0 0.0
      %2790 = vmatprep.subr.mxu0 0.0
      %2791 = vmatpush1.msra.mxu0 0.0
      %2792 = vmatprep.subr.mxu0 0.0
      %2793 = vmatpush1.msra.mxu0 0.0
      %2794 = vmatprep.subr.mxu0 0.0
      %2795 = vmatpush1.msra.mxu0 0.0
      %2796 = vmatprep.mubr.f32.mxu0 0.0
      %2797 = vmatmul.mubr.f32.gmra.mrb[0].mxu0 %v2721
      %v2798 = vpop.f32.mrb[0].mxu0
      %v2799 = vadd.f32 %v2718, %v2798
      %v2800 = vpop.f32.mrb[0].mxu0
      %2801 = vmatprep.mubr.f32.mxu0 0.0
      %2802 = vmatmul.mubr.f32.gmra.mrb[0].mxu0 %v2724
      %v2803 = vpop.f32.mrb[0].mxu0
      %v2804 = vadd.f32 %v2718, %v2803
      %v2805 = vpop.f32.mrb[0].mxu0
      %2806 = vmatprep.mubr.f32.mxu0 0.0
      %2807 = vmatmul.mubr.f32.gmra.mrb[0].mxu0 %v2727
      %v2808 = vpop.f32.mrb[0].mxu0
      %v2809 = vadd.f32 %v2718, %v2808
      %v2810 = vpop.f32.mrb[0].mxu0
      %2811 = vmatprep.mubr.f32.mxu0 0.0
      %2812 = vmatmul.mubr.f32.gmra.mrb[0].mxu0 %v2730
      %v2813 = vpop.f32.mrb[0].mxu0
      %v2814 = vadd.f32 %v2718, %v2813
      %v2815 = vpop.f32.mrb[0].mxu0
      %2816 = vdwg.mxu0
      %v2817 = vmul.f32 %v2799, 0.5
      %v2818 = vmul.f32 %v2804, 0.5
      %v2819 = vmul.f32 %v2809, 0.5
      %v2820 = vmul.f32 %v2814, 0.5
      %v2821 = vmul.f32 %v2799, 0.70710677
      %v2822 = vmul.f32 %v2804, 0.70710677
      %v2823 = vmul.f32 %v2809, 0.70710677
      %v2824 = vmul.f32 %v2814, 0.70710677
      %v2825 = verf.f32.pop %v2821
      %v2826 = verf.f32.pop %v2822
      %v2827 = verf.f32.pop %v2823
      %v2828 = verf.f32.pop %v2824
      %v2829 = vadd.f32 %v2825, 1.0
      %v2830 = vadd.f32 %v2826, 1.0
      %v2831 = vadd.f32 %v2827, 1.0
      %v2832 = vadd.f32 %v2828, 1.0
      %v2833 = vmul.f32 %v2817, %v2829
      %v2834 = vmul.f32 %v2818, %v2830
      %v2835 = vmul.f32 %v2819, %v2831
      %v2836 = vmul.f32 %v2820, %v2832
      %s2837 = scalar_lea.vmem %s10, 64
      %v2838 = vld [vmem:[%s2837] sm:$0xff]
      %v2839 = vld [vmem:[%s2837 + $0x8] sm:$0xff]
      %v2840 = vld [vmem:[%s2837 + $0x10] sm:$0xff]
      %v2841 = vld [vmem:[%s2837 + $0x18] sm:$0xff]
      %v2842 = vld [vmem:[%s2837 + $0x20] sm:$0xff]
      %v2843 = vld [vmem:[%s2837 + $0x28] sm:$0xff]
      %v2844 = vld [vmem:[%s2837 + $0x30] sm:$0xff]
      %v2845 = vld [vmem:[%s2837 + $0x38] sm:$0xff]
      %s2846 = scalar_lea.vmem %s11, 1
      %v2847 = vld [vmem:[%s2846] sm:$0x1]
      %v2849 = vlaneseq
      %v2850 = vshrl.u32 %v2849, 7
      %v2851 = vsub.s32 0, %v2850
      %v2852 = vrot.slane %v2847, %v2851
      %v2855 = vsel %vm1662, %v2833, 0
      %v2858 = vsel %vm1662, %v2834, 0
      %v2861 = vsel %vm1662, %v2835, 0
      %v2864 = vsel %vm1662, %v2836, 0
      %2866 = vmatprep.subr.mxu0 0.0
      %2867 = vmatpush1.msra.mxu0 %v2838
      %2868 = vmatprep.subr.mxu0 0.0
      %2869 = vmatpush1.msra.mxu0 %v2839
      %2870 = vmatprep.subr.mxu0 0.0
      %2871 = vmatpush1.msra.mxu0 %v2840
      %2872 = vmatprep.subr.mxu0 0.0
      %2873 = vmatpush1.msra.mxu0 %v2841
      %2874 = vmatprep.subr.mxu0 0.0
      %2875 = vmatpush1.msra.mxu0 %v2842
      %2876 = vmatprep.subr.mxu0 0.0
      %2877 = vmatpush1.msra.mxu0 %v2843
      %2878 = vmatprep.subr.mxu0 0.0
      %2879 = vmatpush1.msra.mxu0 %v2844
      %2880 = vmatprep.subr.mxu0 0.0
      %2881 = vmatpush1.msra.mxu0 %v2845
      %2882 = vmatprep.subr.mxu0 0.0
      %2883 = vmatpush1.msra.mxu0 0.0
      %2884 = vmatprep.subr.mxu0 0.0
      %2885 = vmatpush1.msra.mxu0 0.0
      %2886 = vmatprep.subr.mxu0 0.0
      %2887 = vmatpush1.msra.mxu0 0.0
      %2888 = vmatprep.subr.mxu0 0.0
      %2889 = vmatpush1.msra.mxu0 0.0
      %2890 = vmatprep.subr.mxu0 0.0
      %2891 = vmatpush1.msra.mxu0 0.0
      %2892 = vmatprep.subr.mxu0 0.0
      %2893 = vmatpush1.msra.mxu0 0.0
      %2894 = vmatprep.subr.mxu0 0.0
      %2895 = vmatpush1.msra.mxu0 0.0
      %2896 = vmatprep.subr.mxu0 0.0
      %2897 = vmatpush1.msra.mxu0 0.0
      %2898 = vmatprep.subr.mxu0 0.0
      %2899 = vmatpush1.msra.mxu0 0.0
      %2900 = vmatprep.subr.mxu0 0.0
      %2901 = vmatpush1.msra.mxu0 0.0
      %2902 = vmatprep.subr.mxu0 0.0
      %2903 = vmatpush1.msra.mxu0 0.0
      %2904 = vmatprep.subr.mxu0 0.0
      %2905 = vmatpush1.msra.mxu0 0.0
      %2906 = vmatprep.subr.mxu0 0.0
      %2907 = vmatpush1.msra.mxu0 0.0
      %2908 = vmatprep.subr.mxu0 0.0
      %2909 = vmatpush1.msra.mxu0 0.0
      %2910 = vmatprep.subr.mxu0 0.0
      %2911 = vmatpush1.msra.mxu0 0.0
      %2912 = vmatprep.subr.mxu0 0.0
      %2913 = vmatpush1.msra.mxu0 0.0
      %2914 = vmatprep.subr.mxu0 0.0
      %2915 = vmatpush1.msra.mxu0 0.0
      %2916 = vmatprep.subr.mxu0 0.0
      %2917 = vmatpush1.msra.mxu0 0.0
      %2918 = vmatprep.subr.mxu0 0.0
      %2919 = vmatpush1.msra.mxu0 0.0
      %2920 = vmatprep.subr.mxu0 0.0
      %2921 = vmatpush1.msra.mxu0 0.0
      %2922 = vmatprep.subr.mxu0 0.0
      %2923 = vmatpush1.msra.mxu0 0.0
      %2924 = vmatprep.subr.mxu0 0.0
      %2925 = vmatpush1.msra.mxu0 0.0
      %2926 = vmatprep.subr.mxu0 0.0
      %2927 = vmatpush1.msra.mxu0 0.0
      %2928 = vmatprep.subr.mxu0 0.0
      %2929 = vmatpush1.msra.mxu0 0.0
      %2930 = vmatprep.mubr.f32.mxu0 0.0
      %2931 = vmatmul.mubr.f32.gmra.mrb[0].mxu0 %v2855
      %v2932 = vpop.f32.mrb[0].mxu0
      %v2933 = vadd.f32 %v2852, %v2932
      %v2934 = vpop.f32.mrb[0].mxu0
      %2935 = vmatprep.mubr.f32.mxu0 0.0
      %2936 = vmatmul.mubr.f32.gmra.mrb[0].mxu0 %v2858
      %v2937 = vpop.f32.mrb[0].mxu0
      %v2938 = vadd.f32 %v2852, %v2937
      %v2939 = vpop.f32.mrb[0].mxu0
      %2940 = vmatprep.mubr.f32.mxu0 0.0
      %2941 = vmatmul.mubr.f32.gmra.mrb[0].mxu0 %v2861
      %v2942 = vpop.f32.mrb[0].mxu0
      %v2943 = vadd.f32 %v2852, %v2942
      %v2944 = vpop.f32.mrb[0].mxu0
      %2945 = vmatprep.mubr.f32.mxu0 0.0
      %2946 = vmatmul.mubr.f32.gmra.mrb[0].mxu0 %v2864
      %v2947 = vpop.f32.mrb[0].mxu0
      %v2948 = vadd.f32 %v2852, %v2947
      %v2949 = vpop.f32.mrb[0].mxu0
      %2950 = vdwg.mxu0
      %v2951 = vadd.f32 %v2933, %v2703
      %v2952 = vadd.f32 %v2938, %v2704
      %v2953 = vadd.f32 %v2943, %v2705
      %v2954 = vadd.f32 %v2948, %v2706
      %s2955 = scalar_lea.vmem %s12, 2
      %v2956 = vld [vmem:[%s2955] sm:$0x3]
      %v2957 = vsel %vm578, %v2951, 0.0
      %2958 = vadd.xlane.f32.xlu0 %v2957
      %v2959 = vpop.xlane.xlu0 %2958
      %v2960 = vsel %vm578, %v2952, 0.0
      %2961 = vadd.xlane.f32.xlu0 %v2960
      %v2962 = vpop.xlane.xlu0 %2961
      %v2963 = vsel %vm578, %v2953, 0.0
      %2964 = vadd.xlane.f32.xlu0 %v2963
      %v2965 = vpop.xlane.xlu0 %2964
      %v2966 = vsel %vm578, %v2954, 0.0
      %2967 = vadd.xlane.f32.xlu0 %v2966
      %v2968 = vpop.xlane.xlu0 %2967
      %v2969 = vmul.f32 %v2959, %v591
      %v2970 = vmul.f32 %v2962, %v591
      %v2971 = vmul.f32 %v2965, %v591
      %v2972 = vmul.f32 %v2968, %v591
      %v2973 = vsub.f32 %v2951, %v2969
      %v2974 = vsub.f32 %v2952, %v2970
      %v2975 = vsub.f32 %v2953, %v2971
      %v2976 = vsub.f32 %v2954, %v2972
      %v2977 = vmul.f32 %v2973, %v2973
      %v2978 = vmul.f32 %v2974, %v2974
      %v2979 = vmul.f32 %v2975, %v2975
      %v2980 = vmul.f32 %v2976, %v2976
      %v2981 = vsel %vm578, %v2977, 0.0
      %2982 = vadd.xlane.f32.xlu0 %v2981
      %v2983 = vpop.xlane.xlu0 %2982
      %v2984 = vsel %vm578, %v2978, 0.0
      %2985 = vadd.xlane.f32.xlu0 %v2984
      %v2986 = vpop.xlane.xlu0 %2985
      %v2987 = vsel %vm578, %v2979, 0.0
      %2988 = vadd.xlane.f32.xlu0 %v2987
      %v2989 = vpop.xlane.xlu0 %2988
      %v2990 = vsel %vm578, %v2980, 0.0
      %2991 = vadd.xlane.f32.xlu0 %v2990
      %v2992 = vpop.xlane.xlu0 %2991
      %v2993 = vmul.f32 %v2983, %v591
      %v2994 = vmul.f32 %v2986, %v591
      %v2995 = vmul.f32 %v2989, %v591
      %v2996 = vmul.f32 %v2992, %v591
      %v2997 = vadd.f32 %v2993, 1e-12
      %v2998 = vadd.f32 %v2994, 1e-12
      %v2999 = vadd.f32 %v2995, 1e-12
      %v3000 = vadd.f32 %v2996, 1e-12
      %v3001 = vrsqrt.pop %v2997
      %v3002 = vrsqrt.pop %v2998
      %v3003 = vrsqrt.pop %v2999
      %v3004 = vrsqrt.pop %v3000
      %v3005 = vmul.f32 %v2973, %v3001
      %v3006 = vmul.f32 %v2974, %v3002
      %v3007 = vmul.f32 %v2975, %v3003
      %v3008 = vmul.f32 %v2976, %v3004
      %v3009 = vlaneseq
      %v3010 = vshrl.u32 %v3009, 7
      %v3011 = vsub.s32 0, %v3010
      %v3012 = vrot.slane %v2956, %v3011
      %v3013 = vmul.f32 %v3005, %v3012
      %v3014 = vmul.f32 %v3006, %v3012
      %v3015 = vmul.f32 %v3007, %v3012
      %v3016 = vmul.f32 %v3008, %v3012
      %v3017 = vlaneseq
      %v3018 = vshrl.u32 %v3017, 7
      %v3019 = vsub.s32 1, %v3018
      %v3020 = vrot.slane %v2956, %v3019
      %v3021 = vadd.f32 %v3013, %v3020
      %v3022 = vadd.f32 %v3014, %v3020
      %v3023 = vadd.f32 %v3015, %v3020
      %v3024 = vadd.f32 %v3016, %v3020
      %vm3025 = vcmask 253952
      %3026 = vst.msk [vmem:[#allocation3] sm:$0x1] %vm3025, %v3021
      %3027 = vst.msk [vmem:[#allocation3 + $0x1] sm:$0x1] %vm3025, %v3022
      %3028 = vst.msk [vmem:[#allocation3 + $0x2] sm:$0x1] %vm3025, %v3023
      %3029 = vst.msk [vmem:[#allocation3 + $0x3] sm:$0x1] %vm3025, %v3024
      %v3030 = vld [vmem:[#allocation3] sm:$0xf]
      %v3031 = vld [vmem:[%s13] sm:$0xff]
      %v3032 = vld [vmem:[%s13 + $0x8] sm:$0xff]
      %v3033 = vld [vmem:[%s13 + $0x10] sm:$0xff]
      %v3034 = vld [vmem:[%s13 + $0x18] sm:$0xff]
      %v3035 = vld [vmem:[%s14] sm:$0x1]
      %v3037 = vlaneseq
      %v3038 = vshrl.u32 %v3037, 7
      %v3039 = vsub.s32 0, %v3038
      %v3040 = vrot.slane %v3035, %v3039
      %v3043 = vsel %vm578, %v3030, 0
      %3045 = vmatprep.subr.mxu0 0.0
      %3046 = vmatpush1.msra.mxu0 %v3031
      %3047 = vmatprep.subr.mxu0 0.0
      %3048 = vmatpush1.msra.mxu0 %v3032
      %3049 = vmatprep.subr.mxu0 0.0
      %3050 = vmatpush1.msra.mxu0 %v3033
      %3051 = vmatprep.subr.mxu0 0.0
      %3052 = vmatpush1.msra.mxu0 %v3034
      %3053 = vmatprep.subr.mxu0 0.0
      %3054 = vmatpush1.msra.mxu0 0.0
      %3055 = vmatprep.subr.mxu0 0.0
      %3056 = vmatpush1.msra.mxu0 0.0
      %3057 = vmatprep.subr.mxu0 0.0
      %3058 = vmatpush1.msra.mxu0 0.0
      %3059 = vmatprep.subr.mxu0 0.0
      %3060 = vmatpush1.msra.mxu0 0.0
      %3061 = vmatprep.subr.mxu0 0.0
      %3062 = vmatpush1.msra.mxu0 0.0
      %3063 = vmatprep.subr.mxu0 0.0
      %3064 = vmatpush1.msra.mxu0 0.0
      %3065 = vmatprep.subr.mxu0 0.0
      %3066 = vmatpush1.msra.mxu0 0.0
      %3067 = vmatprep.subr.mxu0 0.0
      %3068 = vmatpush1.msra.mxu0 0.0
      %3069 = vmatprep.subr.mxu0 0.0
      %3070 = vmatpush1.msra.mxu0 0.0
      %3071 = vmatprep.subr.mxu0 0.0
      %3072 = vmatpush1.msra.mxu0 0.0
      %3073 = vmatprep.subr.mxu0 0.0
      %3074 = vmatpush1.msra.mxu0 0.0
      %3075 = vmatprep.subr.mxu0 0.0
      %3076 = vmatpush1.msra.mxu0 0.0
      %3077 = vmatprep.subr.mxu0 0.0
      %3078 = vmatpush1.msra.mxu0 0.0
      %3079 = vmatprep.subr.mxu0 0.0
      %3080 = vmatpush1.msra.mxu0 0.0
      %3081 = vmatprep.subr.mxu0 0.0
      %3082 = vmatpush1.msra.mxu0 0.0
      %3083 = vmatprep.subr.mxu0 0.0
      %3084 = vmatpush1.msra.mxu0 0.0
      %3085 = vmatprep.subr.mxu0 0.0
      %3086 = vmatpush1.msra.mxu0 0.0
      %3087 = vmatprep.subr.mxu0 0.0
      %3088 = vmatpush1.msra.mxu0 0.0
      %3089 = vmatprep.subr.mxu0 0.0
      %3090 = vmatpush1.msra.mxu0 0.0
      %3091 = vmatprep.subr.mxu0 0.0
      %3092 = vmatpush1.msra.mxu0 0.0
      %3093 = vmatprep.subr.mxu0 0.0
      %3094 = vmatpush1.msra.mxu0 0.0
      %3095 = vmatprep.subr.mxu0 0.0
      %3096 = vmatpush1.msra.mxu0 0.0
      %3097 = vmatprep.subr.mxu0 0.0
      %3098 = vmatpush1.msra.mxu0 0.0
      %3099 = vmatprep.subr.mxu0 0.0
      %3100 = vmatpush1.msra.mxu0 0.0
      %3101 = vmatprep.subr.mxu0 0.0
      %3102 = vmatpush1.msra.mxu0 0.0
      %3103 = vmatprep.subr.mxu0 0.0
      %3104 = vmatpush1.msra.mxu0 0.0
      %3105 = vmatprep.subr.mxu0 0.0
      %3106 = vmatpush1.msra.mxu0 0.0
      %3107 = vmatprep.subr.mxu0 0.0
      %3108 = vmatpush1.msra.mxu0 0.0
      %3109 = vmatprep.mubr.f32.mxu0 0.0
      %3110 = vmatmul.mubr.f32.gmra.mrb[0].mxu0 %v3043
      %v3111 = vpop.f32.mrb[0].mxu0
      %v3112 = vadd.f32 %v3040, %v3111
      %v3113 = vpop.f32.mrb[0].mxu0
      %3114 = vdwg.mxu0
      %v3115 = vtanh.pop %v3112
      %v3116 = vmul.f32 %v3115, 0.5
      %v3117 = vmul.f32 %v3115, 0.70710677
      %v3118 = verf.f32.pop %v3117
      %v3119 = vadd.f32 %v3118, 1.0
      %v3120 = vmul.f32 %v3116, %v3119
      %v3121 = vld [vmem:[%s15] sm:$0x1]
      %v3122 = vld [vmem:[#allocation4] sm:$0x1]
      %3124 = vset.pattern.permute.xlu0 0
      %3125 = vperm.xlu0 %3124, %v3122
      %v3126 = vpop.permute.xlu0 %3125
      %v3128 = vlaneseq
      %v3129 = vshrl.u32 %v3128, 7
      %v3130 = vsub.s32 0, %v3129
      %v3131 = vrot.slane %v3126, %v3130
      %v3133 = vsel %vm578, %v3121, 0
      %v3136 = vsel %vm578, %v3120, 0
      %3138 = vmatprep.subr.mxu0 0.0
      %3139 = vmatpush1.xpose.msra.mxu0 %v3136
      %3140 = vmatprep.subr.mxu0 0.0
      %3141 = vmatpush1.xpose.msra.mxu0 0.0
      %3142 = vmatprep.subr.mxu0 0.0
      %3143 = vmatpush1.xpose.msra.mxu0 0.0
      %3144 = vmatprep.subr.mxu0 0.0
      %3145 = vmatpush1.xpose.msra.mxu0 0.0
      %3146 = vmatprep.subr.mxu0 0.0
      %3147 = vmatpush1.xpose.msra.mxu0 0.0
      %3148 = vmatprep.subr.mxu0 0.0
      %3149 = vmatpush1.xpose.msra.mxu0 0.0
      %3150 = vmatprep.subr.mxu0 0.0
      %3151 = vmatpush1.xpose.msra.mxu0 0.0
      %3152 = vmatprep.subr.mxu0 0.0
      %3153 = vmatpush1.xpose.msra.mxu0 0.0
      %3154 = vmatprep.subr.mxu0 0.0
      %3155 = vmatpush1.xpose.msra.mxu0 0.0
      %3156 = vmatprep.subr.mxu0 0.0
      %3157 = vmatpush1.xpose.msra.mxu0 0.0
      %3158 = vmatprep.subr.mxu0 0.0
      %3159 = vmatpush1.xpose.msra.mxu0 0.0
      %3160 = vmatprep.subr.mxu0 0.0
      %3161 = vmatpush1.xpose.msra.mxu0 0.0
      %3162 = vmatprep.subr.mxu0 0.0
      %3163 = vmatpush1.xpose.msra.mxu0 0.0
      %3164 = vmatprep.subr.mxu0 0.0
      %3165 = vmatpush1.xpose.msra.mxu0 0.0
      %3166 = vmatprep.subr.mxu0 0.0
      %3167 = vmatpush1.xpose.msra.mxu0 0.0
      %3168 = vmatprep.subr.mxu0 0.0
      %3169 = vmatpush1.xpose.msra.mxu0 0.0
      %3170 = vmatprep.subr.mxu0 0.0
      %3171 = vmatpush1.xpose.msra.mxu0 0.0
      %3172 = vmatprep.subr.mxu0 0.0
      %3173 = vmatpush1.xpose.msra.mxu0 0.0
      %3174 = vmatprep.subr.mxu0 0.0
      %3175 = vmatpush1.xpose.msra.mxu0 0.0
      %3176 = vmatprep.subr.mxu0 0.0
      %3177 = vmatpush1.xpose.msra.mxu0 0.0
      %3178 = vmatprep.subr.mxu0 0.0
      %3179 = vmatpush1.xpose.msra.mxu0 0.0
      %3180 = vmatprep.subr.mxu0 0.0
      %3181 = vmatpush1.xpose.msra.mxu0 0.0
      %3182 = vmatprep.subr.mxu0 0.0
      %3183 = vmatpush1.xpose.msra.mxu0 0.0
      %3184 = vmatprep.subr.mxu0 0.0
      %3185 = vmatpush1.xpose.msra.mxu0 0.0
      %3186 = vmatprep.subr.mxu0 0.0
      %3187 = vmatpush1.xpose.msra.mxu0 0.0
      %3188 = vmatprep.subr.mxu0 0.0
      %3189 = vmatpush1.xpose.msra.mxu0 0.0
      %3190 = vmatprep.subr.mxu0 0.0
      %3191 = vmatpush1.xpose.msra.mxu0 0.0
      %3192 = vmatprep.subr.mxu0 0.0
      %3193 = vmatpush1.xpose.msra.mxu0 0.0
      %3194 = vmatprep.subr.mxu0 0.0
      %3195 = vmatpush1.xpose.msra.mxu0 0.0
      %3196 = vmatprep.subr.mxu0 0.0
      %3197 = vmatpush1.xpose.msra.mxu0 0.0
      %3198 = vmatprep.subr.mxu0 0.0
      %3199 = vmatpush1.xpose.msra.mxu0 0.0
      %3200 = vmatprep.subr.mxu0 0.0
      %3201 = vmatpush1.xpose.msra.mxu0 0.0
      %3202 = vmatprep.mubr.f32.mxu0 0.0
      %3203 = vmatmul.mubr.f32.gmra.mrb[0].mxu0 %v3133
      %v3204 = vpop.f32.mrb[0].mxu0
      %v3205 = vadd.f32 %v3131, %v3204
      %v3206 = vpop.f32.mrb[0].mxu0
      %3207 = vdwg.mxu0
      %vm3208 = vcmask 24576
      %3209 = vst.msk [vmem:[%s568] sm:$0x1] %vm3208, %v3205
      %p3210 = scmp.lt.s32.totalorder %s30, 1
      %s3211 = scalar_select %p3210, %s30, 1
      %s3212 = scalar_lea.vmem %s17, %s3211
      // Predicated region
      $region89: #{bert_simple_forward.1} parent=87 // pred_check
        %p3213 = pneg %p415
      $region90: #{bert_simple_forward.1} parent=87 // pred_check_branch
        %3215 = sbr.rel (%p3213) target = $region92
      $region91: #{bert_simple_forward.1} parent=87 // pred_region
        _
      $region92: #{bert_simple_forward.1} parent=87 // pred_fallthru
        _
    $region88: #{bert_simple_forward.1} parent=5 // pred_fallthru
      _
    %p3216 = scmp.le.s32.totalorder 2, %s25
    // Predicated region
    $region93: #{bert_simple_forward.1} parent=5 // pred_check
      %p3217 = pneg %p3216
    $region94: #{bert_simple_forward.1} parent=5 // pred_check_branch
      %3219 = sbr.rel (%p3217) target = $region96
    $region95: #{bert_simple_forward.1} parent=5 // pred_region
      %s3220 = ssub.s32 %s25, 2
      // Predicated region
      $region97: #{bert_simple_forward.1} parent=95 // pred_check
        %p3221 = pneg %p421
      $region98: #{bert_simple_forward.1} parent=95 // pred_check_branch
        %3223 = sbr.rel (%p3221) target = $region100
      $region99: #{bert_simple_forward.1} parent=95 // pred_region
        %p3224 = scmp.lt.s32.totalorder %s31, 1
        %s3225 = scalar_select %p3224, %s31, 1
        %s3226 = scalar_lea.vmem %s17, %s3225
      $region100: #{bert_simple_forward.1} parent=95 // pred_fallthru
        _
    $region96: #{bert_simple_forward.1} parent=5 // pred_fallthru
      _
  $region6: #{bert_simple_forward.1} parent=0 // loop_footer
    %s29 = sadd.s32 1, %s25
  $region7: #{bert_simple_forward.1} parent=0 // loop_footer_branch
    %24 = sbr.rel target = $region3
  $region8: #{bert_simple_forward.1} parent=0 // loop_exit
    _

</llo_original>
